<compile_context>
chip_gen: v7x
topology: tpu7x:2x2x1
jax: 0.10.0
libtpu: 0.0.40
codegen_flags: <defaults>
</compile_context>

<pallas_src>
import functools

import jax
import jax.numpy as jnp
from jax.experimental import pallas as pl
from jax.experimental.pallas import tpu as pltpu

TM_MAX = 1024                        # max row tile
ROW_ALIGN = 16                       # sublane multiple valid for f32 and bf16 blocks
MIN_TILES = 2                        # >= 2 grid steps -> both v7x TensorCores usable
VMEM_LIMIT_BYTES = 32 * 1024 * 1024  # re-derived; well inside v7x's 64 MiB physical VMEM


def _round_up(n, m):
    return ((n + m - 1) // m) * m


def _cdiv(a, b):
    return -(-a // b)


def _choose_tile(n):
    """Balanced row tiling: padding bounded by ~tm, at least MIN_TILES grid steps."""
    n_al = _round_up(max(n, 1), ROW_ALIGN)
    tiles = max(MIN_TILES, _cdiv(n_al, TM_MAX))
    tm = _round_up(_cdiv(n_al, tiles), ROW_ALIGN)
    return tm, tm * tiles


def _pack_consts(param_list):
    """Pack consecutive same-width params into flat f32 arrays.

    Returns (arrays, slices): slices[i] = (array_idx, row_start, n_rows) for the
    i-th logical parameter, in order.  One constant BlockSpec per packed array
    instead of ~10 tiny operands per pallas_call.
    """
    arrays, slices, cur, cur_w = [], [], [], None

    def _flush():
        nonlocal cur, cur_w
        if cur:
            arrays.append(jnp.concatenate(cur, axis=0).astype(jnp.float32))
        cur, cur_w = [], None

    for p in param_list:
        w = p.shape[1]
        if cur_w is not None and w != cur_w:
            _flush()
        cur_w = w
        slices.append((len(arrays), sum(c.shape[0] for c in cur), p.shape[0]))
        cur.append(p)
    _flush()
    return arrays, slices


# ----------------------------------------------------------------------------
# Fused MLP kernel:
#   [x_0 .. x_{k-1}] -> (sum_j x_j @ W0_j + b0) -> ReLU -> ... -> Linear
#   -> (LayerNorm) -> (+ residual from x_refs[residual_index]) -> out(s)
# ----------------------------------------------------------------------------
def _make_mlp_kernel(n_inputs, n_const, slices, n_lin, layer_norm,
                     residual_index, dual_out):
    def kernel(*refs):
        x_refs = refs[:n_inputs]
        c_refs = refs[n_inputs:n_inputs + n_const]
        out_refs = refs[n_inputs + n_const:]

        it = iter(slices)

        def nxt(bf16=False):
            a, r0, nr = next(it)
            v = c_refs[a][r0:r0 + nr, :]
            return v.astype(jnp.bfloat16) if bf16 else v

        # Layer 0: implicit feature concat == sum of per-input matmuls
        # (bf16 MXU operands, f32 accumulation).
        # TODO(synk): on v6e/v7x a single K=96 dot (in-VMEM lane concat) would
        # cut MXU weight pushes 3x; unaligned lane concat is kept out for
        # lowering safety.
        h = None
        for j in range(n_inputs):
            part = jnp.dot(x_refs[j][...].astype(jnp.bfloat16), nxt(bf16=True),
                           preferred_element_type=jnp.float32)
            h = part if h is None else h + part
        h = jnp.maximum(h + nxt(), 0.0)          # bias0 (f32) + ReLU (n_lin >= 2)

        for i in range(1, n_lin):
            w = nxt(bf16=True)
            b = nxt()
            h = jnp.dot(h.astype(jnp.bfloat16), w,
                        preferred_element_type=jnp.float32) + b
            if i < n_lin - 1:                    # activate_final=False
                h = jnp.maximum(h, 0.0)

        if layer_norm:                           # nn.LayerNorm(out_dim), eps=1e-5
            gamma, beta = nxt(), nxt()
            inv_d = 1.0 / h.shape[-1]
            mean = jnp.sum(h, axis=-1, keepdims=True) * inv_d
            mean_sq = jnp.sum(h * h, axis=-1, keepdims=True) * inv_d
            var = jnp.maximum(mean_sq - mean * mean, 0.0)  # single-pass variance
            h = (h - mean) * jax.lax.rsqrt(var + 1e-5) * gamma + beta

        if dual_out:
            # out0 = pre-residual (consumed by the scatter), out1 = post-residual.
            res = x_refs[residual_index][...].astype(jnp.float32)
            out_refs[0][...] = h.astype(out_refs[0].dtype)
            out_refs[1][...] = (h + res).astype(out_refs[1].dtype)
        elif residual_index is not None:
            res = x_refs[residual_index][...].astype(jnp.float32)
            out_refs[0][...] = (h + res).astype(out_refs[0].dtype)
        else:
            out_refs[0][...] = h.astype(out_refs[0].dtype)

    return kernel


def mlp_pallas(xs, params, *, layer_norm, tm, residual_index=None,
               dual_out=False, out_dtype=jnp.bfloat16):
    """Fused MLP (+LayerNorm +residual) over rows of the row-padded inputs.

    xs: list of [N, d_j] arrays (implicit feature concat via split-sum — no HBM
        concat).  residual_index: which xs entry is the residual added AFTER
        LayerNorm (PyTorch `+=`) — deduped, no separate residual DMA.
    dual_out: also emit the pre-residual output (the scatter consumes it).
    """
    n = xs[0].shape[0]
    assert n % tm == 0, (n, tm)
    if dual_out:
        assert residual_index is not None
    n_inputs = len(xs)
    n_ln = 2 if layer_norm else 0
    n_lin = (len(params) - n_ln) // 2
    assert n_lin >= 2

    weights = [params[2 * i] for i in range(n_lin)]
    biases = [params[2 * i + 1] for i in range(n_lin)]
    out_dim = weights[-1].shape[1]

    # Lane-dense output for the narrow decoder head: pad the final layer's
    # columns to a multiple of 128 (unmasked stores); caller slices columns once.
    # TODO(synk): the hidden=32 latent path still stores 32/128 lanes (masked
    # vst); a 4-row lane-packed [N/4, 128] layout with block-diagonal weights
    # would make it lane-dense, but requires the gather/scatter to be fused
    # in-kernel first (logical-row indexing breaks under XLA jnp.take).
    out_eff = out_dim
    if (not layer_norm) and out_dim % 128 != 0:
        out_eff = _round_up(out_dim, 128)
        weights[-1] = jnp.pad(weights[-1], ((0, 0), (0, out_eff - out_dim)))
        biases[-1] = jnp.pad(biases[-1], ((0, 0), (0, out_eff - out_dim)))
    if residual_index is not None:
        assert xs[residual_index].shape[1] == out_eff == out_dim

    # Logical constants: w0 split by input widths (concat@W0 == sum parts@W0_j),
    # then b0, (w_i, b_i)..., gamma, beta — packed into 1-2 flat arrays.
    dims = [x.shape[1] for x in xs]
    logical, off = [], 0
    for d in dims:
        logical.append(weights[0][off:off + d])
        off += d
    logical.append(biases[0])
    for i in range(1, n_lin):
        logical += [weights[i], biases[i]]
    if layer_norm:
        logical += [params[-2], params[-1]]
    const_arrays, slices = _pack_consts(logical)

    in_specs = [pl.BlockSpec((tm, d), lambda i: (i, 0)) for d in dims]
    in_specs += [pl.BlockSpec(c.shape, lambda i: (0, 0)) for c in const_arrays]

    row_spec = pl.BlockSpec((tm, out_eff), lambda i: (i, 0))
    if dual_out:
        out_specs = (row_spec, row_spec)
        out_shape = (jax.ShapeDtypeStruct((n, out_eff), out_dtype),
                     jax.ShapeDtypeStruct((n, out_eff), out_dtype))
    else:
        out_specs = row_spec
        out_shape = jax.ShapeDtypeStruct((n, out_eff), out_dtype)

    return pl.pallas_call(
        _make_mlp_kernel(n_inputs, len(const_arrays), tuple(slices), n_lin,
                         layer_norm, residual_index, dual_out),
        grid=(n // tm,),
        in_specs=in_specs,
        out_specs=out_specs,
        out_shape=out_shape,
        compiler_params=pltpu.CompilerParams(
            dimension_semantics=("parallel",),
            vmem_limit_bytes=VMEM_LIMIT_BYTES),
    )(*(list(xs) + const_arrays))


# ----------------------------------------------------------------------------
# Deterministic parameter construction (mirrors the PyTorch MLP structure).
# ----------------------------------------------------------------------------
def make_mlp_params(key, in_dim, hidden_dim, out_dim, num_layers, layer_norm):
    dims = [in_dim] + [hidden_dim] * num_layers + [out_dim]
    params = []
    for i in range(len(dims) - 1):
        key, kw, kb = jax.random.split(key, 3)
        w = 0.1 * jax.random.normal(kw, (dims[i], dims[i + 1]), jnp.float32)
        b = 0.01 * jax.random.normal(kb, (1, dims[i + 1]), jnp.float32)
        params += [w, b]
    if layer_norm:
        params += [jnp.ones((1, out_dim), jnp.float32),
                   jnp.zeros((1, out_dim), jnp.float32)]
    return params, key


def build_params(key, input_dim_node, input_dim_edge, hidden_dim, output_dim,
                 num_layers, message_passing_steps):
    params = {}
    params["enc_node"], key = make_mlp_params(
        key, input_dim_node, hidden_dim, hidden_dim, num_layers, True)
    params["enc_edge"], key = make_mlp_params(
        key, input_dim_edge, hidden_dim, hidden_dim, num_layers, True)
    blocks = []
    for _ in range(message_passing_steps):
        blk = {}
        blk["mlp_node"], key = make_mlp_params(
            key, 2 * hidden_dim, hidden_dim, hidden_dim, num_layers, True)
        blk["mlp_edge"], key = make_mlp_params(
            key, 3 * hidden_dim, hidden_dim, hidden_dim, num_layers, True)
        blocks.append(blk)
    params["blocks"] = blocks
    params["dec"], key = make_mlp_params(
        key, hidden_dim, hidden_dim, output_dim, num_layers, False)
    return params


# ----------------------------------------------------------------------------
# EncodeProcessDecode forward pass (Pallas kernels + XLA gather/scatter glue).
# ----------------------------------------------------------------------------
def encode_process_decode(edge_idx, node_features, edge_features, params):
    senders, receivers = edge_idx[0], edge_idx[1]
    n_nodes = node_features.shape[0]
    n_edges = edge_features.shape[0]
    hidden = params["enc_node"][0].shape[1]
    out_dim = params["dec"][-2].shape[1]

    tm_node, n_node_pad = _choose_tile(n_nodes)
    tm_edge, n_edge_pad = _choose_tile(n_edges)

    # Pad rows ONCE; activations stay padded (and bf16) through the forward.
    nf = jnp.pad(node_features, ((0, n_node_pad - n_nodes), (0, 0)))
    ef = jnp.pad(edge_features, ((0, n_edge_pad - n_edges), (0, 0)))
    pad_e = n_edge_pad - n_edges
    senders_g = jnp.pad(senders, (0, pad_e))            # gather pads -> any valid row
    receivers_g = jnp.pad(receivers, (0, pad_e))
    receivers_s = jnp.pad(receivers, (0, pad_e),
                          constant_values=n_node_pad)   # scatter pads -> OOB, dropped

    # Encoder (bf16 latents in HBM, f32 math inside the kernel).
    node_lat = mlp_pallas([nf], params["enc_node"], layer_norm=True, tm=tm_node)
    edge_lat = mlp_pallas([ef], params["enc_edge"], layer_norm=True, tm=tm_edge)

    # Process (message passing)
    n_blocks = len(params["blocks"])
    for bi, blk in enumerate(params["blocks"]):
        last = bi == n_blocks - 1

        # TODO(synk): gather + scatter-add remain XLA glue.  Fusing them (SMEM
        # scalar-prefetch senders/receivers + in-kernel row gather from a
        # VMEM-resident node table; hoisted sort-by-receiver + segment-sum with
        # a resident accumulator) would remove the remaining [E,32]/[N,32] HBM
        # round trips per step, but data-dependent row gather/scatter inside
        # the kernel does not lower portably; traffic is halved here via bf16.
        sender_f = jnp.take(node_lat, senders_g, axis=0)
        receiver_f = jnp.take(node_lat, receivers_g, axis=0)

        if last:
            # Post-residual edge features are never used after the last block:
            # emit only the pre-residual output (saves one [E,32] HBM write).
            new_edge_pre = mlp_pallas([sender_f, receiver_f, edge_lat],
                                      blk["mlp_edge"], layer_norm=True,
                                      tm=tm_edge)
            new_edge_lat = None
        else:
            new_edge_pre, new_edge_lat = mlp_pallas(
                [sender_f, receiver_f, edge_lat], blk["mlp_edge"],
                layer_norm=True, tm=tm_edge, residual_index=2, dual_out=True)

        # scatter_add consumes PRE-residual edge features (PyTorch op order:
        # _update_nodes runs before the `+=` residuals); accumulate in f32.
        acc = jnp.zeros((n_node_pad, hidden), jnp.float32)
        acc = acc.at[receivers_s].add(new_edge_pre.astype(jnp.float32),
                                      mode="drop")

        # Node update: implicit concat (2 inputs) + residual fused after LN,
        # residual deduped from xs[0] (no extra DMA).
        node_lat = mlp_pallas([node_lat, acc], blk["mlp_node"],
                              layer_norm=True, tm=tm_node, residual_index=0)
        if not last:
            edge_lat = new_edge_lat

    # Decoder (no LayerNorm); columns lane-padded to 128 inside, sliced once.
    dec_out = mlp_pallas([node_lat], params["dec"], layer_norm=False,
                         tm=tm_node, out_dtype=jnp.float32)
    return dec_out[:n_nodes, :out_dim]


# ----------------------------------------------------------------------------
# Pure-jnp references (PyTorch semantics) for correctness validation.
# ----------------------------------------------------------------------------
def _mlp_ref(x, params, layer_norm, lp):
    n_ln = 2 if layer_norm else 0
    n_lin = (len(params) - n_ln) // 2
    h = x
    for i in range(n_lin):
        w, b = params[2 * i], params[2 * i + 1]
        if lp:
            h = jnp.dot(h.astype(jnp.bfloat16), w.astype(jnp.bfloat16),
                        preferred_element_type=jnp.float32) + b
        else:
            h = jnp.dot(h, w, preferred_element_type=jnp.float32) + b
        if i < n_lin - 1:
            h = jnp.maximum(h, 0.0)
    if layer_norm:
        gamma, beta = params[-2], params[-1]
        mean = jnp.mean(h, axis=-1, keepdims=True)
        var = jnp.mean((h - mean) ** 2, axis=-1, keepdims=True)
        h = (h - mean) * jax.lax.rsqrt(var + 1e-5) * gamma + beta
    return h


def epd_reference(edge_idx, node_features, edge_features, params,
                  low_precision=False):
    """With low_precision=True, mimics the kernel's bf16 storage / matmul
    casting points so the comparison isolates implementation differences from
    the intended mixed-precision policy."""
    lp = low_precision
    cast = ((lambda a: a.astype(jnp.bfloat16).astype(jnp.float32)) if lp
            else (lambda a: a))
    senders, receivers = edge_idx[0], edge_idx[1]
    n_nodes = node_features.shape[0]
    node_lat = cast(_mlp_ref(node_features, params["enc_node"], True, lp))
    edge_lat = cast(_mlp_ref(edge_features, params["enc_edge"], True, lp))
    for blk in params["blocks"]:
        s_f = node_lat[senders]
        r_f = node_lat[receivers]
        e_in = jnp.concatenate([s_f, r_f, edge_lat], axis=-1)
        h_e = _mlp_ref(e_in, blk["mlp_edge"], True, lp)       # pre-residual
        e_pre = cast(h_e)
        acc = jnp.zeros((n_nodes, e_pre.shape[1]), jnp.float32)
        acc = acc.at[receivers].add(e_pre)
        n_in = jnp.concatenate([node_lat, acc], axis=-1)
        h_n = _mlp_ref(n_in, blk["mlp_node"], True, lp)
        new_node = cast(h_n + node_lat)                       # residual AFTER LN
        new_edge = cast(h_e + edge_lat)
        node_lat, edge_lat = new_node, new_edge
    return _mlp_ref(node_lat, params["dec"], False, lp)


if __name__ == "__main__":
    # Small, deterministic configuration.
    input_dim_node = 11
    input_dim_edge = 3
    hidden_dim = 32
    output_dim = 2
    num_layers = 2
    message_passing_steps = 2
    n_nodes = 32
    n_edges = 64

    key = jax.random.PRNGKey(0)
    k1, k2, k3, k4, kp = jax.random.split(key, 5)

    node_features = jax.random.normal(k1, (n_nodes, input_dim_node), jnp.float32)
    edge_features = jax.random.normal(k2, (n_edges, input_dim_edge), jnp.float32)
    senders = jax.random.randint(k3, (n_edges,), 0, n_nodes, jnp.int32)
    receivers = jax.random.randint(k4, (n_edges,), 0, n_nodes, jnp.int32)
    edge_idx = jnp.stack([senders, receivers], axis=0)

    params = build_params(kp, input_dim_node, input_dim_edge, hidden_dim,
                          output_dim, num_layers, message_passing_steps)

    fwd = jax.jit(functools.partial(encode_process_decode, params=params))
    predict = fwd(edge_idx, node_features, edge_features)
    jax.block_until_ready(predict)

    assert predict.shape == (n_nodes, output_dim)
    assert bool(jnp.all(jnp.isfinite(predict)))

    # Precision-matched reference (isolates kernel-implementation differences).
    ref_lp = epd_reference(edge_idx, node_features, edge_features, params,
                           low_precision=True)
    assert bool(jnp.allclose(predict, ref_lp, atol=5e-3, rtol=5e-3)), (
        "matched-precision mismatch:",
        float(jnp.max(jnp.abs(predict - ref_lp))))

    # Full-f32 (PyTorch-fidelity) reference — loose tolerance covers the bf16
    # latent-storage / MXU policy.
    ref_f32 = epd_reference(edge_idx, node_features, edge_features, params,
                            low_precision=False)
    assert bool(jnp.allclose(predict, ref_f32, atol=1e-1, rtol=1e-1)), (
        "f32-reference mismatch:",
        float(jnp.max(jnp.abs(predict - ref_f32))))

    print("KERNEL_OK")
</pallas_src>

<mosaic_0001>
module attributes {stable_mosaic.version = 11 : i64} {
  func.func @kernel(%arg0: i32, %arg1: memref<16x11xf32, #tpu.memory_space<vmem>>, %arg2: memref<80x32xf32, #tpu.memory_space<vmem>>, %arg3: memref<16x32xbf16, #tpu.memory_space<vmem>>) attributes {dimension_semantics = [#tpu.dimension_semantics<parallel>], iteration_bounds = array<i64: 2>, scalar_prefetch = 0 : i64, scratch_operands = 0 : i64, tpu.core_type = #tpu.core_type<tc>, window_params = [{transform_indices = @transform_0, window_bounds = array<i64: 16, 11>}, {pipeline_mode = #tpu.pipeline_mode<synchronous>, transform_indices = @transform_1, window_bounds = array<i64: 80, 32>}, {transform_indices = @transform_2, window_bounds = array<i64: 16, 32>}]} {
    %c0 = arith.constant 0 : index
    %c0_0 = arith.constant 0 : index
    %0 = vector.load %arg1[%c0, %c0_0] : memref<16x11xf32, #tpu.memory_space<vmem>>, vector<16x11xf32>
    %1 = arith.truncf %0 : vector<16x11xf32> to vector<16x11xbf16>
    %c0_1 = arith.constant 0 : index
    %c0_2 = arith.constant 0 : index
    %2 = vector.load %arg2[%c0_1, %c0_2] : memref<80x32xf32, #tpu.memory_space<vmem>>, vector<11x32xf32>
    %3 = arith.truncf %2 : vector<11x32xf32> to vector<11x32xbf16>
    %cst = arith.constant dense<0.000000e+00> : vector<16x32xf32>
    %4 = tpu.matmul %1, %3, %cst {dimension_numbers = #tpu.dot_dimension_numbers<[1], [0], [0], [1], [0, 0, 1, 1], [], []>} : vector<16x11xbf16>, vector<11x32xbf16>, vector<16x32xf32> -> vector<16x32xf32>
    %c11 = arith.constant 11 : index
    %c0_3 = arith.constant 0 : index
    %5 = vector.load %arg2[%c11, %c0_3] : memref<80x32xf32, #tpu.memory_space<vmem>>, vector<1x32xf32>
    %6 = vector.broadcast %5 : vector<1x32xf32> to vector<16x32xf32>
    %7 = arith.addf %4, %6 : vector<16x32xf32>
    %cst_4 = arith.constant 0.000000e+00 : f32
    %8 = vector.broadcast %cst_4 : f32 to vector<16x32xf32>
    %9 = arith.maximumf %7, %8 : vector<16x32xf32>
    %c12 = arith.constant 12 : index
    %c0_5 = arith.constant 0 : index
    %10 = vector.load %arg2[%c12, %c0_5] : memref<80x32xf32, #tpu.memory_space<vmem>>, vector<32x32xf32>
    %11 = arith.truncf %10 : vector<32x32xf32> to vector<32x32xbf16>
    %c44 = arith.constant 44 : index
    %c0_6 = arith.constant 0 : index
    %12 = vector.load %arg2[%c44, %c0_6] : memref<80x32xf32, #tpu.memory_space<vmem>>, vector<1x32xf32>
    %13 = arith.truncf %9 : vector<16x32xf32> to vector<16x32xbf16>
    %cst_7 = arith.constant dense<0.000000e+00> : vector<16x32xf32>
    %14 = tpu.matmul %13, %11, %cst_7 {dimension_numbers = #tpu.dot_dimension_numbers<[1], [0], [0], [1], [0, 0, 1, 1], [], []>} : vector<16x32xbf16>, vector<32x32xbf16>, vector<16x32xf32> -> vector<16x32xf32>
    %15 = vector.broadcast %12 : vector<1x32xf32> to vector<16x32xf32>
    %16 = arith.addf %14, %15 : vector<16x32xf32>
    %cst_8 = arith.constant 0.000000e+00 : f32
    %17 = vector.broadcast %cst_8 : f32 to vector<16x32xf32>
    %18 = arith.maximumf %16, %17 : vector<16x32xf32>
    %c45 = arith.constant 45 : index
    %c0_9 = arith.constant 0 : index
    %19 = vector.load %arg2[%c45, %c0_9] : memref<80x32xf32, #tpu.memory_space<vmem>>, vector<32x32xf32>
    %20 = arith.truncf %19 : vector<32x32xf32> to vector<32x32xbf16>
    %c77 = arith.constant 77 : index
    %c0_10 = arith.constant 0 : index
    %21 = vector.load %arg2[%c77, %c0_10] : memref<80x32xf32, #tpu.memory_space<vmem>>, vector<1x32xf32>
    %22 = arith.truncf %18 : vector<16x32xf32> to vector<16x32xbf16>
    %cst_11 = arith.constant dense<0.000000e+00> : vector<16x32xf32>
    %23 = tpu.matmul %22, %20, %cst_11 {dimension_numbers = #tpu.dot_dimension_numbers<[1], [0], [0], [1], [0, 0, 1, 1], [], []>} : vector<16x32xbf16>, vector<32x32xbf16>, vector<16x32xf32> -> vector<16x32xf32>
    %24 = vector.broadcast %21 : vector<1x32xf32> to vector<16x32xf32>
    %25 = arith.addf %23, %24 : vector<16x32xf32>
    %c78 = arith.constant 78 : index
    %c0_12 = arith.constant 0 : index
    %26 = vector.load %arg2[%c78, %c0_12] : memref<80x32xf32, #tpu.memory_space<vmem>>, vector<1x32xf32>
    %c79 = arith.constant 79 : index
    %c0_13 = arith.constant 0 : index
    %27 = vector.load %arg2[%c79, %c0_13] : memref<80x32xf32, #tpu.memory_space<vmem>>, vector<1x32xf32>
    %cst_14 = arith.constant dense<0.000000e+00> : vector<16xf32>
    %28 = vector.multi_reduction <add>, %25, %cst_14 [1] : vector<16x32xf32> to vector<16xf32>
    %29 = vector.shape_cast %28 : vector<16xf32> to vector<16x1xf32>
    %cst_15 = arith.constant 3.125000e-02 : f32
    %30 = vector.broadcast %cst_15 : f32 to vector<16x1xf32>
    %31 = arith.mulf %29, %30 : vector<16x1xf32>
    %32 = arith.mulf %25, %25 : vector<16x32xf32>
    %cst_16 = arith.constant dense<0.000000e+00> : vector<16xf32>
    %33 = vector.multi_reduction <add>, %32, %cst_16 [1] : vector<16x32xf32> to vector<16xf32>
    %34 = vector.shape_cast %33 : vector<16xf32> to vector<16x1xf32>
    %cst_17 = arith.constant 3.125000e-02 : f32
    %35 = vector.broadcast %cst_17 : f32 to vector<16x1xf32>
    %36 = arith.mulf %34, %35 : vector<16x1xf32>
    %37 = arith.mulf %31, %31 : vector<16x1xf32>
    %38 = arith.subf %36, %37 : vector<16x1xf32>
    %cst_18 = arith.constant 0.000000e+00 : f32
    %39 = vector.broadcast %cst_18 : f32 to vector<16x1xf32>
    %40 = arith.maximumf %38, %39 : vector<16x1xf32>
    %41 = vector.broadcast %31 : vector<16x1xf32> to vector<16x32xf32>
    %42 = arith.subf %25, %41 : vector<16x32xf32>
    %cst_19 = arith.constant 9.99999974E-6 : f32
    %43 = vector.broadcast %cst_19 : f32 to vector<16x1xf32>
    %44 = arith.addf %40, %43 : vector<16x1xf32>
    %45 = math.rsqrt %44 : vector<16x1xf32>
    %46 = vector.broadcast %45 : vector<16x1xf32> to vector<16x32xf32>
    %47 = arith.mulf %42, %46 : vector<16x32xf32>
    %48 = vector.broadcast %26 : vector<1x32xf32> to vector<16x32xf32>
    %49 = arith.mulf %47, %48 : vector<16x32xf32>
    %50 = vector.broadcast %27 : vector<1x32xf32> to vector<16x32xf32>
    %51 = arith.addf %49, %50 : vector<16x32xf32>
    %52 = arith.truncf %51 : vector<16x32xf32> to vector<16x32xbf16>
    %c0_20 = arith.constant 0 : index
    %c0_21 = arith.constant 0 : index
    %53 = vector.load %arg3[%c0_20, %c0_21] : memref<16x32xbf16, #tpu.memory_space<vmem>>, vector<16x32xbf16>
    tpu.vector_store %arg3[%c0_20, %c0_21], %52 {strides = array<i32>} : memref<16x32xbf16, #tpu.memory_space<vmem>>, vector<16x32xbf16>,
    return
  }
  func.func @transform_0(%arg0: i32) -> (i32, i32) {
    %c0_i32 = arith.constant 0 : i32
    %c0_i32_0 = arith.constant 0 : i32
    return %arg0, %c0_i32 : i32, i32
  }
  func.func @transform_1(%arg0: i32) -> (i32, i32) {
    %c0_i32 = arith.constant 0 : i32
    %c0_i32_0 = arith.constant 0 : i32
    %c0_i32_1 = arith.constant 0 : i32
    return %c0_i32, %c0_i32_0 : i32, i32
  }
  func.func @transform_2(%arg0: i32) -> (i32, i32) {
    %c0_i32 = arith.constant 0 : i32
    %c0_i32_0 = arith.constant 0 : i32
    return %arg0, %c0_i32 : i32, i32
  }
}

module attributes {stable_mosaic.version = 11 : i64} {
  func.func @kernel(%arg0: i32, %arg1: memref<32x3xf32, #tpu.memory_space<vmem>>, %arg2: memref<72x32xf32, #tpu.memory_space<vmem>>, %arg3: memref<32x32xbf16, #tpu.memory_space<vmem>>) attributes {dimension_semantics = [#tpu.dimension_semantics<parallel>], iteration_bounds = array<i64: 2>, scalar_prefetch = 0 : i64, scratch_operands = 0 : i64, tpu.core_type = #tpu.core_type<tc>, window_params = [{transform_indices = @transform_0, window_bounds = array<i64: 32, 3>}, {pipeline_mode = #tpu.pipeline_mode<synchronous>, transform_indices = @transform_1, window_bounds = array<i64: 72, 32>}, {transform_indices = @transform_2, window_bounds = array<i64: 32, 32>}]} {
    %c0 = arith.constant 0 : index
    %c0_0 = arith.constant 0 : index
    %0 = vector.load %arg1[%c0, %c0_0] : memref<32x3xf32, #tpu.memory_space<vmem>>, vector<32x3xf32>
    %1 = arith.truncf %0 : vector<32x3xf32> to vector<32x3xbf16>
    %c0_1 = arith.constant 0 : index
    %c0_2 = arith.constant 0 : index
    %2 = vector.load %arg2[%c0_1, %c0_2] : memref<72x32xf32, #tpu.memory_space<vmem>>, vector<3x32xf32>
    %3 = arith.truncf %2 : vector<3x32xf32> to vector<3x32xbf16>
    %cst = arith.constant dense<0.000000e+00> : vector<32x32xf32>
    %4 = tpu.matmul %1, %3, %cst {dimension_numbers = #tpu.dot_dimension_numbers<[1], [0], [0], [1], [0, 0, 1, 1], [], []>} : vector<32x3xbf16>, vector<3x32xbf16>, vector<32x32xf32> -> vector<32x32xf32>
    %c3 = arith.constant 3 : index
    %c0_3 = arith.constant 0 : index
    %5 = vector.load %arg2[%c3, %c0_3] : memref<72x32xf32, #tpu.memory_space<vmem>>, vector<1x32xf32>
    %6 = vector.broadcast %5 : vector<1x32xf32> to vector<32x32xf32>
    %7 = arith.addf %4, %6 : vector<32x32xf32>
    %cst_4 = arith.constant 0.000000e+00 : f32
    %8 = vector.broadcast %cst_4 : f32 to vector<32x32xf32>
    %9 = arith.maximumf %7, %8 : vector<32x32xf32>
    %c4 = arith.constant 4 : index
    %c0_5 = arith.constant 0 : index
    %10 = vector.load %arg2[%c4, %c0_5] : memref<72x32xf32, #tpu.memory_space<vmem>>, vector<32x32xf32>
    %11 = arith.truncf %10 : vector<32x32xf32> to vector<32x32xbf16>
    %c36 = arith.constant 36 : index
    %c0_6 = arith.constant 0 : index
    %12 = vector.load %arg2[%c36, %c0_6] : memref<72x32xf32, #tpu.memory_space<vmem>>, vector<1x32xf32>
    %13 = arith.truncf %9 : vector<32x32xf32> to vector<32x32xbf16>
    %cst_7 = arith.constant dense<0.000000e+00> : vector<32x32xf32>
    %14 = tpu.matmul %13, %11, %cst_7 {dimension_numbers = #tpu.dot_dimension_numbers<[1], [0], [0], [1], [0, 0, 1, 1], [], []>} : vector<32x32xbf16>, vector<32x32xbf16>, vector<32x32xf32> -> vector<32x32xf32>
    %15 = vector.broadcast %12 : vector<1x32xf32> to vector<32x32xf32>
    %16 = arith.addf %14, %15 : vector<32x32xf32>
    %cst_8 = arith.constant 0.000000e+00 : f32
    %17 = vector.broadcast %cst_8 : f32 to vector<32x32xf32>
    %18 = arith.maximumf %16, %17 : vector<32x32xf32>
    %c37 = arith.constant 37 : index
    %c0_9 = arith.constant 0 : index
    %19 = vector.load %arg2[%c37, %c0_9] : memref<72x32xf32, #tpu.memory_space<vmem>>, vector<32x32xf32>
    %20 = arith.truncf %19 : vector<32x32xf32> to vector<32x32xbf16>
    %c69 = arith.constant 69 : index
    %c0_10 = arith.constant 0 : index
    %21 = vector.load %arg2[%c69, %c0_10] : memref<72x32xf32, #tpu.memory_space<vmem>>, vector<1x32xf32>
    %22 = arith.truncf %18 : vector<32x32xf32> to vector<32x32xbf16>
    %cst_11 = arith.constant dense<0.000000e+00> : vector<32x32xf32>
    %23 = tpu.matmul %22, %20, %cst_11 {dimension_numbers = #tpu.dot_dimension_numbers<[1], [0], [0], [1], [0, 0, 1, 1], [], []>} : vector<32x32xbf16>, vector<32x32xbf16>, vector<32x32xf32> -> vector<32x32xf32>
    %24 = vector.broadcast %21 : vector<1x32xf32> to vector<32x32xf32>
    %25 = arith.addf %23, %24 : vector<32x32xf32>
    %c70 = arith.constant 70 : index
    %c0_12 = arith.constant 0 : index
    %26 = vector.load %arg2[%c70, %c0_12] : memref<72x32xf32, #tpu.memory_space<vmem>>, vector<1x32xf32>
    %c71 = arith.constant 71 : index
    %c0_13 = arith.constant 0 : index
    %27 = vector.load %arg2[%c71, %c0_13] : memref<72x32xf32, #tpu.memory_space<vmem>>, vector<1x32xf32>
    %cst_14 = arith.constant dense<0.000000e+00> : vector<32xf32>
    %28 = vector.multi_reduction <add>, %25, %cst_14 [1] : vector<32x32xf32> to vector<32xf32>
    %29 = vector.shape_cast %28 : vector<32xf32> to vector<32x1xf32>
    %cst_15 = arith.constant 3.125000e-02 : f32
    %30 = vector.broadcast %cst_15 : f32 to vector<32x1xf32>
    %31 = arith.mulf %29, %30 : vector<32x1xf32>
    %32 = arith.mulf %25, %25 : vector<32x32xf32>
    %cst_16 = arith.constant dense<0.000000e+00> : vector<32xf32>
    %33 = vector.multi_reduction <add>, %32, %cst_16 [1] : vector<32x32xf32> to vector<32xf32>
    %34 = vector.shape_cast %33 : vector<32xf32> to vector<32x1xf32>
    %cst_17 = arith.constant 3.125000e-02 : f32
    %35 = vector.broadcast %cst_17 : f32 to vector<32x1xf32>
    %36 = arith.mulf %34, %35 : vector<32x1xf32>
    %37 = arith.mulf %31, %31 : vector<32x1xf32>
    %38 = arith.subf %36, %37 : vector<32x1xf32>
    %cst_18 = arith.constant 0.000000e+00 : f32
    %39 = vector.broadcast %cst_18 : f32 to vector<32x1xf32>
    %40 = arith.maximumf %38, %39 : vector<32x1xf32>
    %41 = vector.broadcast %31 : vector<32x1xf32> to vector<32x32xf32>
    %42 = arith.subf %25, %41 : vector<32x32xf32>
    %cst_19 = arith.constant 9.99999974E-6 : f32
    %43 = vector.broadcast %cst_19 : f32 to vector<32x1xf32>
    %44 = arith.addf %40, %43 : vector<32x1xf32>
    %45 = math.rsqrt %44 : vector<32x1xf32>
    %46 = vector.broadcast %45 : vector<32x1xf32> to vector<32x32xf32>
    %47 = arith.mulf %42, %46 : vector<32x32xf32>
    %48 = vector.broadcast %26 : vector<1x32xf32> to vector<32x32xf32>
    %49 = arith.mulf %47, %48 : vector<32x32xf32>
    %50 = vector.broadcast %27 : vector<1x32xf32> to vector<32x32xf32>
    %51 = arith.addf %49, %50 : vector<32x32xf32>
    %52 = arith.truncf %51 : vector<32x32xf32> to vector<32x32xbf16>
    %c0_20 = arith.constant 0 : index
    %c0_21 = arith.constant 0 : index
    %53 = vector.load %arg3[%c0_20, %c0_21] : memref<32x32xbf16, #tpu.memory_space<vmem>>, vector<32x32xbf16>
    tpu.vector_store %arg3[%c0_20, %c0_21], %52 {strides = array<i32>} : memref<32x32xbf16, #tpu.memory_space<vmem>>, vector<32x32xbf16>,
    return
  }
  func.func @transform_0(%arg0: i32) -> (i32, i32) {
    %c0_i32 = arith.constant 0 : i32
    %c0_i32_0 = arith.constant 0 : i32
    return %arg0, %c0_i32 : i32, i32
  }
  func.func @transform_1(%arg0: i32) -> (i32, i32) {
    %c0_i32 = arith.constant 0 : i32
    %c0_i32_0 = arith.constant 0 : i32
    %c0_i32_1 = arith.constant 0 : i32
    return %c0_i32, %c0_i32_0 : i32, i32
  }
  func.func @transform_2(%arg0: i32) -> (i32, i32) {
    %c0_i32 = arith.constant 0 : i32
    %c0_i32_0 = arith.constant 0 : i32
    return %arg0, %c0_i32 : i32, i32
  }
}

module attributes {stable_mosaic.version = 11 : i64} {
  func.func @kernel(%arg0: i32, %arg1: memref<32x32xbf16, #tpu.memory_space<vmem>>, %arg2: memref<32x32xbf16, #tpu.memory_space<vmem>>, %arg3: memref<32x32xbf16, #tpu.memory_space<vmem>>, %arg4: memref<165x32xf32, #tpu.memory_space<vmem>>, %arg5: memref<32x32xbf16, #tpu.memory_space<vmem>>, %arg6: memref<32x32xbf16, #tpu.memory_space<vmem>>) attributes {dimension_semantics = [#tpu.dimension_semantics<parallel>], iteration_bounds = array<i64: 2>, scalar_prefetch = 0 : i64, scratch_operands = 0 : i64, tpu.core_type = #tpu.core_type<tc>, window_params = [{transform_indices = @transform_0, window_bounds = array<i64: 32, 32>}, {transform_indices = @transform_1, window_bounds = array<i64: 32, 32>}, {transform_indices = @transform_2, window_bounds = array<i64: 32, 32>}, {pipeline_mode = #tpu.pipeline_mode<synchronous>, transform_indices = @transform_3, window_bounds = array<i64: 165, 32>}, {transform_indices = @transform_4, window_bounds = array<i64: 32, 32>}, {transform_indices = @transform_5, window_bounds = array<i64: 32, 32>}]} {
    %c0 = arith.constant 0 : index
    %c0_0 = arith.constant 0 : index
    %0 = vector.load %arg1[%c0, %c0_0] : memref<32x32xbf16, #tpu.memory_space<vmem>>, vector<32x32xbf16>
    %c0_1 = arith.constant 0 : index
    %c0_2 = arith.constant 0 : index
    %1 = vector.load %arg4[%c0_1, %c0_2] : memref<165x32xf32, #tpu.memory_space<vmem>>, vector<32x32xf32>
    %2 = arith.truncf %1 : vector<32x32xf32> to vector<32x32xbf16>
    %cst = arith.constant dense<0.000000e+00> : vector<32x32xf32>
    %3 = tpu.matmul %0, %2, %cst {dimension_numbers = #tpu.dot_dimension_numbers<[1], [0], [0], [1], [0, 0, 1, 1], [], []>} : vector<32x32xbf16>, vector<32x32xbf16>, vector<32x32xf32> -> vector<32x32xf32>
    %c0_3 = arith.constant 0 : index
    %c0_4 = arith.constant 0 : index
    %4 = vector.load %arg2[%c0_3, %c0_4] : memref<32x32xbf16, #tpu.memory_space<vmem>>, vector<32x32xbf16>
    %c32 = arith.constant 32 : index
    %c0_5 = arith.constant 0 : index
    %5 = vector.load %arg4[%c32, %c0_5] : memref<165x32xf32, #tpu.memory_space<vmem>>, vector<32x32xf32>
    %6 = arith.truncf %5 : vector<32x32xf32> to vector<32x32xbf16>
    %cst_6 = arith.constant dense<0.000000e+00> : vector<32x32xf32>
    %7 = tpu.matmul %4, %6, %cst_6 {dimension_numbers = #tpu.dot_dimension_numbers<[1], [0], [0], [1], [0, 0, 1, 1], [], []>} : vector<32x32xbf16>, vector<32x32xbf16>, vector<32x32xf32> -> vector<32x32xf32>
    %8 = arith.addf %3, %7 : vector<32x32xf32>
    %c0_7 = arith.constant 0 : index
    %c0_8 = arith.constant 0 : index
    %9 = vector.load %arg3[%c0_7, %c0_8] : memref<32x32xbf16, #tpu.memory_space<vmem>>, vector<32x32xbf16>
    %c64 = arith.constant 64 : index
    %c0_9 = arith.constant 0 : index
    %10 = vector.load %arg4[%c64, %c0_9] : memref<165x32xf32, #tpu.memory_space<vmem>>, vector<32x32xf32>
    %11 = arith.truncf %10 : vector<32x32xf32> to vector<32x32xbf16>
    %cst_10 = arith.constant dense<0.000000e+00> : vector<32x32xf32>
    %12 = tpu.matmul %9, %11, %cst_10 {dimension_numbers = #tpu.dot_dimension_numbers<[1], [0], [0], [1], [0, 0, 1, 1], [], []>} : vector<32x32xbf16>, vector<32x32xbf16>, vector<32x32xf32> -> vector<32x32xf32>
    %13 = arith.addf %8, %12 : vector<32x32xf32>
    %c96 = arith.constant 96 : index
    %c0_11 = arith.constant 0 : index
    %14 = vector.load %arg4[%c96, %c0_11] : memref<165x32xf32, #tpu.memory_space<vmem>>, vector<1x32xf32>
    %15 = vector.broadcast %14 : vector<1x32xf32> to vector<32x32xf32>
    %16 = arith.addf %13, %15 : vector<32x32xf32>
    %cst_12 = arith.constant 0.000000e+00 : f32
    %17 = vector.broadcast %cst_12 : f32 to vector<32x32xf32>
    %18 = arith.maximumf %16, %17 : vector<32x32xf32>
    %c97 = arith.constant 97 : index
    %c0_13 = arith.constant 0 : index
    %19 = vector.load %arg4[%c97, %c0_13] : memref<165x32xf32, #tpu.memory_space<vmem>>, vector<32x32xf32>
    %20 = arith.truncf %19 : vector<32x32xf32> to vector<32x32xbf16>
    %c129 = arith.constant 129 : index
    %c0_14 = arith.constant 0 : index
    %21 = vector.load %arg4[%c129, %c0_14] : memref<165x32xf32, #tpu.memory_space<vmem>>, vector<1x32xf32>
    %22 = arith.truncf %18 : vector<32x32xf32> to vector<32x32xbf16>
    %cst_15 = arith.constant dense<0.000000e+00> : vector<32x32xf32>
    %23 = tpu.matmul %22, %20, %cst_15 {dimension_numbers = #tpu.dot_dimension_numbers<[1], [0], [0], [1], [0, 0, 1, 1], [], []>} : vector<32x32xbf16>, vector<32x32xbf16>, vector<32x32xf32> -> vector<32x32xf32>
    %24 = vector.broadcast %21 : vector<1x32xf32> to vector<32x32xf32>
    %25 = arith.addf %23, %24 : vector<32x32xf32>
    %cst_16 = arith.constant 0.000000e+00 : f32
    %26 = vector.broadcast %cst_16 : f32 to vector<32x32xf32>
    %27 = arith.maximumf %25, %26 : vector<32x32xf32>
    %c130 = arith.constant 130 : index
    %c0_17 = arith.constant 0 : index
    %28 = vector.load %arg4[%c130, %c0_17] : memref<165x32xf32, #tpu.memory_space<vmem>>, vector<32x32xf32>
    %29 = arith.truncf %28 : vector<32x32xf32> to vector<32x32xbf16>
    %c162 = arith.constant 162 : index
    %c0_18 = arith.constant 0 : index
    %30 = vector.load %arg4[%c162, %c0_18] : memref<165x32xf32, #tpu.memory_space<vmem>>, vector<1x32xf32>
    %31 = arith.truncf %27 : vector<32x32xf32> to vector<32x32xbf16>
    %cst_19 = arith.constant dense<0.000000e+00> : vector<32x32xf32>
    %32 = tpu.matmul %31, %29, %cst_19 {dimension_numbers = #tpu.dot_dimension_numbers<[1], [0], [0], [1], [0, 0, 1, 1], [], []>} : vector<32x32xbf16>, vector<32x32xbf16>, vector<32x32xf32> -> vector<32x32xf32>
    %33 = vector.broadcast %30 : vector<1x32xf32> to vector<32x32xf32>
    %34 = arith.addf %32, %33 : vector<32x32xf32>
    %c163 = arith.constant 163 : index
    %c0_20 = arith.constant 0 : index
    %35 = vector.load %arg4[%c163, %c0_20] : memref<165x32xf32, #tpu.memory_space<vmem>>, vector<1x32xf32>
    %c164 = arith.constant 164 : index
    %c0_21 = arith.constant 0 : index
    %36 = vector.load %arg4[%c164, %c0_21] : memref<165x32xf32, #tpu.memory_space<vmem>>, vector<1x32xf32>
    %cst_22 = arith.constant dense<0.000000e+00> : vector<32xf32>
    %37 = vector.multi_reduction <add>, %34, %cst_22 [1] : vector<32x32xf32> to vector<32xf32>
    %38 = vector.shape_cast %37 : vector<32xf32> to vector<32x1xf32>
    %cst_23 = arith.constant 3.125000e-02 : f32
    %39 = vector.broadcast %cst_23 : f32 to vector<32x1xf32>
    %40 = arith.mulf %38, %39 : vector<32x1xf32>
    %41 = arith.mulf %34, %34 : vector<32x32xf32>
    %cst_24 = arith.constant dense<0.000000e+00> : vector<32xf32>
    %42 = vector.multi_reduction <add>, %41, %cst_24 [1] : vector<32x32xf32> to vector<32xf32>
    %43 = vector.shape_cast %42 : vector<32xf32> to vector<32x1xf32>
    %cst_25 = arith.constant 3.125000e-02 : f32
    %44 = vector.broadcast %cst_25 : f32 to vector<32x1xf32>
    %45 = arith.mulf %43, %44 : vector<32x1xf32>
    %46 = arith.mulf %40, %40 : vector<32x1xf32>
    %47 = arith.subf %45, %46 : vector<32x1xf32>
    %cst_26 = arith.constant 0.000000e+00 : f32
    %48 = vector.broadcast %cst_26 : f32 to vector<32x1xf32>
    %49 = arith.maximumf %47, %48 : vector<32x1xf32>
    %50 = vector.broadcast %40 : vector<32x1xf32> to vector<32x32xf32>
    %51 = arith.subf %34, %50 : vector<32x32xf32>
    %cst_27 = arith.constant 9.99999974E-6 : f32
    %52 = vector.broadcast %cst_27 : f32 to vector<32x1xf32>
    %53 = arith.addf %49, %52 : vector<32x1xf32>
    %54 = math.rsqrt %53 : vector<32x1xf32>
    %55 = vector.broadcast %54 : vector<32x1xf32> to vector<32x32xf32>
    %56 = arith.mulf %51, %55 : vector<32x32xf32>
    %57 = vector.broadcast %35 : vector<1x32xf32> to vector<32x32xf32>
    %58 = arith.mulf %56, %57 : vector<32x32xf32>
    %59 = vector.broadcast %36 : vector<1x32xf32> to vector<32x32xf32>
    %60 = arith.addf %58, %59 : vector<32x32xf32>
    %c0_28 = arith.constant 0 : index
    %c0_29 = arith.constant 0 : index
    %61 = vector.load %arg3[%c0_28, %c0_29] : memref<32x32xbf16, #tpu.memory_space<vmem>>, vector<32x32xbf16>
    %62 = arith.extf %61 : vector<32x32xbf16> to vector<32x32xf32>
    %63 = arith.truncf %60 : vector<32x32xf32> to vector<32x32xbf16>
    %c0_30 = arith.constant 0 : index
    %c0_31 = arith.constant 0 : index
    %64 = vector.load %arg5[%c0_30, %c0_31] : memref<32x32xbf16, #tpu.memory_space<vmem>>, vector<32x32xbf16>
    tpu.vector_store %arg5[%c0_30, %c0_31], %63 {strides = array<i32>} : memref<32x32xbf16, #tpu.memory_space<vmem>>, vector<32x32xbf16>,
    %65 = arith.addf %60, %62 : vector<32x32xf32>
    %66 = arith.truncf %65 : vector<32x32xf32> to vector<32x32xbf16>
    %c0_32 = arith.constant 0 : index
    %c0_33 = arith.constant 0 : index
    %67 = vector.load %arg6[%c0_32, %c0_33] : memref<32x32xbf16, #tpu.memory_space<vmem>>, vector<32x32xbf16>
    tpu.vector_store %arg6[%c0_32, %c0_33], %66 {strides = array<i32>} : memref<32x32xbf16, #tpu.memory_space<vmem>>, vector<32x32xbf16>,
    return
  }
  func.func @transform_0(%arg0: i32) -> (i32, i32) {
    %c0_i32 = arith.constant 0 : i32
    %c0_i32_0 = arith.constant 0 : i32
    return %arg0, %c0_i32 : i32, i32
  }
  func.func @transform_1(%arg0: i32) -> (i32, i32) {
    %c0_i32 = arith.constant 0 : i32
    %c0_i32_0 = arith.constant 0 : i32
    return %arg0, %c0_i32 : i32, i32
  }
  func.func @transform_2(%arg0: i32) -> (i32, i32) {
    %c0_i32 = arith.constant 0 : i32
    %c0_i32_0 = arith.constant 0 : i32
    return %arg0, %c0_i32 : i32, i32
  }
  func.func @transform_3(%arg0: i32) -> (i32, i32) {
    %c0_i32 = arith.constant 0 : i32
    %c0_i32_0 = arith.constant 0 : i32
    %c0_i32_1 = arith.constant 0 : i32
    return %c0_i32, %c0_i32_0 : i32, i32
  }
  func.func @transform_4(%arg0: i32) -> (i32, i32) {
    %c0_i32 = arith.constant 0 : i32
    %c0_i32_0 = arith.constant 0 : i32
    return %arg0, %c0_i32 : i32, i32
  }
  func.func @transform_5(%arg0: i32) -> (i32, i32) {
    %c0_i32 = arith.constant 0 : i32
    %c0_i32_0 = arith.constant 0 : i32
    return %arg0, %c0_i32 : i32, i32
  }
}

module attributes {stable_mosaic.version = 11 : i64} {
  func.func @kernel(%arg0: i32, %arg1: memref<16x32xbf16, #tpu.memory_space<vmem>>, %arg2: memref<16x32xf32, #tpu.memory_space<vmem>>, %arg3: memref<133x32xf32, #tpu.memory_space<vmem>>, %arg4: memref<16x32xbf16, #tpu.memory_space<vmem>>) attributes {dimension_semantics = [#tpu.dimension_semantics<parallel>], iteration_bounds = array<i64: 2>, scalar_prefetch = 0 : i64, scratch_operands = 0 : i64, tpu.core_type = #tpu.core_type<tc>, window_params = [{transform_indices = @transform_0, window_bounds = array<i64: 16, 32>}, {transform_indices = @transform_1, window_bounds = array<i64: 16, 32>}, {pipeline_mode = #tpu.pipeline_mode<synchronous>, transform_indices = @transform_2, window_bounds = array<i64: 133, 32>}, {transform_indices = @transform_3, window_bounds = array<i64: 16, 32>}]} {
    %c0 = arith.constant 0 : index
    %c0_0 = arith.constant 0 : index
    %0 = vector.load %arg1[%c0, %c0_0] : memref<16x32xbf16, #tpu.memory_space<vmem>>, vector<16x32xbf16>
    %c0_1 = arith.constant 0 : index
    %c0_2 = arith.constant 0 : index
    %1 = vector.load %arg3[%c0_1, %c0_2] : memref<133x32xf32, #tpu.memory_space<vmem>>, vector<32x32xf32>
    %2 = arith.truncf %1 : vector<32x32xf32> to vector<32x32xbf16>
    %cst = arith.constant dense<0.000000e+00> : vector<16x32xf32>
    %3 = tpu.matmul %0, %2, %cst {dimension_numbers = #tpu.dot_dimension_numbers<[1], [0], [0], [1], [0, 0, 1, 1], [], []>} : vector<16x32xbf16>, vector<32x32xbf16>, vector<16x32xf32> -> vector<16x32xf32>
    %c0_3 = arith.constant 0 : index
    %c0_4 = arith.constant 0 : index
    %4 = vector.load %arg2[%c0_3, %c0_4] : memref<16x32xf32, #tpu.memory_space<vmem>>, vector<16x32xf32>
    %5 = arith.truncf %4 : vector<16x32xf32> to vector<16x32xbf16>
    %c32 = arith.constant 32 : index
    %c0_5 = arith.constant 0 : index
    %6 = vector.load %arg3[%c32, %c0_5] : memref<133x32xf32, #tpu.memory_space<vmem>>, vector<32x32xf32>
    %7 = arith.truncf %6 : vector<32x32xf32> to vector<32x32xbf16>
    %cst_6 = arith.constant dense<0.000000e+00> : vector<16x32xf32>
    %8 = tpu.matmul %5, %7, %cst_6 {dimension_numbers = #tpu.dot_dimension_numbers<[1], [0], [0], [1], [0, 0, 1, 1], [], []>} : vector<16x32xbf16>, vector<32x32xbf16>, vector<16x32xf32> -> vector<16x32xf32>
    %9 = arith.addf %3, %8 : vector<16x32xf32>
    %c64 = arith.constant 64 : index
    %c0_7 = arith.constant 0 : index
    %10 = vector.load %arg3[%c64, %c0_7] : memref<133x32xf32, #tpu.memory_space<vmem>>, vector<1x32xf32>
    %11 = vector.broadcast %10 : vector<1x32xf32> to vector<16x32xf32>
    %12 = arith.addf %9, %11 : vector<16x32xf32>
    %cst_8 = arith.constant 0.000000e+00 : f32
    %13 = vector.broadcast %cst_8 : f32 to vector<16x32xf32>
    %14 = arith.maximumf %12, %13 : vector<16x32xf32>
    %c65 = arith.constant 65 : index
    %c0_9 = arith.constant 0 : index
    %15 = vector.load %arg3[%c65, %c0_9] : memref<133x32xf32, #tpu.memory_space<vmem>>, vector<32x32xf32>
    %16 = arith.truncf %15 : vector<32x32xf32> to vector<32x32xbf16>
    %c97 = arith.constant 97 : index
    %c0_10 = arith.constant 0 : index
    %17 = vector.load %arg3[%c97, %c0_10] : memref<133x32xf32, #tpu.memory_space<vmem>>, vector<1x32xf32>
    %18 = arith.truncf %14 : vector<16x32xf32> to vector<16x32xbf16>
    %cst_11 = arith.constant dense<0.000000e+00> : vector<16x32xf32>
    %19 = tpu.matmul %18, %16, %cst_11 {dimension_numbers = #tpu.dot_dimension_numbers<[1], [0], [0], [1], [0, 0, 1, 1], [], []>} : vector<16x32xbf16>, vector<32x32xbf16>, vector<16x32xf32> -> vector<16x32xf32>
    %20 = vector.broadcast %17 : vector<1x32xf32> to vector<16x32xf32>
    %21 = arith.addf %19, %20 : vector<16x32xf32>
    %cst_12 = arith.constant 0.000000e+00 : f32
    %22 = vector.broadcast %cst_12 : f32 to vector<16x32xf32>
    %23 = arith.maximumf %21, %22 : vector<16x32xf32>
    %c98 = arith.constant 98 : index
    %c0_13 = arith.constant 0 : index
    %24 = vector.load %arg3[%c98, %c0_13] : memref<133x32xf32, #tpu.memory_space<vmem>>, vector<32x32xf32>
    %25 = arith.truncf %24 : vector<32x32xf32> to vector<32x32xbf16>
    %c130 = arith.constant 130 : index
    %c0_14 = arith.constant 0 : index
    %26 = vector.load %arg3[%c130, %c0_14] : memref<133x32xf32, #tpu.memory_space<vmem>>, vector<1x32xf32>
    %27 = arith.truncf %23 : vector<16x32xf32> to vector<16x32xbf16>
    %cst_15 = arith.constant dense<0.000000e+00> : vector<16x32xf32>
    %28 = tpu.matmul %27, %25, %cst_15 {dimension_numbers = #tpu.dot_dimension_numbers<[1], [0], [0], [1], [0, 0, 1, 1], [], []>} : vector<16x32xbf16>, vector<32x32xbf16>, vector<16x32xf32> -> vector<16x32xf32>
    %29 = vector.broadcast %26 : vector<1x32xf32> to vector<16x32xf32>
    %30 = arith.addf %28, %29 : vector<16x32xf32>
    %c131 = arith.constant 131 : index
    %c0_16 = arith.constant 0 : index
    %31 = vector.load %arg3[%c131, %c0_16] : memref<133x32xf32, #tpu.memory_space<vmem>>, vector<1x32xf32>
    %c132 = arith.constant 132 : index
    %c0_17 = arith.constant 0 : index
    %32 = vector.load %arg3[%c132, %c0_17] : memref<133x32xf32, #tpu.memory_space<vmem>>, vector<1x32xf32>
    %cst_18 = arith.constant dense<0.000000e+00> : vector<16xf32>
    %33 = vector.multi_reduction <add>, %30, %cst_18 [1] : vector<16x32xf32> to vector<16xf32>
    %34 = vector.shape_cast %33 : vector<16xf32> to vector<16x1xf32>
    %cst_19 = arith.constant 3.125000e-02 : f32
    %35 = vector.broadcast %cst_19 : f32 to vector<16x1xf32>
    %36 = arith.mulf %34, %35 : vector<16x1xf32>
    %37 = arith.mulf %30, %30 : vector<16x32xf32>
    %cst_20 = arith.constant dense<0.000000e+00> : vector<16xf32>
    %38 = vector.multi_reduction <add>, %37, %cst_20 [1] : vector<16x32xf32> to vector<16xf32>
    %39 = vector.shape_cast %38 : vector<16xf32> to vector<16x1xf32>
    %cst_21 = arith.constant 3.125000e-02 : f32
    %40 = vector.broadcast %cst_21 : f32 to vector<16x1xf32>
    %41 = arith.mulf %39, %40 : vector<16x1xf32>
    %42 = arith.mulf %36, %36 : vector<16x1xf32>
    %43 = arith.subf %41, %42 : vector<16x1xf32>
    %cst_22 = arith.constant 0.000000e+00 : f32
    %44 = vector.broadcast %cst_22 : f32 to vector<16x1xf32>
    %45 = arith.maximumf %43, %44 : vector<16x1xf32>
    %46 = vector.broadcast %36 : vector<16x1xf32> to vector<16x32xf32>
    %47 = arith.subf %30, %46 : vector<16x32xf32>
    %cst_23 = arith.constant 9.99999974E-6 : f32
    %48 = vector.broadcast %cst_23 : f32 to vector<16x1xf32>
    %49 = arith.addf %45, %48 : vector<16x1xf32>
    %50 = math.rsqrt %49 : vector<16x1xf32>
    %51 = vector.broadcast %50 : vector<16x1xf32> to vector<16x32xf32>
    %52 = arith.mulf %47, %51 : vector<16x32xf32>
    %53 = vector.broadcast %31 : vector<1x32xf32> to vector<16x32xf32>
    %54 = arith.mulf %52, %53 : vector<16x32xf32>
    %55 = vector.broadcast %32 : vector<1x32xf32> to vector<16x32xf32>
    %56 = arith.addf %54, %55 : vector<16x32xf32>
    %c0_24 = arith.constant 0 : index
    %c0_25 = arith.constant 0 : index
    %57 = vector.load %arg1[%c0_24, %c0_25] : memref<16x32xbf16, #tpu.memory_space<vmem>>, vector<16x32xbf16>
    %58 = arith.extf %57 : vector<16x32xbf16> to vector<16x32xf32>
    %59 = arith.addf %56, %58 : vector<16x32xf32>
    %60 = arith.truncf %59 : vector<16x32xf32> to vector<16x32xbf16>
    %c0_26 = arith.constant 0 : index
    %c0_27 = arith.constant 0 : index
    %61 = vector.load %arg4[%c0_26, %c0_27] : memref<16x32xbf16, #tpu.memory_space<vmem>>, vector<16x32xbf16>
    tpu.vector_store %arg4[%c0_26, %c0_27], %60 {strides = array<i32>} : memref<16x32xbf16, #tpu.memory_space<vmem>>, vector<16x32xbf16>,
    return
  }
  func.func @transform_0(%arg0: i32) -> (i32, i32) {
    %c0_i32 = arith.constant 0 : i32
    %c0_i32_0 = arith.constant 0 : i32
    return %arg0, %c0_i32 : i32, i32
  }
  func.func @transform_1(%arg0: i32) -> (i32, i32) {
    %c0_i32 = arith.constant 0 : i32
    %c0_i32_0 = arith.constant 0 : i32
    return %arg0, %c0_i32 : i32, i32
  }
  func.func @transform_2(%arg0: i32) -> (i32, i32) {
    %c0_i32 = arith.constant 0 : i32
    %c0_i32_0 = arith.constant 0 : i32
    %c0_i32_1 = arith.constant 0 : i32
    return %c0_i32, %c0_i32_0 : i32, i32
  }
  func.func @transform_3(%arg0: i32) -> (i32, i32) {
    %c0_i32 = arith.constant 0 : i32
    %c0_i32_0 = arith.constant 0 : i32
    return %arg0, %c0_i32 : i32, i32
  }
}

module attributes {stable_mosaic.version = 11 : i64} {
  func.func @kernel(%arg0: i32, %arg1: memref<32x32xbf16, #tpu.memory_space<vmem>>, %arg2: memref<32x32xbf16, #tpu.memory_space<vmem>>, %arg3: memref<32x32xbf16, #tpu.memory_space<vmem>>, %arg4: memref<165x32xf32, #tpu.memory_space<vmem>>, %arg5: memref<32x32xbf16, #tpu.memory_space<vmem>>) attributes {dimension_semantics = [#tpu.dimension_semantics<parallel>], iteration_bounds = array<i64: 2>, scalar_prefetch = 0 : i64, scratch_operands = 0 : i64, tpu.core_type = #tpu.core_type<tc>, window_params = [{transform_indices = @transform_0, window_bounds = array<i64: 32, 32>}, {transform_indices = @transform_1, window_bounds = array<i64: 32, 32>}, {transform_indices = @transform_2, window_bounds = array<i64: 32, 32>}, {pipeline_mode = #tpu.pipeline_mode<synchronous>, transform_indices = @transform_3, window_bounds = array<i64: 165, 32>}, {transform_indices = @transform_4, window_bounds = array<i64: 32, 32>}]} {
    %c0 = arith.constant 0 : index
    %c0_0 = arith.constant 0 : index
    %0 = vector.load %arg1[%c0, %c0_0] : memref<32x32xbf16, #tpu.memory_space<vmem>>, vector<32x32xbf16>
    %c0_1 = arith.constant 0 : index
    %c0_2 = arith.constant 0 : index
    %1 = vector.load %arg4[%c0_1, %c0_2] : memref<165x32xf32, #tpu.memory_space<vmem>>, vector<32x32xf32>
    %2 = arith.truncf %1 : vector<32x32xf32> to vector<32x32xbf16>
    %cst = arith.constant dense<0.000000e+00> : vector<32x32xf32>
    %3 = tpu.matmul %0, %2, %cst {dimension_numbers = #tpu.dot_dimension_numbers<[1], [0], [0], [1], [0, 0, 1, 1], [], []>} : vector<32x32xbf16>, vector<32x32xbf16>, vector<32x32xf32> -> vector<32x32xf32>
    %c0_3 = arith.constant 0 : index
    %c0_4 = arith.constant 0 : index
    %4 = vector.load %arg2[%c0_3, %c0_4] : memref<32x32xbf16, #tpu.memory_space<vmem>>, vector<32x32xbf16>
    %c32 = arith.constant 32 : index
    %c0_5 = arith.constant 0 : index
    %5 = vector.load %arg4[%c32, %c0_5] : memref<165x32xf32, #tpu.memory_space<vmem>>, vector<32x32xf32>
    %6 = arith.truncf %5 : vector<32x32xf32> to vector<32x32xbf16>
    %cst_6 = arith.constant dense<0.000000e+00> : vector<32x32xf32>
    %7 = tpu.matmul %4, %6, %cst_6 {dimension_numbers = #tpu.dot_dimension_numbers<[1], [0], [0], [1], [0, 0, 1, 1], [], []>} : vector<32x32xbf16>, vector<32x32xbf16>, vector<32x32xf32> -> vector<32x32xf32>
    %8 = arith.addf %3, %7 : vector<32x32xf32>
    %c0_7 = arith.constant 0 : index
    %c0_8 = arith.constant 0 : index
    %9 = vector.load %arg3[%c0_7, %c0_8] : memref<32x32xbf16, #tpu.memory_space<vmem>>, vector<32x32xbf16>
    %c64 = arith.constant 64 : index
    %c0_9 = arith.constant 0 : index
    %10 = vector.load %arg4[%c64, %c0_9] : memref<165x32xf32, #tpu.memory_space<vmem>>, vector<32x32xf32>
    %11 = arith.truncf %10 : vector<32x32xf32> to vector<32x32xbf16>
    %cst_10 = arith.constant dense<0.000000e+00> : vector<32x32xf32>
    %12 = tpu.matmul %9, %11, %cst_10 {dimension_numbers = #tpu.dot_dimension_numbers<[1], [0], [0], [1], [0, 0, 1, 1], [], []>} : vector<32x32xbf16>, vector<32x32xbf16>, vector<32x32xf32> -> vector<32x32xf32>
    %13 = arith.addf %8, %12 : vector<32x32xf32>
    %c96 = arith.constant 96 : index
    %c0_11 = arith.constant 0 : index
    %14 = vector.load %arg4[%c96, %c0_11] : memref<165x32xf32, #tpu.memory_space<vmem>>, vector<1x32xf32>
    %15 = vector.broadcast %14 : vector<1x32xf32> to vector<32x32xf32>
    %16 = arith.addf %13, %15 : vector<32x32xf32>
    %cst_12 = arith.constant 0.000000e+00 : f32
    %17 = vector.broadcast %cst_12 : f32 to vector<32x32xf32>
    %18 = arith.maximumf %16, %17 : vector<32x32xf32>
    %c97 = arith.constant 97 : index
    %c0_13 = arith.constant 0 : index
    %19 = vector.load %arg4[%c97, %c0_13] : memref<165x32xf32, #tpu.memory_space<vmem>>, vector<32x32xf32>
    %20 = arith.truncf %19 : vector<32x32xf32> to vector<32x32xbf16>
    %c129 = arith.constant 129 : index
    %c0_14 = arith.constant 0 : index
    %21 = vector.load %arg4[%c129, %c0_14] : memref<165x32xf32, #tpu.memory_space<vmem>>, vector<1x32xf32>
    %22 = arith.truncf %18 : vector<32x32xf32> to vector<32x32xbf16>
    %cst_15 = arith.constant dense<0.000000e+00> : vector<32x32xf32>
    %23 = tpu.matmul %22, %20, %cst_15 {dimension_numbers = #tpu.dot_dimension_numbers<[1], [0], [0], [1], [0, 0, 1, 1], [], []>} : vector<32x32xbf16>, vector<32x32xbf16>, vector<32x32xf32> -> vector<32x32xf32>
    %24 = vector.broadcast %21 : vector<1x32xf32> to vector<32x32xf32>
    %25 = arith.addf %23, %24 : vector<32x32xf32>
    %cst_16 = arith.constant 0.000000e+00 : f32
    %26 = vector.broadcast %cst_16 : f32 to vector<32x32xf32>
    %27 = arith.maximumf %25, %26 : vector<32x32xf32>
    %c130 = arith.constant 130 : index
    %c0_17 = arith.constant 0 : index
    %28 = vector.load %arg4[%c130, %c0_17] : memref<165x32xf32, #tpu.memory_space<vmem>>, vector<32x32xf32>
    %29 = arith.truncf %28 : vector<32x32xf32> to vector<32x32xbf16>
    %c162 = arith.constant 162 : index
    %c0_18 = arith.constant 0 : index
    %30 = vector.load %arg4[%c162, %c0_18] : memref<165x32xf32, #tpu.memory_space<vmem>>, vector<1x32xf32>
    %31 = arith.truncf %27 : vector<32x32xf32> to vector<32x32xbf16>
    %cst_19 = arith.constant dense<0.000000e+00> : vector<32x32xf32>
    %32 = tpu.matmul %31, %29, %cst_19 {dimension_numbers = #tpu.dot_dimension_numbers<[1], [0], [0], [1], [0, 0, 1, 1], [], []>} : vector<32x32xbf16>, vector<32x32xbf16>, vector<32x32xf32> -> vector<32x32xf32>
    %33 = vector.broadcast %30 : vector<1x32xf32> to vector<32x32xf32>
    %34 = arith.addf %32, %33 : vector<32x32xf32>
    %c163 = arith.constant 163 : index
    %c0_20 = arith.constant 0 : index
    %35 = vector.load %arg4[%c163, %c0_20] : memref<165x32xf32, #tpu.memory_space<vmem>>, vector<1x32xf32>
    %c164 = arith.constant 164 : index
    %c0_21 = arith.constant 0 : index
    %36 = vector.load %arg4[%c164, %c0_21] : memref<165x32xf32, #tpu.memory_space<vmem>>, vector<1x32xf32>
    %cst_22 = arith.constant dense<0.000000e+00> : vector<32xf32>
    %37 = vector.multi_reduction <add>, %34, %cst_22 [1] : vector<32x32xf32> to vector<32xf32>
    %38 = vector.shape_cast %37 : vector<32xf32> to vector<32x1xf32>
    %cst_23 = arith.constant 3.125000e-02 : f32
    %39 = vector.broadcast %cst_23 : f32 to vector<32x1xf32>
    %40 = arith.mulf %38, %39 : vector<32x1xf32>
    %41 = arith.mulf %34, %34 : vector<32x32xf32>
    %cst_24 = arith.constant dense<0.000000e+00> : vector<32xf32>
    %42 = vector.multi_reduction <add>, %41, %cst_24 [1] : vector<32x32xf32> to vector<32xf32>
    %43 = vector.shape_cast %42 : vector<32xf32> to vector<32x1xf32>
    %cst_25 = arith.constant 3.125000e-02 : f32
    %44 = vector.broadcast %cst_25 : f32 to vector<32x1xf32>
    %45 = arith.mulf %43, %44 : vector<32x1xf32>
    %46 = arith.mulf %40, %40 : vector<32x1xf32>
    %47 = arith.subf %45, %46 : vector<32x1xf32>
    %cst_26 = arith.constant 0.000000e+00 : f32
    %48 = vector.broadcast %cst_26 : f32 to vector<32x1xf32>
    %49 = arith.maximumf %47, %48 : vector<32x1xf32>
    %50 = vector.broadcast %40 : vector<32x1xf32> to vector<32x32xf32>
    %51 = arith.subf %34, %50 : vector<32x32xf32>
    %cst_27 = arith.constant 9.99999974E-6 : f32
    %52 = vector.broadcast %cst_27 : f32 to vector<32x1xf32>
    %53 = arith.addf %49, %52 : vector<32x1xf32>
    %54 = math.rsqrt %53 : vector<32x1xf32>
    %55 = vector.broadcast %54 : vector<32x1xf32> to vector<32x32xf32>
    %56 = arith.mulf %51, %55 : vector<32x32xf32>
    %57 = vector.broadcast %35 : vector<1x32xf32> to vector<32x32xf32>
    %58 = arith.mulf %56, %57 : vector<32x32xf32>
    %59 = vector.broadcast %36 : vector<1x32xf32> to vector<32x32xf32>
    %60 = arith.addf %58, %59 : vector<32x32xf32>
    %61 = arith.truncf %60 : vector<32x32xf32> to vector<32x32xbf16>
    %c0_28 = arith.constant 0 : index
    %c0_29 = arith.constant 0 : index
    %62 = vector.load %arg5[%c0_28, %c0_29] : memref<32x32xbf16, #tpu.memory_space<vmem>>, vector<32x32xbf16>
    tpu.vector_store %arg5[%c0_28, %c0_29], %61 {strides = array<i32>} : memref<32x32xbf16, #tpu.memory_space<vmem>>, vector<32x32xbf16>,
    return
  }
  func.func @transform_0(%arg0: i32) -> (i32, i32) {
    %c0_i32 = arith.constant 0 : i32
    %c0_i32_0 = arith.constant 0 : i32
    return %arg0, %c0_i32 : i32, i32
  }
  func.func @transform_1(%arg0: i32) -> (i32, i32) {
    %c0_i32 = arith.constant 0 : i32
    %c0_i32_0 = arith.constant 0 : i32
    return %arg0, %c0_i32 : i32, i32
  }
  func.func @transform_2(%arg0: i32) -> (i32, i32) {
    %c0_i32 = arith.constant 0 : i32
    %c0_i32_0 = arith.constant 0 : i32
    return %arg0, %c0_i32 : i32, i32
  }
  func.func @transform_3(%arg0: i32) -> (i32, i32) {
    %c0_i32 = arith.constant 0 : i32
    %c0_i32_0 = arith.constant 0 : i32
    %c0_i32_1 = arith.constant 0 : i32
    return %c0_i32, %c0_i32_0 : i32, i32
  }
  func.func @transform_4(%arg0: i32) -> (i32, i32) {
    %c0_i32 = arith.constant 0 : i32
    %c0_i32_0 = arith.constant 0 : i32
    return %arg0, %c0_i32 : i32, i32
  }
}

module attributes {stable_mosaic.version = 11 : i64} {
  func.func @kernel(%arg0: i32, %arg1: memref<16x32xbf16, #tpu.memory_space<vmem>>, %arg2: memref<66x32xf32, #tpu.memory_space<vmem>>, %arg3: memref<33x128xf32, #tpu.memory_space<vmem>>, %arg4: memref<16x128xf32, #tpu.memory_space<vmem>>) attributes {dimension_semantics = [#tpu.dimension_semantics<parallel>], iteration_bounds = array<i64: 2>, scalar_prefetch = 0 : i64, scratch_operands = 0 : i64, tpu.core_type = #tpu.core_type<tc>, window_params = [{transform_indices = @transform_0, window_bounds = array<i64: 16, 32>}, {pipeline_mode = #tpu.pipeline_mode<synchronous>, transform_indices = @transform_1, window_bounds = array<i64: 66, 32>}, {pipeline_mode = #tpu.pipeline_mode<synchronous>, transform_indices = @transform_2, window_bounds = array<i64: 33, 128>}, {transform_indices = @transform_3, window_bounds = array<i64: 16, 128>}]} {
    %c0 = arith.constant 0 : index
    %c0_0 = arith.constant 0 : index
    %0 = vector.load %arg1[%c0, %c0_0] : memref<16x32xbf16, #tpu.memory_space<vmem>>, vector<16x32xbf16>
    %c0_1 = arith.constant 0 : index
    %c0_2 = arith.constant 0 : index
    %1 = vector.load %arg2[%c0_1, %c0_2] : memref<66x32xf32, #tpu.memory_space<vmem>>, vector<32x32xf32>
    %2 = arith.truncf %1 : vector<32x32xf32> to vector<32x32xbf16>
    %cst = arith.constant dense<0.000000e+00> : vector<16x32xf32>
    %3 = tpu.matmul %0, %2, %cst {dimension_numbers = #tpu.dot_dimension_numbers<[1], [0], [0], [1], [0, 0, 1, 1], [], []>} : vector<16x32xbf16>, vector<32x32xbf16>, vector<16x32xf32> -> vector<16x32xf32>
    %c32 = arith.constant 32 : index
    %c0_3 = arith.constant 0 : index
    %4 = vector.load %arg2[%c32, %c0_3] : memref<66x32xf32, #tpu.memory_space<vmem>>, vector<1x32xf32>
    %5 = vector.broadcast %4 : vector<1x32xf32> to vector<16x32xf32>
    %6 = arith.addf %3, %5 : vector<16x32xf32>
    %cst_4 = arith.constant 0.000000e+00 : f32
    %7 = vector.broadcast %cst_4 : f32 to vector<16x32xf32>
    %8 = arith.maximumf %6, %7 : vector<16x32xf32>
    %c33 = arith.constant 33 : index
    %c0_5 = arith.constant 0 : index
    %9 = vector.load %arg2[%c33, %c0_5] : memref<66x32xf32, #tpu.memory_space<vmem>>, vector<32x32xf32>
    %10 = arith.truncf %9 : vector<32x32xf32> to vector<32x32xbf16>
    %c65 = arith.constant 65 : index
    %c0_6 = arith.constant 0 : index
    %11 = vector.load %arg2[%c65, %c0_6] : memref<66x32xf32, #tpu.memory_space<vmem>>, vector<1x32xf32>
    %12 = arith.truncf %8 : vector<16x32xf32> to vector<16x32xbf16>
    %cst_7 = arith.constant dense<0.000000e+00> : vector<16x32xf32>
    %13 = tpu.matmul %12, %10, %cst_7 {dimension_numbers = #tpu.dot_dimension_numbers<[1], [0], [0], [1], [0, 0, 1, 1], [], []>} : vector<16x32xbf16>, vector<32x32xbf16>, vector<16x32xf32> -> vector<16x32xf32>
    %14 = vector.broadcast %11 : vector<1x32xf32> to vector<16x32xf32>
    %15 = arith.addf %13, %14 : vector<16x32xf32>
    %cst_8 = arith.constant 0.000000e+00 : f32
    %16 = vector.broadcast %cst_8 : f32 to vector<16x32xf32>
    %17 = arith.maximumf %15, %16 : vector<16x32xf32>
    %c0_9 = arith.constant 0 : index
    %c0_10 = arith.constant 0 : index
    %18 = vector.load %arg3[%c0_9, %c0_10] : memref<33x128xf32, #tpu.memory_space<vmem>>, vector<32x128xf32>
    %19 = arith.truncf %18 : vector<32x128xf32> to vector<32x128xbf16>
    %c32_11 = arith.constant 32 : index
    %c0_12 = arith.constant 0 : index
    %20 = vector.load %arg3[%c32_11, %c0_12] : memref<33x128xf32, #tpu.memory_space<vmem>>, vector<1x128xf32>
    %21 = arith.truncf %17 : vector<16x32xf32> to vector<16x32xbf16>
    %cst_13 = arith.constant dense<0.000000e+00> : vector<16x128xf32>
    %22 = tpu.matmul %21, %19, %cst_13 {dimension_numbers = #tpu.dot_dimension_numbers<[1], [0], [0], [1], [0, 0, 1, 1], [], []>} : vector<16x32xbf16>, vector<32x128xbf16>, vector<16x128xf32> -> vector<16x128xf32>
    %23 = vector.broadcast %20 : vector<1x128xf32> to vector<16x128xf32>
    %24 = arith.addf %22, %23 : vector<16x128xf32>
    %c0_14 = arith.constant 0 : index
    %c0_15 = arith.constant 0 : index
    %25 = vector.load %arg4[%c0_14, %c0_15] : memref<16x128xf32, #tpu.memory_space<vmem>>, vector<16x128xf32>
    tpu.vector_store %arg4[%c0_14, %c0_15], %24 {strides = array<i32>} : memref<16x128xf32, #tpu.memory_space<vmem>>, vector<16x128xf32>,
    return
  }
  func.func @transform_0(%arg0: i32) -> (i32, i32) {
    %c0_i32 = arith.constant 0 : i32
    %c0_i32_0 = arith.constant 0 : i32
    return %arg0, %c0_i32 : i32, i32
  }
  func.func @transform_1(%arg0: i32) -> (i32, i32) {
    %c0_i32 = arith.constant 0 : i32
    %c0_i32_0 = arith.constant 0 : i32
    %c0_i32_1 = arith.constant 0 : i32
    return %c0_i32, %c0_i32_0 : i32, i32
  }
  func.func @transform_2(%arg0: i32) -> (i32, i32) {
    %c0_i32 = arith.constant 0 : i32
    %c0_i32_0 = arith.constant 0 : i32
    %c0_i32_1 = arith.constant 0 : i32
    return %c0_i32, %c0_i32_0 : i32, i32
  }
  func.func @transform_3(%arg0: i32) -> (i32, i32) {
    %c0_i32 = arith.constant 0 : i32
    %c0_i32_0 = arith.constant 0 : i32
    return %arg0, %c0_i32 : i32, i32
  }
}

</mosaic_0001>

<llo_original>
// kernel: encode_process_decode.8
$region0: #{encode_process_decode.8}
  #allocation0 [shape = 'u32[]', space=smem, size = 0x4, offset = 0x4, fixed_abs, tag = 'smem constant byte address 0x4 - core index']
  #allocation1 [shape = 'u32[144,128]{1,0:T(1,128)}', space=vmem, size = 0x12000, scoped, tag = 'internal scratch']
  %s0 = inlined_call_operand.vmem [shape: f32[64,3], index: 0, kind: input, shape index: {}]
  %s1 = inlined_call_operand.vmem [shape: f32[72,32], index: 1, kind: input, shape index: {}]
  %s2 = inlined_call_operand.vmem [shape: bf16[64,32], index: 2, kind: output, shape index: {}]
  %s3 = sld [smem:[#allocation0]]
  $region41: #{encode_process_decode.8} parent=0
    _
  %s5 = ssub.s32 1, %s3
  %s6 = scalar_select 0, %s5, %s3
  loop: start=0, step=1, limit=4
  $region2: #{encode_process_decode.8} parent=0 // loop_pre_header
    _
  $region3: #{encode_process_decode.8} parent=0 // loop_header
    %s8 = sphi 0, %s12
    %p9 = scmp.ge.s32.totalorder %s8, 4
    %s18 = sphi 0, %s20
    %s21 = sphi 0, %s18
    %s22 = sphi 0, %s21
    %s38 = sphi 0, %s22
    %s42 = sphi 0, %s42
    %s44 = sphi 0, %s42
    %s45 = sphi 0, %s44
    %s59 = sphi 0, %s45
    %s65 = sphi 0, %s67
    %s68 = sphi 0, %s65
    %s69 = sphi 0, %s68
    %s85 = sphi 0, %s69
  $region4: #{encode_process_decode.8} parent=0 // loop_header_branch
    %11 = sbr.rel (%p9) target = $region8
  $region5: #{encode_process_decode.8} parent=0 // loop_body
    %s13 = ssub.s32 %s8, 1
    %s14 = ssub.s32 %s8, 2
    %s15 = sadd.s32 %s8, 1
    %s16 = ssub.s32 %s8, %s15
    %p17 = scmp.eq.s32.totalorder %s16, 0
    %s19 = sadd.s32 %s18, 1
    %s20 = scalar_select %p17, %s18, %s19
    %p23 = pneg %p17
    %p24 = scmp.eq.s32.totalorder %s8, 1
    %p25 = por %p23, %p24
    %p26 = scmp.ne.s32.totalorder %s18, %s21
    %p27 = scmp.eq.s32.totalorder %s8, 0
    %p28 = por %p26, %p27
    %p29 = scmp.ne.s32.totalorder %s18, %s21
    %p30 = scmp.eq.s32.totalorder %s13, 1
    %p31 = por %p29, %p30
    %p32 = scmp.ne.s32.totalorder %s21, %s22
    %p33 = scmp.eq.s32.totalorder %s13, 0
    %p34 = por %p32, %p33
    %p35 = scmp.ne.s32.totalorder %s21, %s22
    %p36 = scmp.eq.s32.totalorder %s14, 1
    %p37 = por %p35, %p36
    %p39 = scmp.ne.s32.totalorder %s22, %s38
    %p40 = scmp.eq.s32.totalorder %s14, 0
    %p41 = por %p39, %p40
    %s43 = sadd.s32 %s42, 1
    %p46 = scmp.eq.s32.totalorder %s8, 1
    %p47 = scmp.ne.s32.totalorder %s42, %s44
    %p48 = scmp.eq.s32.totalorder %s8, 0
    %p49 = por %p47, %p48
    %p50 = scmp.ne.s32.totalorder %s42, %s44
    %p51 = scmp.eq.s32.totalorder %s13, 1
    %p52 = por %p50, %p51
    %p53 = scmp.ne.s32.totalorder %s44, %s45
    %p54 = scmp.eq.s32.totalorder %s13, 0
    %p55 = por %p53, %p54
    %p56 = scmp.ne.s32.totalorder %s44, %s45
    %p57 = scmp.eq.s32.totalorder %s14, 1
    %p58 = por %p56, %p57
    %p60 = scmp.ne.s32.totalorder %s45, %s59
    %p61 = scmp.eq.s32.totalorder %s14, 0
    %p62 = por %p60, %p61
    %s63 = ssub.s32 %s8, %s15
    %p64 = scmp.eq.s32.totalorder %s63, 0
    %s66 = sadd.s32 %s65, 1
    %s67 = scalar_select %p64, %s65, %s66
    %p70 = pneg %p64
    %p71 = scmp.eq.s32.totalorder %s8, 1
    %p72 = por %p70, %p71
    %p73 = scmp.ne.s32.totalorder %s65, %s68
    %p74 = scmp.eq.s32.totalorder %s8, 0
    %p75 = por %p73, %p74
    %p76 = scmp.ne.s32.totalorder %s65, %s68
    %p77 = scmp.eq.s32.totalorder %s13, 1
    %p78 = por %p76, %p77
    %p79 = scmp.ne.s32.totalorder %s68, %s69
    %p80 = scmp.eq.s32.totalorder %s13, 0
    %p81 = por %p79, %p80
    %p82 = scmp.ne.s32.totalorder %s68, %s69
    %p83 = scmp.eq.s32.totalorder %s14, 1
    %p84 = por %p82, %p83
    %p86 = scmp.ne.s32.totalorder %s69, %s85
    %p87 = scmp.eq.s32.totalorder %s14, 0
    %p88 = por %p86, %p87
    %p89 = scmp.le.s32.totalorder 1, %s8
    %p90 = scmp.lt.s32.totalorder %s8, 3
    %p91 = pnand %p89, %p90
    %p92 = pneg %p91
    // Predicated region
    $region9: #{encode_process_decode.8} parent=5 // pred_check
      _
    $region10: #{encode_process_decode.8} parent=5 // pred_check_branch
      %94 = sbr.rel (%p91) target = $region12
    $region11: #{encode_process_decode.8} parent=5 // pred_region
      %s95 = ssub.s32 %s8, 1
      // Predicated region
      $region13: #{encode_process_decode.8} parent=11 // pred_check
        %p96 = pneg %p55
      $region14: #{encode_process_decode.8} parent=11 // pred_check_branch
        %98 = sbr.rel (%p96) target = $region16
      $region15: #{encode_process_decode.8} parent=11 // pred_region
        _
      $region16: #{encode_process_decode.8} parent=11 // pred_fallthru
        _
    $region12: #{encode_process_decode.8} parent=5 // pred_fallthru
      _
    %p99 = scmp.lt.s32.totalorder %s8, 2
    // Predicated region
    $region17: #{encode_process_decode.8} parent=5 // pred_check
      %p100 = pneg %p99
    $region18: #{encode_process_decode.8} parent=5 // pred_check_branch
      %102 = sbr.rel (%p100) target = $region20
    $region19: #{encode_process_decode.8} parent=5 // pred_region
      // Predicated region
      $region21: #{encode_process_decode.8} parent=19 // pred_check
        %p103 = pneg %p28
      $region22: #{encode_process_decode.8} parent=19 // pred_check_branch
        %105 = sbr.rel (%p103) target = $region24
      $region23: #{encode_process_decode.8} parent=19 // pred_region
        %s106 = smul.u32 4, %s8
        %p107 = scmp.lt.s32.totalorder %s106, 7
        %s108 = scalar_select %p107, %s106, 7
        %s109 = smul.addr %s108, 8
        %s110 = scalar_lea.vmem %s0, %s109
        %s111 = smul.u32 4, %s8
      $region24: #{encode_process_decode.8} parent=19 // pred_fallthru
        _
    $region20: #{encode_process_decode.8} parent=5 // pred_fallthru
      _
    %p112 = scmp.le.s32.totalorder 1, %s8
    %p113 = scmp.lt.s32.totalorder %s8, 3
    %p114 = pnand %p112, %p113
    %p115 = pneg %p114
    // Predicated region
    $region25: #{encode_process_decode.8} parent=5 // pred_check
      _
    $region26: #{encode_process_decode.8} parent=5 // pred_check_branch
      %117 = sbr.rel (%p114) target = $region28
    $region27: #{encode_process_decode.8} parent=5 // pred_region
      %s118 = ssub.s32 %s8, 1
      %s119 = smul.u32 4, %s13
      %p120 = scmp.lt.s32.totalorder %s119, 7
      %s121 = scalar_select %p120, %s119, 7
      %s122 = smul.addr %s121, 8
      %s123 = scalar_lea.vmem %s0, %s122
      %p124 = pneg %p34
      %p125 = pneg %p31
      %p126 = pneg %p55
      %p127 = pneg %p52
      %p128 = pneg %p81
      %p129 = pneg %p78
      %s130 = smul.u32 4, %s13
      %p131 = scmp.lt.s32.totalorder %s130, 7
      %s132 = scalar_select %p131, %s130, 7
      %s133 = smul.addr %s132, 4
      %s134 = scalar_lea.vmem %s2, %s133
      %s135 = smul.u32 4, %s13
      %p136 = scmp.lt.s32.totalorder %s135, 7
      %s137 = scalar_select %p136, %s135, 7
      %s138 = smul.addr %s137, 8
      %s139 = scalar_lea.vmem %s0, %s138
      %s140 = smul.u32 4, %s13
      %s141 = smul.u32 4, %s13
      %p142 = scmp.lt.s32.totalorder %s141, 7
      %s143 = scalar_select %p142, %s141, 7
      %s144 = smul.addr %s143, 4
      %s145 = scalar_lea.vmem %s2, %s144
      %s146 = smul.u32 4, %s13
      %v148 = vld [vmem:[%s139] sm:$0xff]
      %v149 = vld [vmem:[%s139 + $0x8] sm:$0xff]
      %v150 = vld [vmem:[%s139 + $0x10] sm:$0xff]
      %v151 = vld [vmem:[%s139 + $0x18] sm:$0xff]
      %v152 = vpack.c.bf16 %v149, %v148
      %v153 = vpack.c.bf16 %v151, %v150
      %v154 = vld [vmem:[%s1] sm:$0x7]
      %v155 = vpack.c.bf16 %v154, %v154
      %v156 = vld [vmem:[%s1 + $0x3] sm:$0x1]
      %v157 = vlaneseq
      %v158 = vshrl.u32 %v157, 7
      %v159 = vsub.s32 0, %v158
      %v160 = vrot.slane %v156, %v159
      %vm161 = vcmask 23552
      %v163 = vsel %vm161, %v152, 0
      %v166 = vsel %vm161, %v153, 0
      %vm168 = vcmask 1040384
      %vm169 = vcmask 1041408
      %v170 = vsel %vm168, 4294967295, 65535
      %v171 = vsel %vm169, %v170, 0
      %v173 = vand.u32 %v155, %v171
      %175 = vmatprep.subr.bf16.mxu0 0
      %176 = vmatpush1.bf16.msra.mxu0 %v173
      %177 = vmatprep.subr.bf16.mxu0 0
      %178 = vmatpush1.bf16.msra.mxu0 0
      %179 = vmatprep.subr.bf16.mxu0 0
      %180 = vmatpush1.bf16.msra.mxu0 0
      %181 = vmatprep.subr.bf16.mxu0 0
      %182 = vmatpush1.bf16.msra.mxu0 0
      %183 = vmatprep.subr.bf16.mxu0 0
      %184 = vmatpush1.bf16.msra.mxu0 0
      %185 = vmatprep.subr.bf16.mxu0 0
      %186 = vmatpush1.bf16.msra.mxu0 0
      %187 = vmatprep.subr.bf16.mxu0 0
      %188 = vmatpush1.bf16.msra.mxu0 0
      %189 = vmatprep.subr.bf16.mxu0 0
      %190 = vmatpush1.bf16.msra.mxu0 0
      %191 = vmatprep.subr.bf16.mxu0 0
      %192 = vmatpush1.bf16.msra.mxu0 0
      %193 = vmatprep.subr.bf16.mxu0 0
      %194 = vmatpush1.bf16.msra.mxu0 0
      %195 = vmatprep.subr.bf16.mxu0 0
      %196 = vmatpush1.bf16.msra.mxu0 0
      %197 = vmatprep.subr.bf16.mxu0 0
      %198 = vmatpush1.bf16.msra.mxu0 0
      %199 = vmatprep.subr.bf16.mxu0 0
      %200 = vmatpush1.bf16.msra.mxu0 0
      %201 = vmatprep.subr.bf16.mxu0 0
      %202 = vmatpush1.bf16.msra.mxu0 0
      %203 = vmatprep.subr.bf16.mxu0 0
      %204 = vmatpush1.bf16.msra.mxu0 0
      %205 = vmatprep.subr.bf16.mxu0 0
      %206 = vmatpush1.bf16.msra.mxu0 0
      %207 = vmatprep.mubr.bf16.mxu0 0
      %208 = vmatmul.mubr.bf16.gmra.mrb[0].mxu0 %v163
      %v209 = vpop.f32.mrb[0].mxu0
      %v210 = vadd.f32 %v160, %v209
      %v211 = vpop.f32.mrb[0].mxu0
      %v212 = vpop.f32.mrb[0].mxu0
      %v213 = vadd.f32 %v160, %v212
      %v214 = vpop.f32.mrb[0].mxu0
      %215 = vmatprep.mubr.bf16.mxu0 0
      %216 = vmatmul.mubr.bf16.gmra.mrb[0].mxu0 %v166
      %v217 = vpop.f32.mrb[0].mxu0
      %v218 = vadd.f32 %v160, %v217
      %v219 = vpop.f32.mrb[0].mxu0
      %v220 = vpop.f32.mrb[0].mxu0
      %v221 = vadd.f32 %v160, %v220
      %v222 = vpop.f32.mrb[0].mxu0
      %223 = vdwg.mxu0
      %v224 = vmax.f32 %v210, 0.0
      %v225 = vmax.f32 %v213, 0.0
      %v226 = vmax.f32 %v218, 0.0
      %v227 = vmax.f32 %v221, 0.0
      %v228 = vld [vmem:[%s1 + $0x4] sm:$0xff]
      %v229 = vld [vmem:[%s1 + $0xc] sm:$0xff]
      %v230 = vld [vmem:[%s1 + $0x14] sm:$0xff]
      %v231 = vld [vmem:[%s1 + $0x1c] sm:$0xff]
      %v232 = vpack.c.bf16 %v229, %v228
      %v233 = vpack.c.bf16 %v231, %v230
      %v234 = vld [vmem:[%s1 + $0x24] sm:$0x1]
      %v235 = vpack.c.bf16 %v225, %v224
      %v236 = vpack.c.bf16 %v227, %v226
      %v237 = vlaneseq
      %v238 = vshrl.u32 %v237, 7
      %v239 = vsub.s32 0, %v238
      %v240 = vrot.slane %v234, %v239
      %vm241 = vcmask 261120
      %v243 = vsel %vm241, %v235, 0
      %v246 = vsel %vm241, %v236, 0
      %248 = vmatprep.subr.bf16.mxu0 0
      %249 = vmatpush1.bf16.msra.mxu0 %v232
      %250 = vmatprep.subr.bf16.mxu0 0
      %251 = vmatpush1.bf16.msra.mxu0 %v233
      %252 = vmatprep.subr.bf16.mxu0 0
      %253 = vmatpush1.bf16.msra.mxu0 0
      %254 = vmatprep.subr.bf16.mxu0 0
      %255 = vmatpush1.bf16.msra.mxu0 0
      %256 = vmatprep.subr.bf16.mxu0 0
      %257 = vmatpush1.bf16.msra.mxu0 0
      %258 = vmatprep.subr.bf16.mxu0 0
      %259 = vmatpush1.bf16.msra.mxu0 0
      %260 = vmatprep.subr.bf16.mxu0 0
      %261 = vmatpush1.bf16.msra.mxu0 0
      %262 = vmatprep.subr.bf16.mxu0 0
      %263 = vmatpush1.bf16.msra.mxu0 0
      %264 = vmatprep.subr.bf16.mxu0 0
      %265 = vmatpush1.bf16.msra.mxu0 0
      %266 = vmatprep.subr.bf16.mxu0 0
      %267 = vmatpush1.bf16.msra.mxu0 0
      %268 = vmatprep.subr.bf16.mxu0 0
      %269 = vmatpush1.bf16.msra.mxu0 0
      %270 = vmatprep.subr.bf16.mxu0 0
      %271 = vmatpush1.bf16.msra.mxu0 0
      %272 = vmatprep.subr.bf16.mxu0 0
      %273 = vmatpush1.bf16.msra.mxu0 0
      %274 = vmatprep.subr.bf16.mxu0 0
      %275 = vmatpush1.bf16.msra.mxu0 0
      %276 = vmatprep.subr.bf16.mxu0 0
      %277 = vmatpush1.bf16.msra.mxu0 0
      %278 = vmatprep.subr.bf16.mxu0 0
      %279 = vmatpush1.bf16.msra.mxu0 0
      %280 = vmatprep.mubr.bf16.mxu0 0
      %281 = vmatmul.mubr.bf16.gmra.mrb[0].mxu0 %v243
      %v282 = vpop.f32.mrb[0].mxu0
      %v283 = vadd.f32 %v240, %v282
      %v284 = vpop.f32.mrb[0].mxu0
      %v285 = vpop.f32.mrb[0].mxu0
      %v286 = vadd.f32 %v240, %v285
      %v287 = vpop.f32.mrb[0].mxu0
      %288 = vmatprep.mubr.bf16.mxu0 0
      %289 = vmatmul.mubr.bf16.gmra.mrb[0].mxu0 %v246
      %v290 = vpop.f32.mrb[0].mxu0
      %v291 = vadd.f32 %v240, %v290
      %v292 = vpop.f32.mrb[0].mxu0
      %v293 = vpop.f32.mrb[0].mxu0
      %v294 = vadd.f32 %v240, %v293
      %v295 = vpop.f32.mrb[0].mxu0
      %296 = vdwg.mxu0
      %v297 = vmax.f32 %v283, 0.0
      %v298 = vmax.f32 %v286, 0.0
      %v299 = vmax.f32 %v291, 0.0
      %v300 = vmax.f32 %v294, 0.0
      %v301 = vld [vmem:[%s1 + $0x25] sm:$0xff]
      %v302 = vld [vmem:[%s1 + $0x2d] sm:$0xff]
      %v303 = vld [vmem:[%s1 + $0x35] sm:$0xff]
      %v304 = vld [vmem:[%s1 + $0x3d] sm:$0xff]
      %v305 = vpack.c.bf16 %v302, %v301
      %v306 = vpack.c.bf16 %v304, %v303
      %v307 = vld [vmem:[%s1 + $0x45] sm:$0x1]
      %v308 = vpack.c.bf16 %v298, %v297
      %v309 = vpack.c.bf16 %v300, %v299
      %v310 = vlaneseq
      %v311 = vshrl.u32 %v310, 7
      %v312 = vsub.s32 0, %v311
      %v313 = vrot.slane %v307, %v312
      %v315 = vsel %vm241, %v308, 0
      %v318 = vsel %vm241, %v309, 0
      %320 = vmatprep.subr.bf16.mxu0 0
      %321 = vmatpush1.bf16.msra.mxu0 %v305
      %322 = vmatprep.subr.bf16.mxu0 0
      %323 = vmatpush1.bf16.msra.mxu0 %v306
      %324 = vmatprep.subr.bf16.mxu0 0
      %325 = vmatpush1.bf16.msra.mxu0 0
      %326 = vmatprep.subr.bf16.mxu0 0
      %327 = vmatpush1.bf16.msra.mxu0 0
      %328 = vmatprep.subr.bf16.mxu0 0
      %329 = vmatpush1.bf16.msra.mxu0 0
      %330 = vmatprep.subr.bf16.mxu0 0
      %331 = vmatpush1.bf16.msra.mxu0 0
      %332 = vmatprep.subr.bf16.mxu0 0
      %333 = vmatpush1.bf16.msra.mxu0 0
      %334 = vmatprep.subr.bf16.mxu0 0
      %335 = vmatpush1.bf16.msra.mxu0 0
      %336 = vmatprep.subr.bf16.mxu0 0
      %337 = vmatpush1.bf16.msra.mxu0 0
      %338 = vmatprep.subr.bf16.mxu0 0
      %339 = vmatpush1.bf16.msra.mxu0 0
      %340 = vmatprep.subr.bf16.mxu0 0
      %341 = vmatpush1.bf16.msra.mxu0 0
      %342 = vmatprep.subr.bf16.mxu0 0
      %343 = vmatpush1.bf16.msra.mxu0 0
      %344 = vmatprep.subr.bf16.mxu0 0
      %345 = vmatpush1.bf16.msra.mxu0 0
      %346 = vmatprep.subr.bf16.mxu0 0
      %347 = vmatpush1.bf16.msra.mxu0 0
      %348 = vmatprep.subr.bf16.mxu0 0
      %349 = vmatpush1.bf16.msra.mxu0 0
      %350 = vmatprep.subr.bf16.mxu0 0
      %351 = vmatpush1.bf16.msra.mxu0 0
      %352 = vmatprep.mubr.bf16.mxu0 0
      %353 = vmatmul.mubr.bf16.gmra.mrb[0].mxu0 %v315
      %v354 = vpop.f32.mrb[0].mxu0
      %v355 = vadd.f32 %v313, %v354
      %v356 = vpop.f32.mrb[0].mxu0
      %v357 = vpop.f32.mrb[0].mxu0
      %v358 = vadd.f32 %v313, %v357
      %v359 = vpop.f32.mrb[0].mxu0
      %360 = vmatprep.mubr.bf16.mxu0 0
      %361 = vmatmul.mubr.bf16.gmra.mrb[0].mxu0 %v318
      %v362 = vpop.f32.mrb[0].mxu0
      %v363 = vadd.f32 %v313, %v362
      %v364 = vpop.f32.mrb[0].mxu0
      %v365 = vpop.f32.mrb[0].mxu0
      %v366 = vadd.f32 %v313, %v365
      %v367 = vpop.f32.mrb[0].mxu0
      %368 = vdwg.mxu0
      %v369 = vld [vmem:[%s1 + $0x46] sm:$0x1]
      %v370 = vld [vmem:[%s1 + $0x47] sm:$0x1]
      %v371 = vsel %vm241, %v355, 0.0
      %372 = vadd.xlane.f32.xlu0 %v371
      %v373 = vpop.xlane.xlu0 %372
      %v374 = vsel %vm241, %v358, 0.0
      %375 = vadd.xlane.f32.xlu0 %v374
      %v376 = vpop.xlane.xlu0 %375
      %v377 = vsel %vm241, %v363, 0.0
      %378 = vadd.xlane.f32.xlu0 %v377
      %v379 = vpop.xlane.xlu0 %378
      %v380 = vsel %vm241, %v366, 0.0
      %381 = vadd.xlane.f32.xlu0 %v380
      %v382 = vpop.xlane.xlu0 %381
      %v383 = vmul.f32 %v373, 0.03125
      %v384 = vmul.f32 %v376, 0.03125
      %v385 = vmul.f32 %v379, 0.03125
      %v386 = vmul.f32 %v382, 0.03125
      %v387 = vmul.f32 %v355, %v355
      %v388 = vmul.f32 %v358, %v358
      %v389 = vmul.f32 %v363, %v363
      %v390 = vmul.f32 %v366, %v366
      %v391 = vsel %vm241, %v387, 0.0
      %392 = vadd.xlane.f32.xlu0 %v391
      %v393 = vpop.xlane.xlu0 %392
      %v394 = vsel %vm241, %v388, 0.0
      %395 = vadd.xlane.f32.xlu0 %v394
      %v396 = vpop.xlane.xlu0 %395
      %v397 = vsel %vm241, %v389, 0.0
      %398 = vadd.xlane.f32.xlu0 %v397
      %v399 = vpop.xlane.xlu0 %398
      %v400 = vsel %vm241, %v390, 0.0
      %401 = vadd.xlane.f32.xlu0 %v400
      %v402 = vpop.xlane.xlu0 %401
      %v403 = vmul.f32 %v393, 0.03125
      %v404 = vmul.f32 %v396, 0.03125
      %v405 = vmul.f32 %v399, 0.03125
      %v406 = vmul.f32 %v402, 0.03125
      %v407 = vmul.f32 %v383, %v383
      %v408 = vmul.f32 %v384, %v384
      %v409 = vmul.f32 %v385, %v385
      %v410 = vmul.f32 %v386, %v386
      %v411 = vsub.f32 %v403, %v407
      %v412 = vsub.f32 %v404, %v408
      %v413 = vsub.f32 %v405, %v409
      %v414 = vsub.f32 %v406, %v410
      %v415 = vmax.f32 %v411, 0.0
      %v416 = vmax.f32 %v412, 0.0
      %v417 = vmax.f32 %v413, 0.0
      %v418 = vmax.f32 %v414, 0.0
      %v419 = vsub.f32 %v355, %v383
      %v420 = vsub.f32 %v358, %v384
      %v421 = vsub.f32 %v363, %v385
      %v422 = vsub.f32 %v366, %v386
      %v423 = vadd.f32 %v415, 1e-05
      %v424 = vadd.f32 %v416, 1e-05
      %v425 = vadd.f32 %v417, 1e-05
      %v426 = vadd.f32 %v418, 1e-05
      %v427 = vrsqrt.pop %v423
      %v428 = vrsqrt.pop %v424
      %v429 = vrsqrt.pop %v425
      %v430 = vrsqrt.pop %v426
      %v431 = vmul.f32 %v419, %v427
      %v432 = vmul.f32 %v420, %v428
      %v433 = vmul.f32 %v421, %v429
      %v434 = vmul.f32 %v422, %v430
      %v435 = vlaneseq
      %v436 = vshrl.u32 %v435, 7
      %v437 = vsub.s32 0, %v436
      %v438 = vrot.slane %v369, %v437
      %v439 = vmul.f32 %v431, %v438
      %v440 = vmul.f32 %v432, %v438
      %v441 = vmul.f32 %v433, %v438
      %v442 = vmul.f32 %v434, %v438
      %v443 = vlaneseq
      %v444 = vshrl.u32 %v443, 7
      %v445 = vsub.s32 0, %v444
      %v446 = vrot.slane %v370, %v445
      %v447 = vadd.f32 %v439, %v446
      %v448 = vadd.f32 %v440, %v446
      %v449 = vadd.f32 %v441, %v446
      %v450 = vadd.f32 %v442, %v446
      %v451 = vpack.c.bf16 %v448, %v447
      %v452 = vpack.c.bf16 %v450, %v449
      %v455 = vunpack.c.l.b16 %v451
      %v456 = vunpack.c.h.b16 %v451
      %v457 = vunpack.c.l.b16 %v452
      %v458 = vunpack.c.h.b16 %v452
      %v459 = vpack.c.b16 %v455, %v455
      %v460 = vpack.c.b16 %v456, %v456
      %v461 = vpack.c.b16 %v457, %v457
      %v462 = vpack.c.b16 %v458, %v458
      %vm467 = vcmask 257024
      %468 = vst.msk [vmem:[%s145] sm:$0xf] %vm467, %v459
      %469 = vst.msk [vmem:[%s145 + $0x4] sm:$0xf] %vm467, %v460
      %470 = vst.msk [vmem:[%s145 + $0x8] sm:$0xf] %vm467, %v461
      %471 = vst.msk [vmem:[%s145 + $0xc] sm:$0xf] %vm467, %v462
      %s472 = smul.u32 4, %s13
      %p473 = scmp.lt.s32.totalorder %s472, 7
      %s474 = scalar_select %p473, %s472, 7
      %s475 = smul.addr %s474, 4
      %s476 = scalar_lea.vmem %s2, %s475
      // Predicated region
      $region29: #{encode_process_decode.8} parent=27 // pred_check
        %p477 = pneg %p78
      $region30: #{encode_process_decode.8} parent=27 // pred_check_branch
        %479 = sbr.rel (%p477) target = $region32
      $region31: #{encode_process_decode.8} parent=27 // pred_region
        %s480 = smul.u32 4, %s13
      $region32: #{encode_process_decode.8} parent=27 // pred_fallthru
        _
    $region28: #{encode_process_decode.8} parent=5 // pred_fallthru
      _
    %p481 = scmp.le.s32.totalorder 2, %s8
    // Predicated region
    $region33: #{encode_process_decode.8} parent=5 // pred_check
      %p482 = pneg %p481
    $region34: #{encode_process_decode.8} parent=5 // pred_check_branch
      %484 = sbr.rel (%p482) target = $region36
    $region35: #{encode_process_decode.8} parent=5 // pred_region
      %s485 = ssub.s32 %s8, 2
      // Predicated region
      $region37: #{encode_process_decode.8} parent=35 // pred_check
        %p486 = pneg %p84
      $region38: #{encode_process_decode.8} parent=35 // pred_check_branch
        %488 = sbr.rel (%p486) target = $region40
      $region39: #{encode_process_decode.8} parent=35 // pred_region
        %s489 = smul.u32 4, %s14
        %p490 = scmp.lt.s32.totalorder %s489, 7
        %s491 = scalar_select %p490, %s489, 7
        %s492 = smul.addr %s491, 4
        %s493 = scalar_lea.vmem %s2, %s492
      $region40: #{encode_process_decode.8} parent=35 // pred_fallthru
        _
    $region36: #{encode_process_decode.8} parent=5 // pred_fallthru
      _
  $region6: #{encode_process_decode.8} parent=0 // loop_footer
    %s12 = sadd.s32 1, %s8
  $region7: #{encode_process_decode.8} parent=0 // loop_footer_branch
    %7 = sbr.rel target = $region3
  $region8: #{encode_process_decode.8} parent=0 // loop_exit
    _

// kernel: encode_process_decode.7
$region0: #{encode_process_decode.7}
  #allocation0 [shape = 'u32[]', space=smem, size = 0x4, offset = 0x4, fixed_abs, tag = 'smem constant byte address 0x4 - core index']
  #allocation1 [shape = 'u32[144,128]{1,0:T(1,128)}', space=vmem, size = 0x12000, scoped, tag = 'internal scratch']
  %s0 = inlined_call_operand.vmem [shape: f32[32,11], index: 0, kind: input, shape index: {}]
  %s1 = inlined_call_operand.vmem [shape: f32[80,32], index: 1, kind: input, shape index: {}]
  %s2 = inlined_call_operand.vmem [shape: bf16[32,32], index: 2, kind: output, shape index: {}]
  %s3 = sld [smem:[#allocation0]]
  $region41: #{encode_process_decode.7} parent=0
    _
  %s5 = ssub.s32 1, %s3
  %s6 = scalar_select 0, %s5, %s3
  loop: start=0, step=1, limit=4
  $region2: #{encode_process_decode.7} parent=0 // loop_pre_header
    _
  $region3: #{encode_process_decode.7} parent=0 // loop_header
    %s8 = sphi 0, %s12
    %p9 = scmp.ge.s32.totalorder %s8, 4
    %s18 = sphi 0, %s20
    %s21 = sphi 0, %s18
    %s22 = sphi 0, %s21
    %s38 = sphi 0, %s22
    %s42 = sphi 0, %s42
    %s44 = sphi 0, %s42
    %s45 = sphi 0, %s44
    %s59 = sphi 0, %s45
    %s65 = sphi 0, %s67
    %s68 = sphi 0, %s65
    %s69 = sphi 0, %s68
    %s85 = sphi 0, %s69
  $region4: #{encode_process_decode.7} parent=0 // loop_header_branch
    %11 = sbr.rel (%p9) target = $region8
  $region5: #{encode_process_decode.7} parent=0 // loop_body
    %s13 = ssub.s32 %s8, 1
    %s14 = ssub.s32 %s8, 2
    %s15 = sadd.s32 %s8, 1
    %s16 = ssub.s32 %s8, %s15
    %p17 = scmp.eq.s32.totalorder %s16, 0
    %s19 = sadd.s32 %s18, 1
    %s20 = scalar_select %p17, %s18, %s19
    %p23 = pneg %p17
    %p24 = scmp.eq.s32.totalorder %s8, 1
    %p25 = por %p23, %p24
    %p26 = scmp.ne.s32.totalorder %s18, %s21
    %p27 = scmp.eq.s32.totalorder %s8, 0
    %p28 = por %p26, %p27
    %p29 = scmp.ne.s32.totalorder %s18, %s21
    %p30 = scmp.eq.s32.totalorder %s13, 1
    %p31 = por %p29, %p30
    %p32 = scmp.ne.s32.totalorder %s21, %s22
    %p33 = scmp.eq.s32.totalorder %s13, 0
    %p34 = por %p32, %p33
    %p35 = scmp.ne.s32.totalorder %s21, %s22
    %p36 = scmp.eq.s32.totalorder %s14, 1
    %p37 = por %p35, %p36
    %p39 = scmp.ne.s32.totalorder %s22, %s38
    %p40 = scmp.eq.s32.totalorder %s14, 0
    %p41 = por %p39, %p40
    %s43 = sadd.s32 %s42, 1
    %p46 = scmp.eq.s32.totalorder %s8, 1
    %p47 = scmp.ne.s32.totalorder %s42, %s44
    %p48 = scmp.eq.s32.totalorder %s8, 0
    %p49 = por %p47, %p48
    %p50 = scmp.ne.s32.totalorder %s42, %s44
    %p51 = scmp.eq.s32.totalorder %s13, 1
    %p52 = por %p50, %p51
    %p53 = scmp.ne.s32.totalorder %s44, %s45
    %p54 = scmp.eq.s32.totalorder %s13, 0
    %p55 = por %p53, %p54
    %p56 = scmp.ne.s32.totalorder %s44, %s45
    %p57 = scmp.eq.s32.totalorder %s14, 1
    %p58 = por %p56, %p57
    %p60 = scmp.ne.s32.totalorder %s45, %s59
    %p61 = scmp.eq.s32.totalorder %s14, 0
    %p62 = por %p60, %p61
    %s63 = ssub.s32 %s8, %s15
    %p64 = scmp.eq.s32.totalorder %s63, 0
    %s66 = sadd.s32 %s65, 1
    %s67 = scalar_select %p64, %s65, %s66
    %p70 = pneg %p64
    %p71 = scmp.eq.s32.totalorder %s8, 1
    %p72 = por %p70, %p71
    %p73 = scmp.ne.s32.totalorder %s65, %s68
    %p74 = scmp.eq.s32.totalorder %s8, 0
    %p75 = por %p73, %p74
    %p76 = scmp.ne.s32.totalorder %s65, %s68
    %p77 = scmp.eq.s32.totalorder %s13, 1
    %p78 = por %p76, %p77
    %p79 = scmp.ne.s32.totalorder %s68, %s69
    %p80 = scmp.eq.s32.totalorder %s13, 0
    %p81 = por %p79, %p80
    %p82 = scmp.ne.s32.totalorder %s68, %s69
    %p83 = scmp.eq.s32.totalorder %s14, 1
    %p84 = por %p82, %p83
    %p86 = scmp.ne.s32.totalorder %s69, %s85
    %p87 = scmp.eq.s32.totalorder %s14, 0
    %p88 = por %p86, %p87
    %p89 = scmp.le.s32.totalorder 1, %s8
    %p90 = scmp.lt.s32.totalorder %s8, 3
    %p91 = pnand %p89, %p90
    %p92 = pneg %p91
    // Predicated region
    $region9: #{encode_process_decode.7} parent=5 // pred_check
      _
    $region10: #{encode_process_decode.7} parent=5 // pred_check_branch
      %94 = sbr.rel (%p91) target = $region12
    $region11: #{encode_process_decode.7} parent=5 // pred_region
      %s95 = ssub.s32 %s8, 1
      // Predicated region
      $region13: #{encode_process_decode.7} parent=11 // pred_check
        %p96 = pneg %p55
      $region14: #{encode_process_decode.7} parent=11 // pred_check_branch
        %98 = sbr.rel (%p96) target = $region16
      $region15: #{encode_process_decode.7} parent=11 // pred_region
        _
      $region16: #{encode_process_decode.7} parent=11 // pred_fallthru
        _
    $region12: #{encode_process_decode.7} parent=5 // pred_fallthru
      _
    %p99 = scmp.lt.s32.totalorder %s8, 2
    // Predicated region
    $region17: #{encode_process_decode.7} parent=5 // pred_check
      %p100 = pneg %p99
    $region18: #{encode_process_decode.7} parent=5 // pred_check_branch
      %102 = sbr.rel (%p100) target = $region20
    $region19: #{encode_process_decode.7} parent=5 // pred_region
      // Predicated region
      $region21: #{encode_process_decode.7} parent=19 // pred_check
        %p103 = pneg %p28
      $region22: #{encode_process_decode.7} parent=19 // pred_check_branch
        %105 = sbr.rel (%p103) target = $region24
      $region23: #{encode_process_decode.7} parent=19 // pred_region
        %s106 = smul.u32 2, %s8
        %p107 = scmp.lt.s32.totalorder %s106, 3
        %s108 = scalar_select %p107, %s106, 3
        %s109 = smul.addr %s108, 8
        %s110 = scalar_lea.vmem %s0, %s109
        %s111 = smul.u32 2, %s8
      $region24: #{encode_process_decode.7} parent=19 // pred_fallthru
        _
    $region20: #{encode_process_decode.7} parent=5 // pred_fallthru
      _
    %p112 = scmp.le.s32.totalorder 1, %s8
    %p113 = scmp.lt.s32.totalorder %s8, 3
    %p114 = pnand %p112, %p113
    %p115 = pneg %p114
    // Predicated region
    $region25: #{encode_process_decode.7} parent=5 // pred_check
      _
    $region26: #{encode_process_decode.7} parent=5 // pred_check_branch
      %117 = sbr.rel (%p114) target = $region28
    $region27: #{encode_process_decode.7} parent=5 // pred_region
      %s118 = ssub.s32 %s8, 1
      %s119 = smul.u32 2, %s13
      %p120 = scmp.lt.s32.totalorder %s119, 3
      %s121 = scalar_select %p120, %s119, 3
      %s122 = smul.addr %s121, 8
      %s123 = scalar_lea.vmem %s0, %s122
      %p124 = pneg %p34
      %p125 = pneg %p31
      %p126 = pneg %p55
      %p127 = pneg %p52
      %p128 = pneg %p81
      %p129 = pneg %p78
      %s130 = smul.u32 2, %s13
      %p131 = scmp.lt.s32.totalorder %s130, 3
      %s132 = scalar_select %p131, %s130, 3
      %s133 = smul.addr %s132, 4
      %s134 = scalar_lea.vmem %s2, %s133
      %s135 = smul.u32 2, %s13
      %p136 = scmp.lt.s32.totalorder %s135, 3
      %s137 = scalar_select %p136, %s135, 3
      %s138 = smul.addr %s137, 8
      %s139 = scalar_lea.vmem %s0, %s138
      %s140 = smul.u32 2, %s13
      %s141 = smul.u32 2, %s13
      %p142 = scmp.lt.s32.totalorder %s141, 3
      %s143 = scalar_select %p142, %s141, 3
      %s144 = smul.addr %s143, 4
      %s145 = scalar_lea.vmem %s2, %s144
      %s146 = smul.u32 2, %s13
      %v148 = vld [vmem:[%s139] sm:$0xff]
      %v149 = vld [vmem:[%s139 + $0x8] sm:$0xff]
      %v150 = vpack.c.bf16 %v149, %v148
      %v151 = vld [vmem:[%s1] sm:$0xff]
      %v152 = vld [vmem:[%s1 + $0x8] sm:$0x7]
      %v153 = vpack.c.bf16 %v152, %v151
      %v154 = vld [vmem:[%s1 + $0xb] sm:$0x1]
      %v155 = vlaneseq
      %v156 = vshrl.u32 %v155, 7
      %v157 = vsub.s32 0, %v156
      %v158 = vrot.slane %v154, %v157
      %vm159 = vcmask 89088
      %v161 = vsel %vm159, %v150, 0
      %vm163 = vcmask 1044480
      %vm164 = vcmask 1045504
      %v165 = vsel %vm163, 4294967295, 65535
      %v166 = vsel %vm164, %v165, 0
      %v168 = vand.u32 %v153, %v166
      %170 = vmatprep.subr.bf16.mxu0 0
      %171 = vmatpush1.bf16.msra.mxu0 %v168
      %172 = vmatprep.subr.bf16.mxu0 0
      %173 = vmatpush1.bf16.msra.mxu0 0
      %174 = vmatprep.subr.bf16.mxu0 0
      %175 = vmatpush1.bf16.msra.mxu0 0
      %176 = vmatprep.subr.bf16.mxu0 0
      %177 = vmatpush1.bf16.msra.mxu0 0
      %178 = vmatprep.subr.bf16.mxu0 0
      %179 = vmatpush1.bf16.msra.mxu0 0
      %180 = vmatprep.subr.bf16.mxu0 0
      %181 = vmatpush1.bf16.msra.mxu0 0
      %182 = vmatprep.subr.bf16.mxu0 0
      %183 = vmatpush1.bf16.msra.mxu0 0
      %184 = vmatprep.subr.bf16.mxu0 0
      %185 = vmatpush1.bf16.msra.mxu0 0
      %186 = vmatprep.subr.bf16.mxu0 0
      %187 = vmatpush1.bf16.msra.mxu0 0
      %188 = vmatprep.subr.bf16.mxu0 0
      %189 = vmatpush1.bf16.msra.mxu0 0
      %190 = vmatprep.subr.bf16.mxu0 0
      %191 = vmatpush1.bf16.msra.mxu0 0
      %192 = vmatprep.subr.bf16.mxu0 0
      %193 = vmatpush1.bf16.msra.mxu0 0
      %194 = vmatprep.subr.bf16.mxu0 0
      %195 = vmatpush1.bf16.msra.mxu0 0
      %196 = vmatprep.subr.bf16.mxu0 0
      %197 = vmatpush1.bf16.msra.mxu0 0
      %198 = vmatprep.subr.bf16.mxu0 0
      %199 = vmatpush1.bf16.msra.mxu0 0
      %200 = vmatprep.subr.bf16.mxu0 0
      %201 = vmatpush1.bf16.msra.mxu0 0
      %202 = vmatprep.mubr.bf16.mxu0 0
      %203 = vmatmul.mubr.bf16.gmra.mrb[0].mxu0 %v161
      %v204 = vpop.f32.mrb[0].mxu0
      %v205 = vadd.f32 %v158, %v204
      %v206 = vpop.f32.mrb[0].mxu0
      %v207 = vpop.f32.mrb[0].mxu0
      %v208 = vadd.f32 %v158, %v207
      %v209 = vpop.f32.mrb[0].mxu0
      %210 = vdwg.mxu0
      %v211 = vmax.f32 %v205, 0.0
      %v212 = vmax.f32 %v208, 0.0
      %v213 = vld [vmem:[%s1 + $0xc] sm:$0xff]
      %v214 = vld [vmem:[%s1 + $0x14] sm:$0xff]
      %v215 = vld [vmem:[%s1 + $0x1c] sm:$0xff]
      %v216 = vld [vmem:[%s1 + $0x24] sm:$0xff]
      %v217 = vpack.c.bf16 %v214, %v213
      %v218 = vpack.c.bf16 %v216, %v215
      %v219 = vld [vmem:[%s1 + $0x2c] sm:$0x1]
      %v220 = vpack.c.bf16 %v212, %v211
      %v221 = vlaneseq
      %v222 = vshrl.u32 %v221, 7
      %v223 = vsub.s32 0, %v222
      %v224 = vrot.slane %v219, %v223
      %vm225 = vcmask 261120
      %v227 = vsel %vm225, %v220, 0
      %229 = vmatprep.subr.bf16.mxu0 0
      %230 = vmatpush1.bf16.msra.mxu0 %v217
      %231 = vmatprep.subr.bf16.mxu0 0
      %232 = vmatpush1.bf16.msra.mxu0 %v218
      %233 = vmatprep.subr.bf16.mxu0 0
      %234 = vmatpush1.bf16.msra.mxu0 0
      %235 = vmatprep.subr.bf16.mxu0 0
      %236 = vmatpush1.bf16.msra.mxu0 0
      %237 = vmatprep.subr.bf16.mxu0 0
      %238 = vmatpush1.bf16.msra.mxu0 0
      %239 = vmatprep.subr.bf16.mxu0 0
      %240 = vmatpush1.bf16.msra.mxu0 0
      %241 = vmatprep.subr.bf16.mxu0 0
      %242 = vmatpush1.bf16.msra.mxu0 0
      %243 = vmatprep.subr.bf16.mxu0 0
      %244 = vmatpush1.bf16.msra.mxu0 0
      %245 = vmatprep.subr.bf16.mxu0 0
      %246 = vmatpush1.bf16.msra.mxu0 0
      %247 = vmatprep.subr.bf16.mxu0 0
      %248 = vmatpush1.bf16.msra.mxu0 0
      %249 = vmatprep.subr.bf16.mxu0 0
      %250 = vmatpush1.bf16.msra.mxu0 0
      %251 = vmatprep.subr.bf16.mxu0 0
      %252 = vmatpush1.bf16.msra.mxu0 0
      %253 = vmatprep.subr.bf16.mxu0 0
      %254 = vmatpush1.bf16.msra.mxu0 0
      %255 = vmatprep.subr.bf16.mxu0 0
      %256 = vmatpush1.bf16.msra.mxu0 0
      %257 = vmatprep.subr.bf16.mxu0 0
      %258 = vmatpush1.bf16.msra.mxu0 0
      %259 = vmatprep.subr.bf16.mxu0 0
      %260 = vmatpush1.bf16.msra.mxu0 0
      %261 = vmatprep.mubr.bf16.mxu0 0
      %262 = vmatmul.mubr.bf16.gmra.mrb[0].mxu0 %v227
      %v263 = vpop.f32.mrb[0].mxu0
      %v264 = vadd.f32 %v224, %v263
      %v265 = vpop.f32.mrb[0].mxu0
      %v266 = vpop.f32.mrb[0].mxu0
      %v267 = vadd.f32 %v224, %v266
      %v268 = vpop.f32.mrb[0].mxu0
      %269 = vdwg.mxu0
      %v270 = vmax.f32 %v264, 0.0
      %v271 = vmax.f32 %v267, 0.0
      %v272 = vld [vmem:[%s1 + $0x2d] sm:$0xff]
      %v273 = vld [vmem:[%s1 + $0x35] sm:$0xff]
      %v274 = vld [vmem:[%s1 + $0x3d] sm:$0xff]
      %v275 = vld [vmem:[%s1 + $0x45] sm:$0xff]
      %v276 = vpack.c.bf16 %v273, %v272
      %v277 = vpack.c.bf16 %v275, %v274
      %v278 = vld [vmem:[%s1 + $0x4d] sm:$0x1]
      %v279 = vpack.c.bf16 %v271, %v270
      %v280 = vlaneseq
      %v281 = vshrl.u32 %v280, 7
      %v282 = vsub.s32 0, %v281
      %v283 = vrot.slane %v278, %v282
      %v285 = vsel %vm225, %v279, 0
      %287 = vmatprep.subr.bf16.mxu0 0
      %288 = vmatpush1.bf16.msra.mxu0 %v276
      %289 = vmatprep.subr.bf16.mxu0 0
      %290 = vmatpush1.bf16.msra.mxu0 %v277
      %291 = vmatprep.subr.bf16.mxu0 0
      %292 = vmatpush1.bf16.msra.mxu0 0
      %293 = vmatprep.subr.bf16.mxu0 0
      %294 = vmatpush1.bf16.msra.mxu0 0
      %295 = vmatprep.subr.bf16.mxu0 0
      %296 = vmatpush1.bf16.msra.mxu0 0
      %297 = vmatprep.subr.bf16.mxu0 0
      %298 = vmatpush1.bf16.msra.mxu0 0
      %299 = vmatprep.subr.bf16.mxu0 0
      %300 = vmatpush1.bf16.msra.mxu0 0
      %301 = vmatprep.subr.bf16.mxu0 0
      %302 = vmatpush1.bf16.msra.mxu0 0
      %303 = vmatprep.subr.bf16.mxu0 0
      %304 = vmatpush1.bf16.msra.mxu0 0
      %305 = vmatprep.subr.bf16.mxu0 0
      %306 = vmatpush1.bf16.msra.mxu0 0
      %307 = vmatprep.subr.bf16.mxu0 0
      %308 = vmatpush1.bf16.msra.mxu0 0
      %309 = vmatprep.subr.bf16.mxu0 0
      %310 = vmatpush1.bf16.msra.mxu0 0
      %311 = vmatprep.subr.bf16.mxu0 0
      %312 = vmatpush1.bf16.msra.mxu0 0
      %313 = vmatprep.subr.bf16.mxu0 0
      %314 = vmatpush1.bf16.msra.mxu0 0
      %315 = vmatprep.subr.bf16.mxu0 0
      %316 = vmatpush1.bf16.msra.mxu0 0
      %317 = vmatprep.subr.bf16.mxu0 0
      %318 = vmatpush1.bf16.msra.mxu0 0
      %319 = vmatprep.mubr.bf16.mxu0 0
      %320 = vmatmul.mubr.bf16.gmra.mrb[0].mxu0 %v285
      %v321 = vpop.f32.mrb[0].mxu0
      %v322 = vadd.f32 %v283, %v321
      %v323 = vpop.f32.mrb[0].mxu0
      %v324 = vpop.f32.mrb[0].mxu0
      %v325 = vadd.f32 %v283, %v324
      %v326 = vpop.f32.mrb[0].mxu0
      %327 = vdwg.mxu0
      %v328 = vld [vmem:[%s1 + $0x4e] sm:$0x1]
      %v329 = vld [vmem:[%s1 + $0x4f] sm:$0x1]
      %v330 = vsel %vm225, %v322, 0.0
      %331 = vadd.xlane.f32.xlu0 %v330
      %v332 = vpop.xlane.xlu0 %331
      %v333 = vsel %vm225, %v325, 0.0
      %334 = vadd.xlane.f32.xlu0 %v333
      %v335 = vpop.xlane.xlu0 %334
      %v336 = vmul.f32 %v332, 0.03125
      %v337 = vmul.f32 %v335, 0.03125
      %v338 = vmul.f32 %v322, %v322
      %v339 = vmul.f32 %v325, %v325
      %v340 = vsel %vm225, %v338, 0.0
      %341 = vadd.xlane.f32.xlu0 %v340
      %v342 = vpop.xlane.xlu0 %341
      %v343 = vsel %vm225, %v339, 0.0
      %344 = vadd.xlane.f32.xlu0 %v343
      %v345 = vpop.xlane.xlu0 %344
      %v346 = vmul.f32 %v342, 0.03125
      %v347 = vmul.f32 %v345, 0.03125
      %v348 = vmul.f32 %v336, %v336
      %v349 = vmul.f32 %v337, %v337
      %v350 = vsub.f32 %v346, %v348
      %v351 = vsub.f32 %v347, %v349
      %v352 = vmax.f32 %v350, 0.0
      %v353 = vmax.f32 %v351, 0.0
      %v354 = vsub.f32 %v322, %v336
      %v355 = vsub.f32 %v325, %v337
      %v356 = vadd.f32 %v352, 1e-05
      %v357 = vadd.f32 %v353, 1e-05
      %v358 = vrsqrt.pop %v356
      %v359 = vrsqrt.pop %v357
      %v360 = vmul.f32 %v354, %v358
      %v361 = vmul.f32 %v355, %v359
      %v362 = vlaneseq
      %v363 = vshrl.u32 %v362, 7
      %v364 = vsub.s32 0, %v363
      %v365 = vrot.slane %v328, %v364
      %v366 = vmul.f32 %v360, %v365
      %v367 = vmul.f32 %v361, %v365
      %v368 = vlaneseq
      %v369 = vshrl.u32 %v368, 7
      %v370 = vsub.s32 0, %v369
      %v371 = vrot.slane %v329, %v370
      %v372 = vadd.f32 %v366, %v371
      %v373 = vadd.f32 %v367, %v371
      %v374 = vpack.c.bf16 %v373, %v372
      %v376 = vunpack.c.l.b16 %v374
      %v377 = vunpack.c.h.b16 %v374
      %v378 = vpack.c.b16 %v376, %v376
      %v379 = vpack.c.b16 %v377, %v377
      %vm382 = vcmask 257024
      %383 = vst.msk [vmem:[%s145] sm:$0xf] %vm382, %v378
      %384 = vst.msk [vmem:[%s145 + $0x4] sm:$0xf] %vm382, %v379
      %s385 = smul.u32 2, %s13
      %p386 = scmp.lt.s32.totalorder %s385, 3
      %s387 = scalar_select %p386, %s385, 3
      %s388 = smul.addr %s387, 4
      %s389 = scalar_lea.vmem %s2, %s388
      // Predicated region
      $region29: #{encode_process_decode.7} parent=27 // pred_check
        %p390 = pneg %p78
      $region30: #{encode_process_decode.7} parent=27 // pred_check_branch
        %392 = sbr.rel (%p390) target = $region32
      $region31: #{encode_process_decode.7} parent=27 // pred_region
        %s393 = smul.u32 2, %s13
      $region32: #{encode_process_decode.7} parent=27 // pred_fallthru
        _
    $region28: #{encode_process_decode.7} parent=5 // pred_fallthru
      _
    %p394 = scmp.le.s32.totalorder 2, %s8
    // Predicated region
    $region33: #{encode_process_decode.7} parent=5 // pred_check
      %p395 = pneg %p394
    $region34: #{encode_process_decode.7} parent=5 // pred_check_branch
      %397 = sbr.rel (%p395) target = $region36
    $region35: #{encode_process_decode.7} parent=5 // pred_region
      %s398 = ssub.s32 %s8, 2
      // Predicated region
      $region37: #{encode_process_decode.7} parent=35 // pred_check
        %p399 = pneg %p84
      $region38: #{encode_process_decode.7} parent=35 // pred_check_branch
        %401 = sbr.rel (%p399) target = $region40
      $region39: #{encode_process_decode.7} parent=35 // pred_region
        %s402 = smul.u32 2, %s14
        %p403 = scmp.lt.s32.totalorder %s402, 3
        %s404 = scalar_select %p403, %s402, 3
        %s405 = smul.addr %s404, 4
        %s406 = scalar_lea.vmem %s2, %s405
      $region40: #{encode_process_decode.7} parent=35 // pred_fallthru
        _
    $region36: #{encode_process_decode.7} parent=5 // pred_fallthru
      _
  $region6: #{encode_process_decode.7} parent=0 // loop_footer
    %s12 = sadd.s32 1, %s8
  $region7: #{encode_process_decode.7} parent=0 // loop_footer_branch
    %7 = sbr.rel target = $region3
  $region8: #{encode_process_decode.7} parent=0 // loop_exit
    _

// kernel: encode_process_decode.9
$region0: #{encode_process_decode.9}
  #allocation0 [shape = 'u32[]', space=smem, size = 0x4, offset = 0x4, fixed_abs, tag = 'smem constant byte address 0x4 - core index']
  #allocation1 [shape = 'u32[144,128]{1,0:T(1,128)}', space=vmem, size = 0x12000, scoped, tag = 'internal scratch']
  %s0 = inlined_call_operand.vmem [shape: bf16[64,32], index: 0, kind: input, shape index: {}]
  %s1 = inlined_call_operand.vmem [shape: bf16[64,32], index: 1, kind: input, shape index: {}]
  %s2 = inlined_call_operand.vmem [shape: bf16[64,32], index: 2, kind: input, shape index: {}]
  %s3 = inlined_call_operand.vmem [shape: f32[165,32], index: 3, kind: input, shape index: {}]
  %s4 = inlined_call_operand.vmem [shape: bf16[64,32], index: 4, kind: output, shape index: {0}]
  %s5 = inlined_call_operand.vmem [shape: bf16[64,32], index: 5, kind: output, shape index: {1}]
  %6 = xla_tuple %s4, %s5
  %s7 = sld [smem:[#allocation0]]
  $region57: #{encode_process_decode.9} parent=0
    _
  %s9 = ssub.s32 1, %s7
  %s10 = scalar_select 0, %s9, %s7
  loop: start=0, step=1, limit=4
  $region2: #{encode_process_decode.9} parent=0 // loop_pre_header
    _
  $region3: #{encode_process_decode.9} parent=0 // loop_header
    %s12 = sphi 0, %s16
    %p13 = scmp.ge.s32.totalorder %s12, 4
    %s22 = sphi 0, %s24
    %s25 = sphi 0, %s22
    %s26 = sphi 0, %s25
    %s42 = sphi 0, %s26
    %s48 = sphi 0, %s50
    %s51 = sphi 0, %s48
    %s52 = sphi 0, %s51
    %s68 = sphi 0, %s52
    %s74 = sphi 0, %s76
    %s77 = sphi 0, %s74
    %s78 = sphi 0, %s77
    %s94 = sphi 0, %s78
    %s98 = sphi 0, %s98
    %s100 = sphi 0, %s98
    %s101 = sphi 0, %s100
    %s115 = sphi 0, %s101
    %s121 = sphi 0, %s123
    %s124 = sphi 0, %s121
    %s125 = sphi 0, %s124
    %s141 = sphi 0, %s125
    %s147 = sphi 0, %s149
    %s150 = sphi 0, %s147
    %s151 = sphi 0, %s150
    %s167 = sphi 0, %s151
  $region4: #{encode_process_decode.9} parent=0 // loop_header_branch
    %15 = sbr.rel (%p13) target = $region8
  $region5: #{encode_process_decode.9} parent=0 // loop_body
    %s17 = ssub.s32 %s12, 1
    %s18 = ssub.s32 %s12, 2
    %s19 = sadd.s32 %s12, 1
    %s20 = ssub.s32 %s12, %s19
    %p21 = scmp.eq.s32.totalorder %s20, 0
    %s23 = sadd.s32 %s22, 1
    %s24 = scalar_select %p21, %s22, %s23
    %p27 = pneg %p21
    %p28 = scmp.eq.s32.totalorder %s12, 1
    %p29 = por %p27, %p28
    %p30 = scmp.ne.s32.totalorder %s22, %s25
    %p31 = scmp.eq.s32.totalorder %s12, 0
    %p32 = por %p30, %p31
    %p33 = scmp.ne.s32.totalorder %s22, %s25
    %p34 = scmp.eq.s32.totalorder %s17, 1
    %p35 = por %p33, %p34
    %p36 = scmp.ne.s32.totalorder %s25, %s26
    %p37 = scmp.eq.s32.totalorder %s17, 0
    %p38 = por %p36, %p37
    %p39 = scmp.ne.s32.totalorder %s25, %s26
    %p40 = scmp.eq.s32.totalorder %s18, 1
    %p41 = por %p39, %p40
    %p43 = scmp.ne.s32.totalorder %s26, %s42
    %p44 = scmp.eq.s32.totalorder %s18, 0
    %p45 = por %p43, %p44
    %s46 = ssub.s32 %s12, %s19
    %p47 = scmp.eq.s32.totalorder %s46, 0
    %s49 = sadd.s32 %s48, 1
    %s50 = scalar_select %p47, %s48, %s49
    %p53 = pneg %p47
    %p54 = scmp.eq.s32.totalorder %s12, 1
    %p55 = por %p53, %p54
    %p56 = scmp.ne.s32.totalorder %s48, %s51
    %p57 = scmp.eq.s32.totalorder %s12, 0
    %p58 = por %p56, %p57
    %p59 = scmp.ne.s32.totalorder %s48, %s51
    %p60 = scmp.eq.s32.totalorder %s17, 1
    %p61 = por %p59, %p60
    %p62 = scmp.ne.s32.totalorder %s51, %s52
    %p63 = scmp.eq.s32.totalorder %s17, 0
    %p64 = por %p62, %p63
    %p65 = scmp.ne.s32.totalorder %s51, %s52
    %p66 = scmp.eq.s32.totalorder %s18, 1
    %p67 = por %p65, %p66
    %p69 = scmp.ne.s32.totalorder %s52, %s68
    %p70 = scmp.eq.s32.totalorder %s18, 0
    %p71 = por %p69, %p70
    %s72 = ssub.s32 %s12, %s19
    %p73 = scmp.eq.s32.totalorder %s72, 0
    %s75 = sadd.s32 %s74, 1
    %s76 = scalar_select %p73, %s74, %s75
    %p79 = pneg %p73
    %p80 = scmp.eq.s32.totalorder %s12, 1
    %p81 = por %p79, %p80
    %p82 = scmp.ne.s32.totalorder %s74, %s77
    %p83 = scmp.eq.s32.totalorder %s12, 0
    %p84 = por %p82, %p83
    %p85 = scmp.ne.s32.totalorder %s74, %s77
    %p86 = scmp.eq.s32.totalorder %s17, 1
    %p87 = por %p85, %p86
    %p88 = scmp.ne.s32.totalorder %s77, %s78
    %p89 = scmp.eq.s32.totalorder %s17, 0
    %p90 = por %p88, %p89
    %p91 = scmp.ne.s32.totalorder %s77, %s78
    %p92 = scmp.eq.s32.totalorder %s18, 1
    %p93 = por %p91, %p92
    %p95 = scmp.ne.s32.totalorder %s78, %s94
    %p96 = scmp.eq.s32.totalorder %s18, 0
    %p97 = por %p95, %p96
    %s99 = sadd.s32 %s98, 1
    %p102 = scmp.eq.s32.totalorder %s12, 1
    %p103 = scmp.ne.s32.totalorder %s98, %s100
    %p104 = scmp.eq.s32.totalorder %s12, 0
    %p105 = por %p103, %p104
    %p106 = scmp.ne.s32.totalorder %s98, %s100
    %p107 = scmp.eq.s32.totalorder %s17, 1
    %p108 = por %p106, %p107
    %p109 = scmp.ne.s32.totalorder %s100, %s101
    %p110 = scmp.eq.s32.totalorder %s17, 0
    %p111 = por %p109, %p110
    %p112 = scmp.ne.s32.totalorder %s100, %s101
    %p113 = scmp.eq.s32.totalorder %s18, 1
    %p114 = por %p112, %p113
    %p116 = scmp.ne.s32.totalorder %s101, %s115
    %p117 = scmp.eq.s32.totalorder %s18, 0
    %p118 = por %p116, %p117
    %s119 = ssub.s32 %s12, %s19
    %p120 = scmp.eq.s32.totalorder %s119, 0
    %s122 = sadd.s32 %s121, 1
    %s123 = scalar_select %p120, %s121, %s122
    %p126 = pneg %p120
    %p127 = scmp.eq.s32.totalorder %s12, 1
    %p128 = por %p126, %p127
    %p129 = scmp.ne.s32.totalorder %s121, %s124
    %p130 = scmp.eq.s32.totalorder %s12, 0
    %p131 = por %p129, %p130
    %p132 = scmp.ne.s32.totalorder %s121, %s124
    %p133 = scmp.eq.s32.totalorder %s17, 1
    %p134 = por %p132, %p133
    %p135 = scmp.ne.s32.totalorder %s124, %s125
    %p136 = scmp.eq.s32.totalorder %s17, 0
    %p137 = por %p135, %p136
    %p138 = scmp.ne.s32.totalorder %s124, %s125
    %p139 = scmp.eq.s32.totalorder %s18, 1
    %p140 = por %p138, %p139
    %p142 = scmp.ne.s32.totalorder %s125, %s141
    %p143 = scmp.eq.s32.totalorder %s18, 0
    %p144 = por %p142, %p143
    %s145 = ssub.s32 %s12, %s19
    %p146 = scmp.eq.s32.totalorder %s145, 0
    %s148 = sadd.s32 %s147, 1
    %s149 = scalar_select %p146, %s147, %s148
    %p152 = pneg %p146
    %p153 = scmp.eq.s32.totalorder %s12, 1
    %p154 = por %p152, %p153
    %p155 = scmp.ne.s32.totalorder %s147, %s150
    %p156 = scmp.eq.s32.totalorder %s12, 0
    %p157 = por %p155, %p156
    %p158 = scmp.ne.s32.totalorder %s147, %s150
    %p159 = scmp.eq.s32.totalorder %s17, 1
    %p160 = por %p158, %p159
    %p161 = scmp.ne.s32.totalorder %s150, %s151
    %p162 = scmp.eq.s32.totalorder %s17, 0
    %p163 = por %p161, %p162
    %p164 = scmp.ne.s32.totalorder %s150, %s151
    %p165 = scmp.eq.s32.totalorder %s18, 1
    %p166 = por %p164, %p165
    %p168 = scmp.ne.s32.totalorder %s151, %s167
    %p169 = scmp.eq.s32.totalorder %s18, 0
    %p170 = por %p168, %p169
    %p171 = scmp.le.s32.totalorder 1, %s12
    %p172 = scmp.lt.s32.totalorder %s12, 3
    %p173 = pnand %p171, %p172
    %p174 = pneg %p173
    // Predicated region
    $region9: #{encode_process_decode.9} parent=5 // pred_check
      _
    $region10: #{encode_process_decode.9} parent=5 // pred_check_branch
      %176 = sbr.rel (%p173) target = $region12
    $region11: #{encode_process_decode.9} parent=5 // pred_region
      %s177 = ssub.s32 %s12, 1
      // Predicated region
      $region13: #{encode_process_decode.9} parent=11 // pred_check
        %p178 = pneg %p111
      $region14: #{encode_process_decode.9} parent=11 // pred_check_branch
        %180 = sbr.rel (%p178) target = $region16
      $region15: #{encode_process_decode.9} parent=11 // pred_region
        _
      $region16: #{encode_process_decode.9} parent=11 // pred_fallthru
        _
    $region12: #{encode_process_decode.9} parent=5 // pred_fallthru
      _
    %p181 = scmp.lt.s32.totalorder %s12, 2
    // Predicated region
    $region17: #{encode_process_decode.9} parent=5 // pred_check
      %p182 = pneg %p181
    $region18: #{encode_process_decode.9} parent=5 // pred_check_branch
      %184 = sbr.rel (%p182) target = $region20
    $region19: #{encode_process_decode.9} parent=5 // pred_region
      // Predicated region
      $region21: #{encode_process_decode.9} parent=19 // pred_check
        %p185 = pneg %p32
      $region22: #{encode_process_decode.9} parent=19 // pred_check_branch
        %187 = sbr.rel (%p185) target = $region24
      $region23: #{encode_process_decode.9} parent=19 // pred_region
        %s188 = smul.u32 4, %s12
        %p189 = scmp.lt.s32.totalorder %s188, 7
        %s190 = scalar_select %p189, %s188, 7
        %s191 = smul.addr %s190, 4
        %s192 = scalar_lea.vmem %s0, %s191
        %s193 = smul.u32 4, %s12
      $region24: #{encode_process_decode.9} parent=19 // pred_fallthru
        _
      // Predicated region
      $region25: #{encode_process_decode.9} parent=19 // pred_check
        %p194 = pneg %p58
      $region26: #{encode_process_decode.9} parent=19 // pred_check_branch
        %196 = sbr.rel (%p194) target = $region28
      $region27: #{encode_process_decode.9} parent=19 // pred_region
        %s197 = smul.u32 4, %s12
        %p198 = scmp.lt.s32.totalorder %s197, 7
        %s199 = scalar_select %p198, %s197, 7
        %s200 = smul.addr %s199, 4
        %s201 = scalar_lea.vmem %s1, %s200
        %s202 = smul.u32 4, %s12
      $region28: #{encode_process_decode.9} parent=19 // pred_fallthru
        _
      // Predicated region
      $region29: #{encode_process_decode.9} parent=19 // pred_check
        %p203 = pneg %p84
      $region30: #{encode_process_decode.9} parent=19 // pred_check_branch
        %205 = sbr.rel (%p203) target = $region32
      $region31: #{encode_process_decode.9} parent=19 // pred_region
        %s206 = smul.u32 4, %s12
        %p207 = scmp.lt.s32.totalorder %s206, 7
        %s208 = scalar_select %p207, %s206, 7
        %s209 = smul.addr %s208, 4
        %s210 = scalar_lea.vmem %s2, %s209
        %s211 = smul.u32 4, %s12
      $region32: #{encode_process_decode.9} parent=19 // pred_fallthru
        _
    $region20: #{encode_process_decode.9} parent=5 // pred_fallthru
      _
    %p212 = scmp.le.s32.totalorder 1, %s12
    %p213 = scmp.lt.s32.totalorder %s12, 3
    %p214 = pnand %p212, %p213
    %p215 = pneg %p214
    // Predicated region
    $region33: #{encode_process_decode.9} parent=5 // pred_check
      _
    $region34: #{encode_process_decode.9} parent=5 // pred_check_branch
      %217 = sbr.rel (%p214) target = $region36
    $region35: #{encode_process_decode.9} parent=5 // pred_region
      %s218 = ssub.s32 %s12, 1
      %s219 = smul.u32 4, %s17
      %p220 = scmp.lt.s32.totalorder %s219, 7
      %s221 = scalar_select %p220, %s219, 7
      %s222 = smul.addr %s221, 4
      %s223 = scalar_lea.vmem %s0, %s222
      %p224 = pneg %p38
      %p225 = pneg %p35
      %s226 = smul.u32 4, %s17
      %p227 = scmp.lt.s32.totalorder %s226, 7
      %s228 = scalar_select %p227, %s226, 7
      %s229 = smul.addr %s228, 4
      %s230 = scalar_lea.vmem %s1, %s229
      %p231 = pneg %p64
      %p232 = pneg %p61
      %s233 = smul.u32 4, %s17
      %p234 = scmp.lt.s32.totalorder %s233, 7
      %s235 = scalar_select %p234, %s233, 7
      %s236 = smul.addr %s235, 4
      %s237 = scalar_lea.vmem %s2, %s236
      %p238 = pneg %p90
      %p239 = pneg %p87
      %p240 = pneg %p111
      %p241 = pneg %p108
      %p242 = pneg %p137
      %p243 = pneg %p134
      %s244 = smul.u32 4, %s17
      %p245 = scmp.lt.s32.totalorder %s244, 7
      %s246 = scalar_select %p245, %s244, 7
      %s247 = smul.addr %s246, 4
      %s248 = scalar_lea.vmem %s4, %s247
      %p249 = pneg %p163
      %p250 = pneg %p160
      %s251 = smul.u32 4, %s17
      %p252 = scmp.lt.s32.totalorder %s251, 7
      %s253 = scalar_select %p252, %s251, 7
      %s254 = smul.addr %s253, 4
      %s255 = scalar_lea.vmem %s5, %s254
      %s256 = smul.u32 4, %s17
      %p257 = scmp.lt.s32.totalorder %s256, 7
      %s258 = scalar_select %p257, %s256, 7
      %s259 = smul.addr %s258, 4
      %s260 = scalar_lea.vmem %s0, %s259
      %s261 = smul.u32 4, %s17
      %s262 = smul.u32 4, %s17
      %p263 = scmp.lt.s32.totalorder %s262, 7
      %s264 = scalar_select %p263, %s262, 7
      %s265 = smul.addr %s264, 4
      %s266 = scalar_lea.vmem %s1, %s265
      %s267 = smul.u32 4, %s17
      %s268 = smul.u32 4, %s17
      %p269 = scmp.lt.s32.totalorder %s268, 7
      %s270 = scalar_select %p269, %s268, 7
      %s271 = smul.addr %s270, 4
      %s272 = scalar_lea.vmem %s2, %s271
      %s273 = smul.u32 4, %s17
      %s274 = smul.u32 4, %s17
      %p275 = scmp.lt.s32.totalorder %s274, 7
      %s276 = scalar_select %p275, %s274, 7
      %s277 = smul.addr %s276, 4
      %s278 = scalar_lea.vmem %s4, %s277
      %s279 = smul.u32 4, %s17
      %s280 = smul.u32 4, %s17
      %p281 = scmp.lt.s32.totalorder %s280, 7
      %s282 = scalar_select %p281, %s280, 7
      %s283 = smul.addr %s282, 4
      %s284 = scalar_lea.vmem %s5, %s283
      %s285 = smul.u32 4, %s17
      %v287 = vld [vmem:[%s260] sm:$0xf]
      %v288 = vld [vmem:[%s260 + $0x4] sm:$0xf]
      %v289 = vld [vmem:[%s260 + $0x8] sm:$0xf]
      %v290 = vld [vmem:[%s260 + $0xc] sm:$0xf]
      %v291 = vld [vmem:[%s3] sm:$0xff]
      %v292 = vld [vmem:[%s3 + $0x8] sm:$0xff]
      %v293 = vld [vmem:[%s3 + $0x10] sm:$0xff]
      %v294 = vld [vmem:[%s3 + $0x18] sm:$0xff]
      %v295 = vpack.c.bf16 %v292, %v291
      %v296 = vpack.c.bf16 %v294, %v293
      %v297 = vld [vmem:[%s266] sm:$0xf]
      %v298 = vld [vmem:[%s266 + $0x4] sm:$0xf]
      %v299 = vld [vmem:[%s266 + $0x8] sm:$0xf]
      %v300 = vld [vmem:[%s266 + $0xc] sm:$0xf]
      %v301 = vld [vmem:[%s3 + $0x20] sm:$0xff]
      %v302 = vld [vmem:[%s3 + $0x28] sm:$0xff]
      %v303 = vld [vmem:[%s3 + $0x30] sm:$0xff]
      %v304 = vld [vmem:[%s3 + $0x38] sm:$0xff]
      %v305 = vpack.c.bf16 %v302, %v301
      %v306 = vpack.c.bf16 %v304, %v303
      %v311 = vunpack.c.l.b16 %v297
      %v312 = vunpack.c.l.b16 %v298
      %v313 = vunpack.c.l.b16 %v299
      %v314 = vunpack.c.l.b16 %v300
      %v315 = vpack.c.b16 %v312, %v311
      %v316 = vpack.c.b16 %v314, %v313
      %vm317 = vcmask 261120
      %v319 = vsel %vm317, %v315, 0
      %v322 = vsel %vm317, %v316, 0
      %324 = vmatprep.subr.bf16.mxu0 0
      %325 = vmatpush1.bf16.msra.mxu0 %v305
      %326 = vmatprep.subr.bf16.mxu0 0
      %327 = vmatpush1.bf16.msra.mxu0 %v306
      %328 = vmatprep.subr.bf16.mxu0 0
      %329 = vmatpush1.bf16.msra.mxu0 0
      %330 = vmatprep.subr.bf16.mxu0 0
      %331 = vmatpush1.bf16.msra.mxu0 0
      %332 = vmatprep.subr.bf16.mxu0 0
      %333 = vmatpush1.bf16.msra.mxu0 0
      %334 = vmatprep.subr.bf16.mxu0 0
      %335 = vmatpush1.bf16.msra.mxu0 0
      %336 = vmatprep.subr.bf16.mxu0 0
      %337 = vmatpush1.bf16.msra.mxu0 0
      %338 = vmatprep.subr.bf16.mxu0 0
      %339 = vmatpush1.bf16.msra.mxu0 0
      %340 = vmatprep.subr.bf16.mxu0 0
      %341 = vmatpush1.bf16.msra.mxu0 0
      %342 = vmatprep.subr.bf16.mxu0 0
      %343 = vmatpush1.bf16.msra.mxu0 0
      %344 = vmatprep.subr.bf16.mxu0 0
      %345 = vmatpush1.bf16.msra.mxu0 0
      %346 = vmatprep.subr.bf16.mxu0 0
      %347 = vmatpush1.bf16.msra.mxu0 0
      %348 = vmatprep.subr.bf16.mxu0 0
      %349 = vmatpush1.bf16.msra.mxu0 0
      %350 = vmatprep.subr.bf16.mxu0 0
      %351 = vmatpush1.bf16.msra.mxu0 0
      %352 = vmatprep.subr.bf16.mxu0 0
      %353 = vmatpush1.bf16.msra.mxu0 0
      %354 = vmatprep.subr.bf16.mxu0 0
      %355 = vmatpush1.bf16.msra.mxu0 0
      %356 = vmatprep.mubr.bf16.mxu0 0
      %357 = vmatmul.mubr.bf16.gmra.mrb[0].mxu0 %v319
      %v358 = vpop.f32.mrb[0].mxu0
      %v359 = vadd.f32 0.0, %v358
      %v360 = vpop.f32.mrb[0].mxu0
      %v361 = vpop.f32.mrb[0].mxu0
      %v362 = vadd.f32 0.0, %v361
      %v363 = vpop.f32.mrb[0].mxu0
      %364 = vmatprep.mubr.bf16.mxu0 0
      %365 = vmatmul.mubr.bf16.gmra.mrb[0].mxu0 %v322
      %v366 = vpop.f32.mrb[0].mxu0
      %v367 = vadd.f32 0.0, %v366
      %v368 = vpop.f32.mrb[0].mxu0
      %v369 = vpop.f32.mrb[0].mxu0
      %v370 = vadd.f32 0.0, %v369
      %v371 = vpop.f32.mrb[0].mxu0
      %372 = vdwg.mxu0
      %v377 = vunpack.c.l.b16 %v287
      %v378 = vunpack.c.l.b16 %v288
      %v379 = vunpack.c.l.b16 %v289
      %v380 = vunpack.c.l.b16 %v290
      %v381 = vpack.c.b16 %v378, %v377
      %v382 = vpack.c.b16 %v380, %v379
      %v384 = vsel %vm317, %v381, 0
      %v387 = vsel %vm317, %v382, 0
      %389 = vmatprep.subr.bf16.mxu0 0
      %390 = vmatpush1.bf16.msra.mxu0 %v295
      %391 = vmatprep.subr.bf16.mxu0 0
      %392 = vmatpush1.bf16.msra.mxu0 %v296
      %393 = vmatprep.subr.bf16.mxu0 0
      %394 = vmatpush1.bf16.msra.mxu0 0
      %395 = vmatprep.subr.bf16.mxu0 0
      %396 = vmatpush1.bf16.msra.mxu0 0
      %397 = vmatprep.subr.bf16.mxu0 0
      %398 = vmatpush1.bf16.msra.mxu0 0
      %399 = vmatprep.subr.bf16.mxu0 0
      %400 = vmatpush1.bf16.msra.mxu0 0
      %401 = vmatprep.subr.bf16.mxu0 0
      %402 = vmatpush1.bf16.msra.mxu0 0
      %403 = vmatprep.subr.bf16.mxu0 0
      %404 = vmatpush1.bf16.msra.mxu0 0
      %405 = vmatprep.subr.bf16.mxu0 0
      %406 = vmatpush1.bf16.msra.mxu0 0
      %407 = vmatprep.subr.bf16.mxu0 0
      %408 = vmatpush1.bf16.msra.mxu0 0
      %409 = vmatprep.subr.bf16.mxu0 0
      %410 = vmatpush1.bf16.msra.mxu0 0
      %411 = vmatprep.subr.bf16.mxu0 0
      %412 = vmatpush1.bf16.msra.mxu0 0
      %413 = vmatprep.subr.bf16.mxu0 0
      %414 = vmatpush1.bf16.msra.mxu0 0
      %415 = vmatprep.subr.bf16.mxu0 0
      %416 = vmatpush1.bf16.msra.mxu0 0
      %417 = vmatprep.subr.bf16.mxu0 0
      %418 = vmatpush1.bf16.msra.mxu0 0
      %419 = vmatprep.subr.bf16.mxu0 0
      %420 = vmatpush1.bf16.msra.mxu0 0
      %421 = vmatprep.mubr.bf16.mxu0 0
      %422 = vmatmul.mubr.bf16.gmra.mrb[0].mxu0 %v384
      %v423 = vpop.f32.mrb[0].mxu0
      %v424 = vadd.f32 %v359, %v423
      %v425 = vpop.f32.mrb[0].mxu0
      %v426 = vpop.f32.mrb[0].mxu0
      %v427 = vadd.f32 %v362, %v426
      %v428 = vpop.f32.mrb[0].mxu0
      %429 = vmatprep.mubr.bf16.mxu0 0
      %430 = vmatmul.mubr.bf16.gmra.mrb[0].mxu0 %v387
      %v431 = vpop.f32.mrb[0].mxu0
      %v432 = vadd.f32 %v367, %v431
      %v433 = vpop.f32.mrb[0].mxu0
      %v434 = vpop.f32.mrb[0].mxu0
      %v435 = vadd.f32 %v370, %v434
      %v436 = vpop.f32.mrb[0].mxu0
      %437 = vdwg.mxu0
      %v438 = vld [vmem:[%s272] sm:$0xf]
      %v439 = vld [vmem:[%s272 + $0x4] sm:$0xf]
      %v440 = vld [vmem:[%s272 + $0x8] sm:$0xf]
      %v441 = vld [vmem:[%s272 + $0xc] sm:$0xf]
      %v442 = vld [vmem:[%s3 + $0x40] sm:$0xff]
      %v443 = vld [vmem:[%s3 + $0x48] sm:$0xff]
      %v444 = vld [vmem:[%s3 + $0x50] sm:$0xff]
      %v445 = vld [vmem:[%s3 + $0x58] sm:$0xff]
      %v446 = vpack.c.bf16 %v443, %v442
      %v447 = vpack.c.bf16 %v445, %v444
      %v452 = vunpack.c.l.b16 %v438
      %v453 = vunpack.c.l.b16 %v439
      %v454 = vunpack.c.l.b16 %v440
      %v455 = vunpack.c.l.b16 %v441
      %v456 = vpack.c.b16 %v453, %v452
      %v457 = vpack.c.b16 %v455, %v454
      %v459 = vsel %vm317, %v456, 0
      %v462 = vsel %vm317, %v457, 0
      %464 = vmatprep.subr.bf16.mxu0 0
      %465 = vmatpush1.bf16.msra.mxu0 %v446
      %466 = vmatprep.subr.bf16.mxu0 0
      %467 = vmatpush1.bf16.msra.mxu0 %v447
      %468 = vmatprep.subr.bf16.mxu0 0
      %469 = vmatpush1.bf16.msra.mxu0 0
      %470 = vmatprep.subr.bf16.mxu0 0
      %471 = vmatpush1.bf16.msra.mxu0 0
      %472 = vmatprep.subr.bf16.mxu0 0
      %473 = vmatpush1.bf16.msra.mxu0 0
      %474 = vmatprep.subr.bf16.mxu0 0
      %475 = vmatpush1.bf16.msra.mxu0 0
      %476 = vmatprep.subr.bf16.mxu0 0
      %477 = vmatpush1.bf16.msra.mxu0 0
      %478 = vmatprep.subr.bf16.mxu0 0
      %479 = vmatpush1.bf16.msra.mxu0 0
      %480 = vmatprep.subr.bf16.mxu0 0
      %481 = vmatpush1.bf16.msra.mxu0 0
      %482 = vmatprep.subr.bf16.mxu0 0
      %483 = vmatpush1.bf16.msra.mxu0 0
      %484 = vmatprep.subr.bf16.mxu0 0
      %485 = vmatpush1.bf16.msra.mxu0 0
      %486 = vmatprep.subr.bf16.mxu0 0
      %487 = vmatpush1.bf16.msra.mxu0 0
      %488 = vmatprep.subr.bf16.mxu0 0
      %489 = vmatpush1.bf16.msra.mxu0 0
      %490 = vmatprep.subr.bf16.mxu0 0
      %491 = vmatpush1.bf16.msra.mxu0 0
      %492 = vmatprep.subr.bf16.mxu0 0
      %493 = vmatpush1.bf16.msra.mxu0 0
      %494 = vmatprep.subr.bf16.mxu0 0
      %495 = vmatpush1.bf16.msra.mxu0 0
      %496 = vmatprep.mubr.bf16.mxu0 0
      %497 = vmatmul.mubr.bf16.gmra.mrb[0].mxu0 %v459
      %v498 = vpop.f32.mrb[0].mxu0
      %v499 = vadd.f32 0.0, %v498
      %v500 = vpop.f32.mrb[0].mxu0
      %v501 = vpop.f32.mrb[0].mxu0
      %v502 = vadd.f32 0.0, %v501
      %v503 = vpop.f32.mrb[0].mxu0
      %504 = vmatprep.mubr.bf16.mxu0 0
      %505 = vmatmul.mubr.bf16.gmra.mrb[0].mxu0 %v462
      %v506 = vpop.f32.mrb[0].mxu0
      %v507 = vadd.f32 0.0, %v506
      %v508 = vpop.f32.mrb[0].mxu0
      %v509 = vpop.f32.mrb[0].mxu0
      %v510 = vadd.f32 0.0, %v509
      %v511 = vpop.f32.mrb[0].mxu0
      %512 = vdwg.mxu0
      %v513 = vadd.f32 %v424, %v499
      %v514 = vadd.f32 %v427, %v502
      %v515 = vadd.f32 %v432, %v507
      %v516 = vadd.f32 %v435, %v510
      %v517 = vld [vmem:[%s3 + $0x60] sm:$0x1]
      %v518 = vlaneseq
      %v519 = vshrl.u32 %v518, 7
      %v520 = vsub.s32 0, %v519
      %v521 = vrot.slane %v517, %v520
      %v522 = vadd.f32 %v513, %v521
      %v523 = vadd.f32 %v514, %v521
      %v524 = vadd.f32 %v515, %v521
      %v525 = vadd.f32 %v516, %v521
      %v526 = vmax.f32 %v522, 0.0
      %v527 = vmax.f32 %v523, 0.0
      %v528 = vmax.f32 %v524, 0.0
      %v529 = vmax.f32 %v525, 0.0
      %v530 = vld [vmem:[%s3 + $0x61] sm:$0xff]
      %v531 = vld [vmem:[%s3 + $0x69] sm:$0xff]
      %v532 = vld [vmem:[%s3 + $0x71] sm:$0xff]
      %v533 = vld [vmem:[%s3 + $0x79] sm:$0xff]
      %v534 = vpack.c.bf16 %v531, %v530
      %v535 = vpack.c.bf16 %v533, %v532
      %v536 = vld [vmem:[%s3 + $0x81] sm:$0x1]
      %v537 = vpack.c.bf16 %v527, %v526
      %v538 = vpack.c.bf16 %v529, %v528
      %v539 = vlaneseq
      %v540 = vshrl.u32 %v539, 7
      %v541 = vsub.s32 0, %v540
      %v542 = vrot.slane %v536, %v541
      %v544 = vsel %vm317, %v537, 0
      %v547 = vsel %vm317, %v538, 0
      %549 = vmatprep.subr.bf16.mxu0 0
      %550 = vmatpush1.bf16.msra.mxu0 %v534
      %551 = vmatprep.subr.bf16.mxu0 0
      %552 = vmatpush1.bf16.msra.mxu0 %v535
      %553 = vmatprep.subr.bf16.mxu0 0
      %554 = vmatpush1.bf16.msra.mxu0 0
      %555 = vmatprep.subr.bf16.mxu0 0
      %556 = vmatpush1.bf16.msra.mxu0 0
      %557 = vmatprep.subr.bf16.mxu0 0
      %558 = vmatpush1.bf16.msra.mxu0 0
      %559 = vmatprep.subr.bf16.mxu0 0
      %560 = vmatpush1.bf16.msra.mxu0 0
      %561 = vmatprep.subr.bf16.mxu0 0
      %562 = vmatpush1.bf16.msra.mxu0 0
      %563 = vmatprep.subr.bf16.mxu0 0
      %564 = vmatpush1.bf16.msra.mxu0 0
      %565 = vmatprep.subr.bf16.mxu0 0
      %566 = vmatpush1.bf16.msra.mxu0 0
      %567 = vmatprep.subr.bf16.mxu0 0
      %568 = vmatpush1.bf16.msra.mxu0 0
      %569 = vmatprep.subr.bf16.mxu0 0
      %570 = vmatpush1.bf16.msra.mxu0 0
      %571 = vmatprep.subr.bf16.mxu0 0
      %572 = vmatpush1.bf16.msra.mxu0 0
      %573 = vmatprep.subr.bf16.mxu0 0
      %574 = vmatpush1.bf16.msra.mxu0 0
      %575 = vmatprep.subr.bf16.mxu0 0
      %576 = vmatpush1.bf16.msra.mxu0 0
      %577 = vmatprep.subr.bf16.mxu0 0
      %578 = vmatpush1.bf16.msra.mxu0 0
      %579 = vmatprep.subr.bf16.mxu0 0
      %580 = vmatpush1.bf16.msra.mxu0 0
      %581 = vmatprep.mubr.bf16.mxu0 0
      %582 = vmatmul.mubr.bf16.gmra.mrb[0].mxu0 %v544
      %v583 = vpop.f32.mrb[0].mxu0
      %v584 = vadd.f32 %v542, %v583
      %v585 = vpop.f32.mrb[0].mxu0
      %v586 = vpop.f32.mrb[0].mxu0
      %v587 = vadd.f32 %v542, %v586
      %v588 = vpop.f32.mrb[0].mxu0
      %589 = vmatprep.mubr.bf16.mxu0 0
      %590 = vmatmul.mubr.bf16.gmra.mrb[0].mxu0 %v547
      %v591 = vpop.f32.mrb[0].mxu0
      %v592 = vadd.f32 %v542, %v591
      %v593 = vpop.f32.mrb[0].mxu0
      %v594 = vpop.f32.mrb[0].mxu0
      %v595 = vadd.f32 %v542, %v594
      %v596 = vpop.f32.mrb[0].mxu0
      %597 = vdwg.mxu0
      %v598 = vmax.f32 %v584, 0.0
      %v599 = vmax.f32 %v587, 0.0
      %v600 = vmax.f32 %v592, 0.0
      %v601 = vmax.f32 %v595, 0.0
      %v602 = vld [vmem:[%s3 + $0x82] sm:$0xff]
      %v603 = vld [vmem:[%s3 + $0x8a] sm:$0xff]
      %v604 = vld [vmem:[%s3 + $0x92] sm:$0xff]
      %v605 = vld [vmem:[%s3 + $0x9a] sm:$0xff]
      %v606 = vpack.c.bf16 %v603, %v602
      %v607 = vpack.c.bf16 %v605, %v604
      %v608 = vld [vmem:[%s3 + $0xa2] sm:$0x1]
      %v609 = vpack.c.bf16 %v599, %v598
      %v610 = vpack.c.bf16 %v601, %v600
      %v611 = vlaneseq
      %v612 = vshrl.u32 %v611, 7
      %v613 = vsub.s32 0, %v612
      %v614 = vrot.slane %v608, %v613
      %v616 = vsel %vm317, %v609, 0
      %v619 = vsel %vm317, %v610, 0
      %621 = vmatprep.subr.bf16.mxu0 0
      %622 = vmatpush1.bf16.msra.mxu0 %v606
      %623 = vmatprep.subr.bf16.mxu0 0
      %624 = vmatpush1.bf16.msra.mxu0 %v607
      %625 = vmatprep.subr.bf16.mxu0 0
      %626 = vmatpush1.bf16.msra.mxu0 0
      %627 = vmatprep.subr.bf16.mxu0 0
      %628 = vmatpush1.bf16.msra.mxu0 0
      %629 = vmatprep.subr.bf16.mxu0 0
      %630 = vmatpush1.bf16.msra.mxu0 0
      %631 = vmatprep.subr.bf16.mxu0 0
      %632 = vmatpush1.bf16.msra.mxu0 0
      %633 = vmatprep.subr.bf16.mxu0 0
      %634 = vmatpush1.bf16.msra.mxu0 0
      %635 = vmatprep.subr.bf16.mxu0 0
      %636 = vmatpush1.bf16.msra.mxu0 0
      %637 = vmatprep.subr.bf16.mxu0 0
      %638 = vmatpush1.bf16.msra.mxu0 0
      %639 = vmatprep.subr.bf16.mxu0 0
      %640 = vmatpush1.bf16.msra.mxu0 0
      %641 = vmatprep.subr.bf16.mxu0 0
      %642 = vmatpush1.bf16.msra.mxu0 0
      %643 = vmatprep.subr.bf16.mxu0 0
      %644 = vmatpush1.bf16.msra.mxu0 0
      %645 = vmatprep.subr.bf16.mxu0 0
      %646 = vmatpush1.bf16.msra.mxu0 0
      %647 = vmatprep.subr.bf16.mxu0 0
      %648 = vmatpush1.bf16.msra.mxu0 0
      %649 = vmatprep.subr.bf16.mxu0 0
      %650 = vmatpush1.bf16.msra.mxu0 0
      %651 = vmatprep.subr.bf16.mxu0 0
      %652 = vmatpush1.bf16.msra.mxu0 0
      %653 = vmatprep.mubr.bf16.mxu0 0
      %654 = vmatmul.mubr.bf16.gmra.mrb[0].mxu0 %v616
      %v655 = vpop.f32.mrb[0].mxu0
      %v656 = vadd.f32 %v614, %v655
      %v657 = vpop.f32.mrb[0].mxu0
      %v658 = vpop.f32.mrb[0].mxu0
      %v659 = vadd.f32 %v614, %v658
      %v660 = vpop.f32.mrb[0].mxu0
      %661 = vmatprep.mubr.bf16.mxu0 0
      %662 = vmatmul.mubr.bf16.gmra.mrb[0].mxu0 %v619
      %v663 = vpop.f32.mrb[0].mxu0
      %v664 = vadd.f32 %v614, %v663
      %v665 = vpop.f32.mrb[0].mxu0
      %v666 = vpop.f32.mrb[0].mxu0
      %v667 = vadd.f32 %v614, %v666
      %v668 = vpop.f32.mrb[0].mxu0
      %669 = vdwg.mxu0
      %v670 = vld [vmem:[%s3 + $0xa3] sm:$0x1]
      %v671 = vld [vmem:[%s3 + $0xa4] sm:$0x1]
      %v672 = vsel %vm317, %v656, 0.0
      %673 = vadd.xlane.f32.xlu0 %v672
      %v674 = vpop.xlane.xlu0 %673
      %v675 = vsel %vm317, %v659, 0.0
      %676 = vadd.xlane.f32.xlu0 %v675
      %v677 = vpop.xlane.xlu0 %676
      %v678 = vsel %vm317, %v664, 0.0
      %679 = vadd.xlane.f32.xlu0 %v678
      %v680 = vpop.xlane.xlu0 %679
      %v681 = vsel %vm317, %v667, 0.0
      %682 = vadd.xlane.f32.xlu0 %v681
      %v683 = vpop.xlane.xlu0 %682
      %v684 = vmul.f32 %v674, 0.03125
      %v685 = vmul.f32 %v677, 0.03125
      %v686 = vmul.f32 %v680, 0.03125
      %v687 = vmul.f32 %v683, 0.03125
      %v688 = vmul.f32 %v656, %v656
      %v689 = vmul.f32 %v659, %v659
      %v690 = vmul.f32 %v664, %v664
      %v691 = vmul.f32 %v667, %v667
      %v692 = vsel %vm317, %v688, 0.0
      %693 = vadd.xlane.f32.xlu0 %v692
      %v694 = vpop.xlane.xlu0 %693
      %v695 = vsel %vm317, %v689, 0.0
      %696 = vadd.xlane.f32.xlu0 %v695
      %v697 = vpop.xlane.xlu0 %696
      %v698 = vsel %vm317, %v690, 0.0
      %699 = vadd.xlane.f32.xlu0 %v698
      %v700 = vpop.xlane.xlu0 %699
      %v701 = vsel %vm317, %v691, 0.0
      %702 = vadd.xlane.f32.xlu0 %v701
      %v703 = vpop.xlane.xlu0 %702
      %v704 = vmul.f32 %v694, 0.03125
      %v705 = vmul.f32 %v697, 0.03125
      %v706 = vmul.f32 %v700, 0.03125
      %v707 = vmul.f32 %v703, 0.03125
      %v708 = vmul.f32 %v684, %v684
      %v709 = vmul.f32 %v685, %v685
      %v710 = vmul.f32 %v686, %v686
      %v711 = vmul.f32 %v687, %v687
      %v712 = vsub.f32 %v704, %v708
      %v713 = vsub.f32 %v705, %v709
      %v714 = vsub.f32 %v706, %v710
      %v715 = vsub.f32 %v707, %v711
      %v716 = vmax.f32 %v712, 0.0
      %v717 = vmax.f32 %v713, 0.0
      %v718 = vmax.f32 %v714, 0.0
      %v719 = vmax.f32 %v715, 0.0
      %v720 = vsub.f32 %v656, %v684
      %v721 = vsub.f32 %v659, %v685
      %v722 = vsub.f32 %v664, %v686
      %v723 = vsub.f32 %v667, %v687
      %v724 = vadd.f32 %v716, 1e-05
      %v725 = vadd.f32 %v717, 1e-05
      %v726 = vadd.f32 %v718, 1e-05
      %v727 = vadd.f32 %v719, 1e-05
      %v728 = vrsqrt.pop %v724
      %v729 = vrsqrt.pop %v725
      %v730 = vrsqrt.pop %v726
      %v731 = vrsqrt.pop %v727
      %v732 = vmul.f32 %v720, %v728
      %v733 = vmul.f32 %v721, %v729
      %v734 = vmul.f32 %v722, %v730
      %v735 = vmul.f32 %v723, %v731
      %v736 = vlaneseq
      %v737 = vshrl.u32 %v736, 7
      %v738 = vsub.s32 0, %v737
      %v739 = vrot.slane %v670, %v738
      %v740 = vmul.f32 %v732, %v739
      %v741 = vmul.f32 %v733, %v739
      %v742 = vmul.f32 %v734, %v739
      %v743 = vmul.f32 %v735, %v739
      %v744 = vlaneseq
      %v745 = vshrl.u32 %v744, 7
      %v746 = vsub.s32 0, %v745
      %v747 = vrot.slane %v671, %v746
      %v748 = vadd.f32 %v740, %v747
      %v749 = vadd.f32 %v741, %v747
      %v750 = vadd.f32 %v742, %v747
      %v751 = vadd.f32 %v743, %v747
      %v752 = vunpack.c.l.bf16 %v438
      %v753 = vunpack.c.l.bf16 %v439
      %v754 = vunpack.c.l.bf16 %v440
      %v755 = vunpack.c.l.bf16 %v441
      %v756 = vpack.c.bf16 %v749, %v748
      %v757 = vpack.c.bf16 %v751, %v750
      %v760 = vunpack.c.l.b16 %v756
      %v761 = vunpack.c.h.b16 %v756
      %v762 = vunpack.c.l.b16 %v757
      %v763 = vunpack.c.h.b16 %v757
      %v764 = vpack.c.b16 %v760, %v760
      %v765 = vpack.c.b16 %v761, %v761
      %v766 = vpack.c.b16 %v762, %v762
      %v767 = vpack.c.b16 %v763, %v763
      %vm772 = vcmask 257024
      %773 = vst.msk [vmem:[%s278] sm:$0xf] %vm772, %v764
      %774 = vst.msk [vmem:[%s278 + $0x4] sm:$0xf] %vm772, %v765
      %775 = vst.msk [vmem:[%s278 + $0x8] sm:$0xf] %vm772, %v766
      %776 = vst.msk [vmem:[%s278 + $0xc] sm:$0xf] %vm772, %v767
      %v777 = vadd.f32 %v748, %v752
      %v778 = vadd.f32 %v749, %v753
      %v779 = vadd.f32 %v750, %v754
      %v780 = vadd.f32 %v751, %v755
      %v781 = vpack.c.bf16 %v778, %v777
      %v782 = vpack.c.bf16 %v780, %v779
      %v785 = vunpack.c.l.b16 %v781
      %v786 = vunpack.c.h.b16 %v781
      %v787 = vunpack.c.l.b16 %v782
      %v788 = vunpack.c.h.b16 %v782
      %v789 = vpack.c.b16 %v785, %v785
      %v790 = vpack.c.b16 %v786, %v786
      %v791 = vpack.c.b16 %v787, %v787
      %v792 = vpack.c.b16 %v788, %v788
      %797 = vst.msk [vmem:[%s284] sm:$0xf] %vm772, %v789
      %798 = vst.msk [vmem:[%s284 + $0x4] sm:$0xf] %vm772, %v790
      %799 = vst.msk [vmem:[%s284 + $0x8] sm:$0xf] %vm772, %v791
      %800 = vst.msk [vmem:[%s284 + $0xc] sm:$0xf] %vm772, %v792
      %s801 = smul.u32 4, %s17
      %p802 = scmp.lt.s32.totalorder %s801, 7
      %s803 = scalar_select %p802, %s801, 7
      %s804 = smul.addr %s803, 4
      %s805 = scalar_lea.vmem %s4, %s804
      %s806 = smul.u32 4, %s17
      %p807 = scmp.lt.s32.totalorder %s806, 7
      %s808 = scalar_select %p807, %s806, 7
      %s809 = smul.addr %s808, 4
      %s810 = scalar_lea.vmem %s5, %s809
      // Predicated region
      $region37: #{encode_process_decode.9} parent=35 // pred_check
        %p811 = pneg %p134
      $region38: #{encode_process_decode.9} parent=35 // pred_check_branch
        %813 = sbr.rel (%p811) target = $region40
      $region39: #{encode_process_decode.9} parent=35 // pred_region
        %s814 = smul.u32 4, %s17
      $region40: #{encode_process_decode.9} parent=35 // pred_fallthru
        _
      // Predicated region
      $region41: #{encode_process_decode.9} parent=35 // pred_check
        %p815 = pneg %p160
      $region42: #{encode_process_decode.9} parent=35 // pred_check_branch
        %817 = sbr.rel (%p815) target = $region44
      $region43: #{encode_process_decode.9} parent=35 // pred_region
        %s818 = smul.u32 4, %s17
      $region44: #{encode_process_decode.9} parent=35 // pred_fallthru
        _
    $region36: #{encode_process_decode.9} parent=5 // pred_fallthru
      _
    %p819 = scmp.le.s32.totalorder 2, %s12
    // Predicated region
    $region45: #{encode_process_decode.9} parent=5 // pred_check
      %p820 = pneg %p819
    $region46: #{encode_process_decode.9} parent=5 // pred_check_branch
      %822 = sbr.rel (%p820) target = $region48
    $region47: #{encode_process_decode.9} parent=5 // pred_region
      %s823 = ssub.s32 %s12, 2
      // Predicated region
      $region49: #{encode_process_decode.9} parent=47 // pred_check
        %p824 = pneg %p140
      $region50: #{encode_process_decode.9} parent=47 // pred_check_branch
        %826 = sbr.rel (%p824) target = $region52
      $region51: #{encode_process_decode.9} parent=47 // pred_region
        %s827 = smul.u32 4, %s18
        %p828 = scmp.lt.s32.totalorder %s827, 7
        %s829 = scalar_select %p828, %s827, 7
        %s830 = smul.addr %s829, 4
        %s831 = scalar_lea.vmem %s4, %s830
      $region52: #{encode_process_decode.9} parent=47 // pred_fallthru
        _
      // Predicated region
      $region53: #{encode_process_decode.9} parent=47 // pred_check
        %p832 = pneg %p166
      $region54: #{encode_process_decode.9} parent=47 // pred_check_branch
        %834 = sbr.rel (%p832) target = $region56
      $region55: #{encode_process_decode.9} parent=47 // pred_region
        %s835 = smul.u32 4, %s18
        %p836 = scmp.lt.s32.totalorder %s835, 7
        %s837 = scalar_select %p836, %s835, 7
        %s838 = smul.addr %s837, 4
        %s839 = scalar_lea.vmem %s5, %s838
      $region56: #{encode_process_decode.9} parent=47 // pred_fallthru
        _
    $region48: #{encode_process_decode.9} parent=5 // pred_fallthru
      _
  $region6: #{encode_process_decode.9} parent=0 // loop_footer
    %s16 = sadd.s32 1, %s12
  $region7: #{encode_process_decode.9} parent=0 // loop_footer_branch
    %11 = sbr.rel target = $region3
  $region8: #{encode_process_decode.9} parent=0 // loop_exit
    _

// kernel: encode_process_decode.10
$region0: #{encode_process_decode.10}
  #allocation0 [shape = 'u32[]', space=smem, size = 0x4, offset = 0x4, fixed_abs, tag = 'smem constant byte address 0x4 - core index']
  #allocation1 [shape = 'u32[144,128]{1,0:T(1,128)}', space=vmem, size = 0x12000, scoped, tag = 'internal scratch']
  %s0 = inlined_call_operand.vmem [shape: bf16[32,32], index: 0, kind: input, shape index: {}]
  %s1 = inlined_call_operand.vmem [shape: f32[32,32], index: 1, kind: input, shape index: {}]
  %s2 = inlined_call_operand.vmem [shape: f32[133,32], index: 2, kind: input, shape index: {}]
  %s3 = inlined_call_operand.vmem [shape: bf16[32,32], index: 3, kind: output, shape index: {}]
  %s4 = sld [smem:[#allocation0]]
  $region45: #{encode_process_decode.10} parent=0
    _
  %s6 = ssub.s32 1, %s4
  %s7 = scalar_select 0, %s6, %s4
  loop: start=0, step=1, limit=4
  $region2: #{encode_process_decode.10} parent=0 // loop_pre_header
    _
  $region3: #{encode_process_decode.10} parent=0 // loop_header
    %s9 = sphi 0, %s13
    %p10 = scmp.ge.s32.totalorder %s9, 4
    %s19 = sphi 0, %s21
    %s22 = sphi 0, %s19
    %s23 = sphi 0, %s22
    %s39 = sphi 0, %s23
    %s45 = sphi 0, %s47
    %s48 = sphi 0, %s45
    %s49 = sphi 0, %s48
    %s65 = sphi 0, %s49
    %s69 = sphi 0, %s69
    %s71 = sphi 0, %s69
    %s72 = sphi 0, %s71
    %s86 = sphi 0, %s72
    %s92 = sphi 0, %s94
    %s95 = sphi 0, %s92
    %s96 = sphi 0, %s95
    %s112 = sphi 0, %s96
  $region4: #{encode_process_decode.10} parent=0 // loop_header_branch
    %12 = sbr.rel (%p10) target = $region8
  $region5: #{encode_process_decode.10} parent=0 // loop_body
    %s14 = ssub.s32 %s9, 1
    %s15 = ssub.s32 %s9, 2
    %s16 = sadd.s32 %s9, 1
    %s17 = ssub.s32 %s9, %s16
    %p18 = scmp.eq.s32.totalorder %s17, 0
    %s20 = sadd.s32 %s19, 1
    %s21 = scalar_select %p18, %s19, %s20
    %p24 = pneg %p18
    %p25 = scmp.eq.s32.totalorder %s9, 1
    %p26 = por %p24, %p25
    %p27 = scmp.ne.s32.totalorder %s19, %s22
    %p28 = scmp.eq.s32.totalorder %s9, 0
    %p29 = por %p27, %p28
    %p30 = scmp.ne.s32.totalorder %s19, %s22
    %p31 = scmp.eq.s32.totalorder %s14, 1
    %p32 = por %p30, %p31
    %p33 = scmp.ne.s32.totalorder %s22, %s23
    %p34 = scmp.eq.s32.totalorder %s14, 0
    %p35 = por %p33, %p34
    %p36 = scmp.ne.s32.totalorder %s22, %s23
    %p37 = scmp.eq.s32.totalorder %s15, 1
    %p38 = por %p36, %p37
    %p40 = scmp.ne.s32.totalorder %s23, %s39
    %p41 = scmp.eq.s32.totalorder %s15, 0
    %p42 = por %p40, %p41
    %s43 = ssub.s32 %s9, %s16
    %p44 = scmp.eq.s32.totalorder %s43, 0
    %s46 = sadd.s32 %s45, 1
    %s47 = scalar_select %p44, %s45, %s46
    %p50 = pneg %p44
    %p51 = scmp.eq.s32.totalorder %s9, 1
    %p52 = por %p50, %p51
    %p53 = scmp.ne.s32.totalorder %s45, %s48
    %p54 = scmp.eq.s32.totalorder %s9, 0
    %p55 = por %p53, %p54
    %p56 = scmp.ne.s32.totalorder %s45, %s48
    %p57 = scmp.eq.s32.totalorder %s14, 1
    %p58 = por %p56, %p57
    %p59 = scmp.ne.s32.totalorder %s48, %s49
    %p60 = scmp.eq.s32.totalorder %s14, 0
    %p61 = por %p59, %p60
    %p62 = scmp.ne.s32.totalorder %s48, %s49
    %p63 = scmp.eq.s32.totalorder %s15, 1
    %p64 = por %p62, %p63
    %p66 = scmp.ne.s32.totalorder %s49, %s65
    %p67 = scmp.eq.s32.totalorder %s15, 0
    %p68 = por %p66, %p67
    %s70 = sadd.s32 %s69, 1
    %p73 = scmp.eq.s32.totalorder %s9, 1
    %p74 = scmp.ne.s32.totalorder %s69, %s71
    %p75 = scmp.eq.s32.totalorder %s9, 0
    %p76 = por %p74, %p75
    %p77 = scmp.ne.s32.totalorder %s69, %s71
    %p78 = scmp.eq.s32.totalorder %s14, 1
    %p79 = por %p77, %p78
    %p80 = scmp.ne.s32.totalorder %s71, %s72
    %p81 = scmp.eq.s32.totalorder %s14, 0
    %p82 = por %p80, %p81
    %p83 = scmp.ne.s32.totalorder %s71, %s72
    %p84 = scmp.eq.s32.totalorder %s15, 1
    %p85 = por %p83, %p84
    %p87 = scmp.ne.s32.totalorder %s72, %s86
    %p88 = scmp.eq.s32.totalorder %s15, 0
    %p89 = por %p87, %p88
    %s90 = ssub.s32 %s9, %s16
    %p91 = scmp.eq.s32.totalorder %s90, 0
    %s93 = sadd.s32 %s92, 1
    %s94 = scalar_select %p91, %s92, %s93
    %p97 = pneg %p91
    %p98 = scmp.eq.s32.totalorder %s9, 1
    %p99 = por %p97, %p98
    %p100 = scmp.ne.s32.totalorder %s92, %s95
    %p101 = scmp.eq.s32.totalorder %s9, 0
    %p102 = por %p100, %p101
    %p103 = scmp.ne.s32.totalorder %s92, %s95
    %p104 = scmp.eq.s32.totalorder %s14, 1
    %p105 = por %p103, %p104
    %p106 = scmp.ne.s32.totalorder %s95, %s96
    %p107 = scmp.eq.s32.totalorder %s14, 0
    %p108 = por %p106, %p107
    %p109 = scmp.ne.s32.totalorder %s95, %s96
    %p110 = scmp.eq.s32.totalorder %s15, 1
    %p111 = por %p109, %p110
    %p113 = scmp.ne.s32.totalorder %s96, %s112
    %p114 = scmp.eq.s32.totalorder %s15, 0
    %p115 = por %p113, %p114
    %p116 = scmp.le.s32.totalorder 1, %s9
    %p117 = scmp.lt.s32.totalorder %s9, 3
    %p118 = pnand %p116, %p117
    %p119 = pneg %p118
    // Predicated region
    $region9: #{encode_process_decode.10} parent=5 // pred_check
      _
    $region10: #{encode_process_decode.10} parent=5 // pred_check_branch
      %121 = sbr.rel (%p118) target = $region12
    $region11: #{encode_process_decode.10} parent=5 // pred_region
      %s122 = ssub.s32 %s9, 1
      // Predicated region
      $region13: #{encode_process_decode.10} parent=11 // pred_check
        %p123 = pneg %p82
      $region14: #{encode_process_decode.10} parent=11 // pred_check_branch
        %125 = sbr.rel (%p123) target = $region16
      $region15: #{encode_process_decode.10} parent=11 // pred_region
        _
      $region16: #{encode_process_decode.10} parent=11 // pred_fallthru
        _
    $region12: #{encode_process_decode.10} parent=5 // pred_fallthru
      _
    %p126 = scmp.lt.s32.totalorder %s9, 2
    // Predicated region
    $region17: #{encode_process_decode.10} parent=5 // pred_check
      %p127 = pneg %p126
    $region18: #{encode_process_decode.10} parent=5 // pred_check_branch
      %129 = sbr.rel (%p127) target = $region20
    $region19: #{encode_process_decode.10} parent=5 // pred_region
      // Predicated region
      $region21: #{encode_process_decode.10} parent=19 // pred_check
        %p130 = pneg %p29
      $region22: #{encode_process_decode.10} parent=19 // pred_check_branch
        %132 = sbr.rel (%p130) target = $region24
      $region23: #{encode_process_decode.10} parent=19 // pred_region
        %s133 = smul.u32 2, %s9
        %p134 = scmp.lt.s32.totalorder %s133, 3
        %s135 = scalar_select %p134, %s133, 3
        %s136 = smul.addr %s135, 4
        %s137 = scalar_lea.vmem %s0, %s136
        %s138 = smul.u32 2, %s9
      $region24: #{encode_process_decode.10} parent=19 // pred_fallthru
        _
      // Predicated region
      $region25: #{encode_process_decode.10} parent=19 // pred_check
        %p139 = pneg %p55
      $region26: #{encode_process_decode.10} parent=19 // pred_check_branch
        %141 = sbr.rel (%p139) target = $region28
      $region27: #{encode_process_decode.10} parent=19 // pred_region
        %s142 = smul.u32 2, %s9
        %p143 = scmp.lt.s32.totalorder %s142, 3
        %s144 = scalar_select %p143, %s142, 3
        %s145 = smul.addr %s144, 8
        %s146 = scalar_lea.vmem %s1, %s145
        %s147 = smul.u32 2, %s9
      $region28: #{encode_process_decode.10} parent=19 // pred_fallthru
        _
    $region20: #{encode_process_decode.10} parent=5 // pred_fallthru
      _
    %p148 = scmp.le.s32.totalorder 1, %s9
    %p149 = scmp.lt.s32.totalorder %s9, 3
    %p150 = pnand %p148, %p149
    %p151 = pneg %p150
    // Predicated region
    $region29: #{encode_process_decode.10} parent=5 // pred_check
      _
    $region30: #{encode_process_decode.10} parent=5 // pred_check_branch
      %153 = sbr.rel (%p150) target = $region32
    $region31: #{encode_process_decode.10} parent=5 // pred_region
      %s154 = ssub.s32 %s9, 1
      %s155 = smul.u32 2, %s14
      %p156 = scmp.lt.s32.totalorder %s155, 3
      %s157 = scalar_select %p156, %s155, 3
      %s158 = smul.addr %s157, 4
      %s159 = scalar_lea.vmem %s0, %s158
      %p160 = pneg %p35
      %p161 = pneg %p32
      %s162 = smul.u32 2, %s14
      %p163 = scmp.lt.s32.totalorder %s162, 3
      %s164 = scalar_select %p163, %s162, 3
      %s165 = smul.addr %s164, 8
      %s166 = scalar_lea.vmem %s1, %s165
      %p167 = pneg %p61
      %p168 = pneg %p58
      %p169 = pneg %p82
      %p170 = pneg %p79
      %p171 = pneg %p108
      %p172 = pneg %p105
      %s173 = smul.u32 2, %s14
      %p174 = scmp.lt.s32.totalorder %s173, 3
      %s175 = scalar_select %p174, %s173, 3
      %s176 = smul.addr %s175, 4
      %s177 = scalar_lea.vmem %s3, %s176
      %s178 = smul.u32 2, %s14
      %p179 = scmp.lt.s32.totalorder %s178, 3
      %s180 = scalar_select %p179, %s178, 3
      %s181 = smul.addr %s180, 4
      %s182 = scalar_lea.vmem %s0, %s181
      %s183 = smul.u32 2, %s14
      %s184 = smul.u32 2, %s14
      %p185 = scmp.lt.s32.totalorder %s184, 3
      %s186 = scalar_select %p185, %s184, 3
      %s187 = smul.addr %s186, 8
      %s188 = scalar_lea.vmem %s1, %s187
      %s189 = smul.u32 2, %s14
      %s190 = smul.u32 2, %s14
      %p191 = scmp.lt.s32.totalorder %s190, 3
      %s192 = scalar_select %p191, %s190, 3
      %s193 = smul.addr %s192, 4
      %s194 = scalar_lea.vmem %s3, %s193
      %s195 = smul.u32 2, %s14
      %v197 = vld [vmem:[%s182] sm:$0xf]
      %v198 = vld [vmem:[%s182 + $0x4] sm:$0xf]
      %v199 = vld [vmem:[%s2] sm:$0xff]
      %v200 = vld [vmem:[%s2 + $0x8] sm:$0xff]
      %v201 = vld [vmem:[%s2 + $0x10] sm:$0xff]
      %v202 = vld [vmem:[%s2 + $0x18] sm:$0xff]
      %v203 = vpack.c.bf16 %v200, %v199
      %v204 = vpack.c.bf16 %v202, %v201
      %v205 = vld [vmem:[%s188] sm:$0xff]
      %v206 = vld [vmem:[%s188 + $0x8] sm:$0xff]
      %v207 = vpack.c.bf16 %v206, %v205
      %v208 = vld [vmem:[%s2 + $0x20] sm:$0xff]
      %v209 = vld [vmem:[%s2 + $0x28] sm:$0xff]
      %v210 = vld [vmem:[%s2 + $0x30] sm:$0xff]
      %v211 = vld [vmem:[%s2 + $0x38] sm:$0xff]
      %v212 = vpack.c.bf16 %v209, %v208
      %v213 = vpack.c.bf16 %v211, %v210
      %vm214 = vcmask 261120
      %v216 = vsel %vm214, %v207, 0
      %218 = vmatprep.subr.bf16.mxu0 0
      %219 = vmatpush1.bf16.msra.mxu0 %v212
      %220 = vmatprep.subr.bf16.mxu0 0
      %221 = vmatpush1.bf16.msra.mxu0 %v213
      %222 = vmatprep.subr.bf16.mxu0 0
      %223 = vmatpush1.bf16.msra.mxu0 0
      %224 = vmatprep.subr.bf16.mxu0 0
      %225 = vmatpush1.bf16.msra.mxu0 0
      %226 = vmatprep.subr.bf16.mxu0 0
      %227 = vmatpush1.bf16.msra.mxu0 0
      %228 = vmatprep.subr.bf16.mxu0 0
      %229 = vmatpush1.bf16.msra.mxu0 0
      %230 = vmatprep.subr.bf16.mxu0 0
      %231 = vmatpush1.bf16.msra.mxu0 0
      %232 = vmatprep.subr.bf16.mxu0 0
      %233 = vmatpush1.bf16.msra.mxu0 0
      %234 = vmatprep.subr.bf16.mxu0 0
      %235 = vmatpush1.bf16.msra.mxu0 0
      %236 = vmatprep.subr.bf16.mxu0 0
      %237 = vmatpush1.bf16.msra.mxu0 0
      %238 = vmatprep.subr.bf16.mxu0 0
      %239 = vmatpush1.bf16.msra.mxu0 0
      %240 = vmatprep.subr.bf16.mxu0 0
      %241 = vmatpush1.bf16.msra.mxu0 0
      %242 = vmatprep.subr.bf16.mxu0 0
      %243 = vmatpush1.bf16.msra.mxu0 0
      %244 = vmatprep.subr.bf16.mxu0 0
      %245 = vmatpush1.bf16.msra.mxu0 0
      %246 = vmatprep.subr.bf16.mxu0 0
      %247 = vmatpush1.bf16.msra.mxu0 0
      %248 = vmatprep.subr.bf16.mxu0 0
      %249 = vmatpush1.bf16.msra.mxu0 0
      %250 = vmatprep.mubr.bf16.mxu0 0
      %251 = vmatmul.mubr.bf16.gmra.mrb[0].mxu0 %v216
      %v252 = vpop.f32.mrb[0].mxu0
      %v253 = vadd.f32 0.0, %v252
      %v254 = vpop.f32.mrb[0].mxu0
      %v255 = vpop.f32.mrb[0].mxu0
      %v256 = vadd.f32 0.0, %v255
      %v257 = vpop.f32.mrb[0].mxu0
      %258 = vdwg.mxu0
      %v261 = vunpack.c.l.b16 %v197
      %v262 = vunpack.c.l.b16 %v198
      %v263 = vpack.c.b16 %v262, %v261
      %v265 = vsel %vm214, %v263, 0
      %267 = vmatprep.subr.bf16.mxu0 0
      %268 = vmatpush1.bf16.msra.mxu0 %v203
      %269 = vmatprep.subr.bf16.mxu0 0
      %270 = vmatpush1.bf16.msra.mxu0 %v204
      %271 = vmatprep.subr.bf16.mxu0 0
      %272 = vmatpush1.bf16.msra.mxu0 0
      %273 = vmatprep.subr.bf16.mxu0 0
      %274 = vmatpush1.bf16.msra.mxu0 0
      %275 = vmatprep.subr.bf16.mxu0 0
      %276 = vmatpush1.bf16.msra.mxu0 0
      %277 = vmatprep.subr.bf16.mxu0 0
      %278 = vmatpush1.bf16.msra.mxu0 0
      %279 = vmatprep.subr.bf16.mxu0 0
      %280 = vmatpush1.bf16.msra.mxu0 0
      %281 = vmatprep.subr.bf16.mxu0 0
      %282 = vmatpush1.bf16.msra.mxu0 0
      %283 = vmatprep.subr.bf16.mxu0 0
      %284 = vmatpush1.bf16.msra.mxu0 0
      %285 = vmatprep.subr.bf16.mxu0 0
      %286 = vmatpush1.bf16.msra.mxu0 0
      %287 = vmatprep.subr.bf16.mxu0 0
      %288 = vmatpush1.bf16.msra.mxu0 0
      %289 = vmatprep.subr.bf16.mxu0 0
      %290 = vmatpush1.bf16.msra.mxu0 0
      %291 = vmatprep.subr.bf16.mxu0 0
      %292 = vmatpush1.bf16.msra.mxu0 0
      %293 = vmatprep.subr.bf16.mxu0 0
      %294 = vmatpush1.bf16.msra.mxu0 0
      %295 = vmatprep.subr.bf16.mxu0 0
      %296 = vmatpush1.bf16.msra.mxu0 0
      %297 = vmatprep.subr.bf16.mxu0 0
      %298 = vmatpush1.bf16.msra.mxu0 0
      %299 = vmatprep.mubr.bf16.mxu0 0
      %300 = vmatmul.mubr.bf16.gmra.mrb[0].mxu0 %v265
      %v301 = vpop.f32.mrb[0].mxu0
      %v302 = vadd.f32 %v253, %v301
      %v303 = vpop.f32.mrb[0].mxu0
      %v304 = vpop.f32.mrb[0].mxu0
      %v305 = vadd.f32 %v256, %v304
      %v306 = vpop.f32.mrb[0].mxu0
      %307 = vdwg.mxu0
      %v308 = vld [vmem:[%s2 + $0x40] sm:$0x1]
      %v309 = vlaneseq
      %v310 = vshrl.u32 %v309, 7
      %v311 = vsub.s32 0, %v310
      %v312 = vrot.slane %v308, %v311
      %v313 = vadd.f32 %v302, %v312
      %v314 = vadd.f32 %v305, %v312
      %v315 = vmax.f32 %v313, 0.0
      %v316 = vmax.f32 %v314, 0.0
      %v317 = vld [vmem:[%s2 + $0x41] sm:$0xff]
      %v318 = vld [vmem:[%s2 + $0x49] sm:$0xff]
      %v319 = vld [vmem:[%s2 + $0x51] sm:$0xff]
      %v320 = vld [vmem:[%s2 + $0x59] sm:$0xff]
      %v321 = vpack.c.bf16 %v318, %v317
      %v322 = vpack.c.bf16 %v320, %v319
      %v323 = vld [vmem:[%s2 + $0x61] sm:$0x1]
      %v324 = vpack.c.bf16 %v316, %v315
      %v325 = vlaneseq
      %v326 = vshrl.u32 %v325, 7
      %v327 = vsub.s32 0, %v326
      %v328 = vrot.slane %v323, %v327
      %v330 = vsel %vm214, %v324, 0
      %332 = vmatprep.subr.bf16.mxu0 0
      %333 = vmatpush1.bf16.msra.mxu0 %v321
      %334 = vmatprep.subr.bf16.mxu0 0
      %335 = vmatpush1.bf16.msra.mxu0 %v322
      %336 = vmatprep.subr.bf16.mxu0 0
      %337 = vmatpush1.bf16.msra.mxu0 0
      %338 = vmatprep.subr.bf16.mxu0 0
      %339 = vmatpush1.bf16.msra.mxu0 0
      %340 = vmatprep.subr.bf16.mxu0 0
      %341 = vmatpush1.bf16.msra.mxu0 0
      %342 = vmatprep.subr.bf16.mxu0 0
      %343 = vmatpush1.bf16.msra.mxu0 0
      %344 = vmatprep.subr.bf16.mxu0 0
      %345 = vmatpush1.bf16.msra.mxu0 0
      %346 = vmatprep.subr.bf16.mxu0 0
      %347 = vmatpush1.bf16.msra.mxu0 0
      %348 = vmatprep.subr.bf16.mxu0 0
      %349 = vmatpush1.bf16.msra.mxu0 0
      %350 = vmatprep.subr.bf16.mxu0 0
      %351 = vmatpush1.bf16.msra.mxu0 0
      %352 = vmatprep.subr.bf16.mxu0 0
      %353 = vmatpush1.bf16.msra.mxu0 0
      %354 = vmatprep.subr.bf16.mxu0 0
      %355 = vmatpush1.bf16.msra.mxu0 0
      %356 = vmatprep.subr.bf16.mxu0 0
      %357 = vmatpush1.bf16.msra.mxu0 0
      %358 = vmatprep.subr.bf16.mxu0 0
      %359 = vmatpush1.bf16.msra.mxu0 0
      %360 = vmatprep.subr.bf16.mxu0 0
      %361 = vmatpush1.bf16.msra.mxu0 0
      %362 = vmatprep.subr.bf16.mxu0 0
      %363 = vmatpush1.bf16.msra.mxu0 0
      %364 = vmatprep.mubr.bf16.mxu0 0
      %365 = vmatmul.mubr.bf16.gmra.mrb[0].mxu0 %v330
      %v366 = vpop.f32.mrb[0].mxu0
      %v367 = vadd.f32 %v328, %v366
      %v368 = vpop.f32.mrb[0].mxu0
      %v369 = vpop.f32.mrb[0].mxu0
      %v370 = vadd.f32 %v328, %v369
      %v371 = vpop.f32.mrb[0].mxu0
      %372 = vdwg.mxu0
      %v373 = vmax.f32 %v367, 0.0
      %v374 = vmax.f32 %v370, 0.0
      %v375 = vld [vmem:[%s2 + $0x62] sm:$0xff]
      %v376 = vld [vmem:[%s2 + $0x6a] sm:$0xff]
      %v377 = vld [vmem:[%s2 + $0x72] sm:$0xff]
      %v378 = vld [vmem:[%s2 + $0x7a] sm:$0xff]
      %v379 = vpack.c.bf16 %v376, %v375
      %v380 = vpack.c.bf16 %v378, %v377
      %v381 = vld [vmem:[%s2 + $0x82] sm:$0x1]
      %v382 = vpack.c.bf16 %v374, %v373
      %v383 = vlaneseq
      %v384 = vshrl.u32 %v383, 7
      %v385 = vsub.s32 0, %v384
      %v386 = vrot.slane %v381, %v385
      %v388 = vsel %vm214, %v382, 0
      %390 = vmatprep.subr.bf16.mxu0 0
      %391 = vmatpush1.bf16.msra.mxu0 %v379
      %392 = vmatprep.subr.bf16.mxu0 0
      %393 = vmatpush1.bf16.msra.mxu0 %v380
      %394 = vmatprep.subr.bf16.mxu0 0
      %395 = vmatpush1.bf16.msra.mxu0 0
      %396 = vmatprep.subr.bf16.mxu0 0
      %397 = vmatpush1.bf16.msra.mxu0 0
      %398 = vmatprep.subr.bf16.mxu0 0
      %399 = vmatpush1.bf16.msra.mxu0 0
      %400 = vmatprep.subr.bf16.mxu0 0
      %401 = vmatpush1.bf16.msra.mxu0 0
      %402 = vmatprep.subr.bf16.mxu0 0
      %403 = vmatpush1.bf16.msra.mxu0 0
      %404 = vmatprep.subr.bf16.mxu0 0
      %405 = vmatpush1.bf16.msra.mxu0 0
      %406 = vmatprep.subr.bf16.mxu0 0
      %407 = vmatpush1.bf16.msra.mxu0 0
      %408 = vmatprep.subr.bf16.mxu0 0
      %409 = vmatpush1.bf16.msra.mxu0 0
      %410 = vmatprep.subr.bf16.mxu0 0
      %411 = vmatpush1.bf16.msra.mxu0 0
      %412 = vmatprep.subr.bf16.mxu0 0
      %413 = vmatpush1.bf16.msra.mxu0 0
      %414 = vmatprep.subr.bf16.mxu0 0
      %415 = vmatpush1.bf16.msra.mxu0 0
      %416 = vmatprep.subr.bf16.mxu0 0
      %417 = vmatpush1.bf16.msra.mxu0 0
      %418 = vmatprep.subr.bf16.mxu0 0
      %419 = vmatpush1.bf16.msra.mxu0 0
      %420 = vmatprep.subr.bf16.mxu0 0
      %421 = vmatpush1.bf16.msra.mxu0 0
      %422 = vmatprep.mubr.bf16.mxu0 0
      %423 = vmatmul.mubr.bf16.gmra.mrb[0].mxu0 %v388
      %v424 = vpop.f32.mrb[0].mxu0
      %v425 = vadd.f32 %v386, %v424
      %v426 = vpop.f32.mrb[0].mxu0
      %v427 = vpop.f32.mrb[0].mxu0
      %v428 = vadd.f32 %v386, %v427
      %v429 = vpop.f32.mrb[0].mxu0
      %430 = vdwg.mxu0
      %v431 = vld [vmem:[%s2 + $0x83] sm:$0x1]
      %v432 = vld [vmem:[%s2 + $0x84] sm:$0x1]
      %v433 = vsel %vm214, %v425, 0.0
      %434 = vadd.xlane.f32.xlu0 %v433
      %v435 = vpop.xlane.xlu0 %434
      %v436 = vsel %vm214, %v428, 0.0
      %437 = vadd.xlane.f32.xlu0 %v436
      %v438 = vpop.xlane.xlu0 %437
      %v439 = vmul.f32 %v435, 0.03125
      %v440 = vmul.f32 %v438, 0.03125
      %v441 = vmul.f32 %v425, %v425
      %v442 = vmul.f32 %v428, %v428
      %v443 = vsel %vm214, %v441, 0.0
      %444 = vadd.xlane.f32.xlu0 %v443
      %v445 = vpop.xlane.xlu0 %444
      %v446 = vsel %vm214, %v442, 0.0
      %447 = vadd.xlane.f32.xlu0 %v446
      %v448 = vpop.xlane.xlu0 %447
      %v449 = vmul.f32 %v445, 0.03125
      %v450 = vmul.f32 %v448, 0.03125
      %v451 = vmul.f32 %v439, %v439
      %v452 = vmul.f32 %v440, %v440
      %v453 = vsub.f32 %v449, %v451
      %v454 = vsub.f32 %v450, %v452
      %v455 = vmax.f32 %v453, 0.0
      %v456 = vmax.f32 %v454, 0.0
      %v457 = vsub.f32 %v425, %v439
      %v458 = vsub.f32 %v428, %v440
      %v459 = vadd.f32 %v455, 1e-05
      %v460 = vadd.f32 %v456, 1e-05
      %v461 = vrsqrt.pop %v459
      %v462 = vrsqrt.pop %v460
      %v463 = vmul.f32 %v457, %v461
      %v464 = vmul.f32 %v458, %v462
      %v465 = vlaneseq
      %v466 = vshrl.u32 %v465, 7
      %v467 = vsub.s32 0, %v466
      %v468 = vrot.slane %v431, %v467
      %v469 = vmul.f32 %v463, %v468
      %v470 = vmul.f32 %v464, %v468
      %v471 = vlaneseq
      %v472 = vshrl.u32 %v471, 7
      %v473 = vsub.s32 0, %v472
      %v474 = vrot.slane %v432, %v473
      %v475 = vadd.f32 %v469, %v474
      %v476 = vadd.f32 %v470, %v474
      %v477 = vunpack.c.l.bf16 %v197
      %v478 = vunpack.c.l.bf16 %v198
      %v479 = vadd.f32 %v475, %v477
      %v480 = vadd.f32 %v476, %v478
      %v481 = vpack.c.bf16 %v480, %v479
      %v483 = vunpack.c.l.b16 %v481
      %v484 = vunpack.c.h.b16 %v481
      %v485 = vpack.c.b16 %v483, %v483
      %v486 = vpack.c.b16 %v484, %v484
      %vm489 = vcmask 257024
      %490 = vst.msk [vmem:[%s194] sm:$0xf] %vm489, %v485
      %491 = vst.msk [vmem:[%s194 + $0x4] sm:$0xf] %vm489, %v486
      %s492 = smul.u32 2, %s14
      %p493 = scmp.lt.s32.totalorder %s492, 3
      %s494 = scalar_select %p493, %s492, 3
      %s495 = smul.addr %s494, 4
      %s496 = scalar_lea.vmem %s3, %s495
      // Predicated region
      $region33: #{encode_process_decode.10} parent=31 // pred_check
        %p497 = pneg %p105
      $region34: #{encode_process_decode.10} parent=31 // pred_check_branch
        %499 = sbr.rel (%p497) target = $region36
      $region35: #{encode_process_decode.10} parent=31 // pred_region
        %s500 = smul.u32 2, %s14
      $region36: #{encode_process_decode.10} parent=31 // pred_fallthru
        _
    $region32: #{encode_process_decode.10} parent=5 // pred_fallthru
      _
    %p501 = scmp.le.s32.totalorder 2, %s9
    // Predicated region
    $region37: #{encode_process_decode.10} parent=5 // pred_check
      %p502 = pneg %p501
    $region38: #{encode_process_decode.10} parent=5 // pred_check_branch
      %504 = sbr.rel (%p502) target = $region40
    $region39: #{encode_process_decode.10} parent=5 // pred_region
      %s505 = ssub.s32 %s9, 2
      // Predicated region
      $region41: #{encode_process_decode.10} parent=39 // pred_check
        %p506 = pneg %p111
      $region42: #{encode_process_decode.10} parent=39 // pred_check_branch
        %508 = sbr.rel (%p506) target = $region44
      $region43: #{encode_process_decode.10} parent=39 // pred_region
        %s509 = smul.u32 2, %s15
        %p510 = scmp.lt.s32.totalorder %s509, 3
        %s511 = scalar_select %p510, %s509, 3
        %s512 = smul.addr %s511, 4
        %s513 = scalar_lea.vmem %s3, %s512
      $region44: #{encode_process_decode.10} parent=39 // pred_fallthru
        _
    $region40: #{encode_process_decode.10} parent=5 // pred_fallthru
      _
  $region6: #{encode_process_decode.10} parent=0 // loop_footer
    %s13 = sadd.s32 1, %s9
  $region7: #{encode_process_decode.10} parent=0 // loop_footer_branch
    %8 = sbr.rel target = $region3
  $region8: #{encode_process_decode.10} parent=0 // loop_exit
    _

// kernel: encode_process_decode.13
$region0: #{encode_process_decode.13}
  #allocation0 [shape = 'u32[]', space=smem, size = 0x4, offset = 0x4, fixed_abs, tag = 'smem constant byte address 0x4 - core index']
  #allocation1 [shape = 'u32[144,128]{1,0:T(1,128)}', space=vmem, size = 0x12000, scoped, tag = 'internal scratch']
  %s0 = inlined_call_operand.vmem [shape: bf16[32,32], index: 0, kind: input, shape index: {}]
  %s1 = inlined_call_operand.vmem [shape: f32[66,32], index: 1, kind: input, shape index: {}]
  %s2 = inlined_call_operand.vmem [shape: f32[33,128], index: 2, kind: input, shape index: {}]
  %s3 = inlined_call_operand.vmem [shape: f32[32,128], index: 3, kind: output, shape index: {}]
  %s4 = sld [smem:[#allocation0]]
  $region45: #{encode_process_decode.13} parent=0
    _
  %s6 = ssub.s32 1, %s4
  %s7 = scalar_select 0, %s6, %s4
  loop: start=0, step=1, limit=4
  $region2: #{encode_process_decode.13} parent=0 // loop_pre_header
    _
  $region3: #{encode_process_decode.13} parent=0 // loop_header
    %s9 = sphi 0, %s13
    %p10 = scmp.ge.s32.totalorder %s9, 4
    %s19 = sphi 0, %s21
    %s22 = sphi 0, %s19
    %s23 = sphi 0, %s22
    %s39 = sphi 0, %s23
    %s43 = sphi 0, %s43
    %s45 = sphi 0, %s43
    %s46 = sphi 0, %s45
    %s60 = sphi 0, %s46
    %s64 = sphi 0, %s64
    %s66 = sphi 0, %s64
    %s67 = sphi 0, %s66
    %s81 = sphi 0, %s67
    %s87 = sphi 0, %s89
    %s90 = sphi 0, %s87
    %s91 = sphi 0, %s90
    %s107 = sphi 0, %s91
  $region4: #{encode_process_decode.13} parent=0 // loop_header_branch
    %12 = sbr.rel (%p10) target = $region8
  $region5: #{encode_process_decode.13} parent=0 // loop_body
    %s14 = ssub.s32 %s9, 1
    %s15 = ssub.s32 %s9, 2
    %s16 = sadd.s32 %s9, 1
    %s17 = ssub.s32 %s9, %s16
    %p18 = scmp.eq.s32.totalorder %s17, 0
    %s20 = sadd.s32 %s19, 1
    %s21 = scalar_select %p18, %s19, %s20
    %p24 = pneg %p18
    %p25 = scmp.eq.s32.totalorder %s9, 1
    %p26 = por %p24, %p25
    %p27 = scmp.ne.s32.totalorder %s19, %s22
    %p28 = scmp.eq.s32.totalorder %s9, 0
    %p29 = por %p27, %p28
    %p30 = scmp.ne.s32.totalorder %s19, %s22
    %p31 = scmp.eq.s32.totalorder %s14, 1
    %p32 = por %p30, %p31
    %p33 = scmp.ne.s32.totalorder %s22, %s23
    %p34 = scmp.eq.s32.totalorder %s14, 0
    %p35 = por %p33, %p34
    %p36 = scmp.ne.s32.totalorder %s22, %s23
    %p37 = scmp.eq.s32.totalorder %s15, 1
    %p38 = por %p36, %p37
    %p40 = scmp.ne.s32.totalorder %s23, %s39
    %p41 = scmp.eq.s32.totalorder %s15, 0
    %p42 = por %p40, %p41
    %s44 = sadd.s32 %s43, 1
    %p47 = scmp.eq.s32.totalorder %s9, 1
    %p48 = scmp.ne.s32.totalorder %s43, %s45
    %p49 = scmp.eq.s32.totalorder %s9, 0
    %p50 = por %p48, %p49
    %p51 = scmp.ne.s32.totalorder %s43, %s45
    %p52 = scmp.eq.s32.totalorder %s14, 1
    %p53 = por %p51, %p52
    %p54 = scmp.ne.s32.totalorder %s45, %s46
    %p55 = scmp.eq.s32.totalorder %s14, 0
    %p56 = por %p54, %p55
    %p57 = scmp.ne.s32.totalorder %s45, %s46
    %p58 = scmp.eq.s32.totalorder %s15, 1
    %p59 = por %p57, %p58
    %p61 = scmp.ne.s32.totalorder %s46, %s60
    %p62 = scmp.eq.s32.totalorder %s15, 0
    %p63 = por %p61, %p62
    %s65 = sadd.s32 %s64, 1
    %p68 = scmp.eq.s32.totalorder %s9, 1
    %p69 = scmp.ne.s32.totalorder %s64, %s66
    %p70 = scmp.eq.s32.totalorder %s9, 0
    %p71 = por %p69, %p70
    %p72 = scmp.ne.s32.totalorder %s64, %s66
    %p73 = scmp.eq.s32.totalorder %s14, 1
    %p74 = por %p72, %p73
    %p75 = scmp.ne.s32.totalorder %s66, %s67
    %p76 = scmp.eq.s32.totalorder %s14, 0
    %p77 = por %p75, %p76
    %p78 = scmp.ne.s32.totalorder %s66, %s67
    %p79 = scmp.eq.s32.totalorder %s15, 1
    %p80 = por %p78, %p79
    %p82 = scmp.ne.s32.totalorder %s67, %s81
    %p83 = scmp.eq.s32.totalorder %s15, 0
    %p84 = por %p82, %p83
    %s85 = ssub.s32 %s9, %s16
    %p86 = scmp.eq.s32.totalorder %s85, 0
    %s88 = sadd.s32 %s87, 1
    %s89 = scalar_select %p86, %s87, %s88
    %p92 = pneg %p86
    %p93 = scmp.eq.s32.totalorder %s9, 1
    %p94 = por %p92, %p93
    %p95 = scmp.ne.s32.totalorder %s87, %s90
    %p96 = scmp.eq.s32.totalorder %s9, 0
    %p97 = por %p95, %p96
    %p98 = scmp.ne.s32.totalorder %s87, %s90
    %p99 = scmp.eq.s32.totalorder %s14, 1
    %p100 = por %p98, %p99
    %p101 = scmp.ne.s32.totalorder %s90, %s91
    %p102 = scmp.eq.s32.totalorder %s14, 0
    %p103 = por %p101, %p102
    %p104 = scmp.ne.s32.totalorder %s90, %s91
    %p105 = scmp.eq.s32.totalorder %s15, 1
    %p106 = por %p104, %p105
    %p108 = scmp.ne.s32.totalorder %s91, %s107
    %p109 = scmp.eq.s32.totalorder %s15, 0
    %p110 = por %p108, %p109
    %p111 = scmp.le.s32.totalorder 1, %s9
    %p112 = scmp.lt.s32.totalorder %s9, 3
    %p113 = pnand %p111, %p112
    %p114 = pneg %p113
    // Predicated region
    $region9: #{encode_process_decode.13} parent=5 // pred_check
      _
    $region10: #{encode_process_decode.13} parent=5 // pred_check_branch
      %116 = sbr.rel (%p113) target = $region12
    $region11: #{encode_process_decode.13} parent=5 // pred_region
      %s117 = ssub.s32 %s9, 1
      // Predicated region
      $region13: #{encode_process_decode.13} parent=11 // pred_check
        %p118 = pneg %p56
      $region14: #{encode_process_decode.13} parent=11 // pred_check_branch
        %120 = sbr.rel (%p118) target = $region16
      $region15: #{encode_process_decode.13} parent=11 // pred_region
        _
      $region16: #{encode_process_decode.13} parent=11 // pred_fallthru
        _
      // Predicated region
      $region17: #{encode_process_decode.13} parent=11 // pred_check
        %p121 = pneg %p77
      $region18: #{encode_process_decode.13} parent=11 // pred_check_branch
        %123 = sbr.rel (%p121) target = $region20
      $region19: #{encode_process_decode.13} parent=11 // pred_region
        _
      $region20: #{encode_process_decode.13} parent=11 // pred_fallthru
        _
    $region12: #{encode_process_decode.13} parent=5 // pred_fallthru
      _
    %p124 = scmp.lt.s32.totalorder %s9, 2
    // Predicated region
    $region21: #{encode_process_decode.13} parent=5 // pred_check
      %p125 = pneg %p124
    $region22: #{encode_process_decode.13} parent=5 // pred_check_branch
      %127 = sbr.rel (%p125) target = $region24
    $region23: #{encode_process_decode.13} parent=5 // pred_region
      // Predicated region
      $region25: #{encode_process_decode.13} parent=23 // pred_check
        %p128 = pneg %p29
      $region26: #{encode_process_decode.13} parent=23 // pred_check_branch
        %130 = sbr.rel (%p128) target = $region28
      $region27: #{encode_process_decode.13} parent=23 // pred_region
        %s131 = smul.u32 2, %s9
        %p132 = scmp.lt.s32.totalorder %s131, 3
        %s133 = scalar_select %p132, %s131, 3
        %s134 = smul.addr %s133, 4
        %s135 = scalar_lea.vmem %s0, %s134
        %s136 = smul.u32 2, %s9
      $region28: #{encode_process_decode.13} parent=23 // pred_fallthru
        _
    $region24: #{encode_process_decode.13} parent=5 // pred_fallthru
      _
    %p137 = scmp.le.s32.totalorder 1, %s9
    %p138 = scmp.lt.s32.totalorder %s9, 3
    %p139 = pnand %p137, %p138
    %p140 = pneg %p139
    // Predicated region
    $region29: #{encode_process_decode.13} parent=5 // pred_check
      _
    $region30: #{encode_process_decode.13} parent=5 // pred_check_branch
      %142 = sbr.rel (%p139) target = $region32
    $region31: #{encode_process_decode.13} parent=5 // pred_region
      %s143 = ssub.s32 %s9, 1
      %s144 = smul.u32 2, %s14
      %p145 = scmp.lt.s32.totalorder %s144, 3
      %s146 = scalar_select %p145, %s144, 3
      %s147 = smul.addr %s146, 4
      %s148 = scalar_lea.vmem %s0, %s147
      %p149 = pneg %p35
      %p150 = pneg %p32
      %p151 = pneg %p56
      %p152 = pneg %p53
      %p153 = pneg %p77
      %p154 = pneg %p74
      %p155 = pneg %p103
      %p156 = pneg %p100
      %s157 = smul.u32 2, %s14
      %p158 = scmp.lt.s32.totalorder %s157, 3
      %s159 = scalar_select %p158, %s157, 3
      %s160 = smul.addr %s159, 8
      %s161 = scalar_lea.vmem %s3, %s160
      %s162 = smul.u32 2, %s14
      %p163 = scmp.lt.s32.totalorder %s162, 3
      %s164 = scalar_select %p163, %s162, 3
      %s165 = smul.addr %s164, 4
      %s166 = scalar_lea.vmem %s0, %s165
      %s167 = smul.u32 2, %s14
      %s168 = smul.u32 2, %s14
      %p169 = scmp.lt.s32.totalorder %s168, 3
      %s170 = scalar_select %p169, %s168, 3
      %s171 = smul.addr %s170, 8
      %s172 = scalar_lea.vmem %s3, %s171
      %s173 = smul.u32 2, %s14
      %v175 = vld [vmem:[%s166] sm:$0xf]
      %v176 = vld [vmem:[%s166 + $0x4] sm:$0xf]
      %v177 = vld [vmem:[%s1] sm:$0xff]
      %v178 = vld [vmem:[%s1 + $0x8] sm:$0xff]
      %v179 = vld [vmem:[%s1 + $0x10] sm:$0xff]
      %v180 = vld [vmem:[%s1 + $0x18] sm:$0xff]
      %v181 = vpack.c.bf16 %v178, %v177
      %v182 = vpack.c.bf16 %v180, %v179
      %v183 = vld [vmem:[%s1 + $0x20] sm:$0x1]
      %v184 = vlaneseq
      %v185 = vshrl.u32 %v184, 7
      %v186 = vsub.s32 0, %v185
      %v187 = vrot.slane %v183, %v186
      %v190 = vunpack.c.l.b16 %v175
      %v191 = vunpack.c.l.b16 %v176
      %v192 = vpack.c.b16 %v191, %v190
      %vm193 = vcmask 261120
      %v195 = vsel %vm193, %v192, 0
      %197 = vmatprep.subr.bf16.mxu0 0
      %198 = vmatpush1.bf16.msra.mxu0 %v181
      %199 = vmatprep.subr.bf16.mxu0 0
      %200 = vmatpush1.bf16.msra.mxu0 %v182
      %201 = vmatprep.subr.bf16.mxu0 0
      %202 = vmatpush1.bf16.msra.mxu0 0
      %203 = vmatprep.subr.bf16.mxu0 0
      %204 = vmatpush1.bf16.msra.mxu0 0
      %205 = vmatprep.subr.bf16.mxu0 0
      %206 = vmatpush1.bf16.msra.mxu0 0
      %207 = vmatprep.subr.bf16.mxu0 0
      %208 = vmatpush1.bf16.msra.mxu0 0
      %209 = vmatprep.subr.bf16.mxu0 0
      %210 = vmatpush1.bf16.msra.mxu0 0
      %211 = vmatprep.subr.bf16.mxu0 0
      %212 = vmatpush1.bf16.msra.mxu0 0
      %213 = vmatprep.subr.bf16.mxu0 0
      %214 = vmatpush1.bf16.msra.mxu0 0
      %215 = vmatprep.subr.bf16.mxu0 0
      %216 = vmatpush1.bf16.msra.mxu0 0
      %217 = vmatprep.subr.bf16.mxu0 0
      %218 = vmatpush1.bf16.msra.mxu0 0
      %219 = vmatprep.subr.bf16.mxu0 0
      %220 = vmatpush1.bf16.msra.mxu0 0
      %221 = vmatprep.subr.bf16.mxu0 0
      %222 = vmatpush1.bf16.msra.mxu0 0
      %223 = vmatprep.subr.bf16.mxu0 0
      %224 = vmatpush1.bf16.msra.mxu0 0
      %225 = vmatprep.subr.bf16.mxu0 0
      %226 = vmatpush1.bf16.msra.mxu0 0
      %227 = vmatprep.subr.bf16.mxu0 0
      %228 = vmatpush1.bf16.msra.mxu0 0
      %229 = vmatprep.mubr.bf16.mxu0 0
      %230 = vmatmul.mubr.bf16.gmra.mrb[0].mxu0 %v195
      %v231 = vpop.f32.mrb[0].mxu0
      %v232 = vadd.f32 %v187, %v231
      %v233 = vpop.f32.mrb[0].mxu0
      %v234 = vpop.f32.mrb[0].mxu0
      %v235 = vadd.f32 %v187, %v234
      %v236 = vpop.f32.mrb[0].mxu0
      %237 = vdwg.mxu0
      %v238 = vmax.f32 %v232, 0.0
      %v239 = vmax.f32 %v235, 0.0
      %v240 = vld [vmem:[%s1 + $0x21] sm:$0xff]
      %v241 = vld [vmem:[%s1 + $0x29] sm:$0xff]
      %v242 = vld [vmem:[%s1 + $0x31] sm:$0xff]
      %v243 = vld [vmem:[%s1 + $0x39] sm:$0xff]
      %v244 = vpack.c.bf16 %v241, %v240
      %v245 = vpack.c.bf16 %v243, %v242
      %v246 = vld [vmem:[%s1 + $0x41] sm:$0x1]
      %v247 = vpack.c.bf16 %v239, %v238
      %v248 = vlaneseq
      %v249 = vshrl.u32 %v248, 7
      %v250 = vsub.s32 0, %v249
      %v251 = vrot.slane %v246, %v250
      %v253 = vsel %vm193, %v247, 0
      %255 = vmatprep.subr.bf16.mxu0 0
      %256 = vmatpush1.bf16.msra.mxu0 %v244
      %257 = vmatprep.subr.bf16.mxu0 0
      %258 = vmatpush1.bf16.msra.mxu0 %v245
      %259 = vmatprep.subr.bf16.mxu0 0
      %260 = vmatpush1.bf16.msra.mxu0 0
      %261 = vmatprep.subr.bf16.mxu0 0
      %262 = vmatpush1.bf16.msra.mxu0 0
      %263 = vmatprep.subr.bf16.mxu0 0
      %264 = vmatpush1.bf16.msra.mxu0 0
      %265 = vmatprep.subr.bf16.mxu0 0
      %266 = vmatpush1.bf16.msra.mxu0 0
      %267 = vmatprep.subr.bf16.mxu0 0
      %268 = vmatpush1.bf16.msra.mxu0 0
      %269 = vmatprep.subr.bf16.mxu0 0
      %270 = vmatpush1.bf16.msra.mxu0 0
      %271 = vmatprep.subr.bf16.mxu0 0
      %272 = vmatpush1.bf16.msra.mxu0 0
      %273 = vmatprep.subr.bf16.mxu0 0
      %274 = vmatpush1.bf16.msra.mxu0 0
      %275 = vmatprep.subr.bf16.mxu0 0
      %276 = vmatpush1.bf16.msra.mxu0 0
      %277 = vmatprep.subr.bf16.mxu0 0
      %278 = vmatpush1.bf16.msra.mxu0 0
      %279 = vmatprep.subr.bf16.mxu0 0
      %280 = vmatpush1.bf16.msra.mxu0 0
      %281 = vmatprep.subr.bf16.mxu0 0
      %282 = vmatpush1.bf16.msra.mxu0 0
      %283 = vmatprep.subr.bf16.mxu0 0
      %284 = vmatpush1.bf16.msra.mxu0 0
      %285 = vmatprep.subr.bf16.mxu0 0
      %286 = vmatpush1.bf16.msra.mxu0 0
      %287 = vmatprep.mubr.bf16.mxu0 0
      %288 = vmatmul.mubr.bf16.gmra.mrb[0].mxu0 %v253
      %v289 = vpop.f32.mrb[0].mxu0
      %v290 = vadd.f32 %v251, %v289
      %v291 = vpop.f32.mrb[0].mxu0
      %v292 = vpop.f32.mrb[0].mxu0
      %v293 = vadd.f32 %v251, %v292
      %v294 = vpop.f32.mrb[0].mxu0
      %295 = vdwg.mxu0
      %v296 = vmax.f32 %v290, 0.0
      %v297 = vmax.f32 %v293, 0.0
      %v298 = vld [vmem:[%s2] sm:$0xff]
      %v299 = vld [vmem:[%s2 + $0x8] sm:$0xff]
      %v300 = vld [vmem:[%s2 + $0x10] sm:$0xff]
      %v301 = vld [vmem:[%s2 + $0x18] sm:$0xff]
      %v302 = vpack.c.bf16 %v299, %v298
      %v303 = vpack.c.bf16 %v301, %v300
      %v304 = vld [vmem:[%s2 + $0x20] sm:$0x1]
      %v305 = vpack.c.bf16 %v297, %v296
      %v306 = vlaneseq
      %v307 = vshrl.u32 %v306, 7
      %v308 = vsub.s32 0, %v307
      %v309 = vrot.slane %v304, %v308
      %v311 = vsel %vm193, %v305, 0
      %313 = vmatprep.subr.bf16.mxu0 0
      %314 = vmatpush1.bf16.msra.mxu0 %v302
      %315 = vmatprep.subr.bf16.mxu0 0
      %316 = vmatpush1.bf16.msra.mxu0 %v303
      %317 = vmatprep.subr.bf16.mxu0 0
      %318 = vmatpush1.bf16.msra.mxu0 0
      %319 = vmatprep.subr.bf16.mxu0 0
      %320 = vmatpush1.bf16.msra.mxu0 0
      %321 = vmatprep.subr.bf16.mxu0 0
      %322 = vmatpush1.bf16.msra.mxu0 0
      %323 = vmatprep.subr.bf16.mxu0 0
      %324 = vmatpush1.bf16.msra.mxu0 0
      %325 = vmatprep.subr.bf16.mxu0 0
      %326 = vmatpush1.bf16.msra.mxu0 0
      %327 = vmatprep.subr.bf16.mxu0 0
      %328 = vmatpush1.bf16.msra.mxu0 0
      %329 = vmatprep.subr.bf16.mxu0 0
      %330 = vmatpush1.bf16.msra.mxu0 0
      %331 = vmatprep.subr.bf16.mxu0 0
      %332 = vmatpush1.bf16.msra.mxu0 0
      %333 = vmatprep.subr.bf16.mxu0 0
      %334 = vmatpush1.bf16.msra.mxu0 0
      %335 = vmatprep.subr.bf16.mxu0 0
      %336 = vmatpush1.bf16.msra.mxu0 0
      %337 = vmatprep.subr.bf16.mxu0 0
      %338 = vmatpush1.bf16.msra.mxu0 0
      %339 = vmatprep.subr.bf16.mxu0 0
      %340 = vmatpush1.bf16.msra.mxu0 0
      %341 = vmatprep.subr.bf16.mxu0 0
      %342 = vmatpush1.bf16.msra.mxu0 0
      %343 = vmatprep.subr.bf16.mxu0 0
      %344 = vmatpush1.bf16.msra.mxu0 0
      %345 = vmatprep.mubr.bf16.mxu0 0
      %346 = vmatmul.mubr.bf16.gmra.mrb[0].mxu0 %v311
      %v347 = vpop.f32.mrb[0].mxu0
      %v348 = vadd.f32 %v309, %v347
      %v349 = vpop.f32.mrb[0].mxu0
      %v350 = vpop.f32.mrb[0].mxu0
      %v351 = vadd.f32 %v309, %v350
      %v352 = vpop.f32.mrb[0].mxu0
      %353 = vdwg.mxu0
      %354 = vst [vmem:[%s172] sm:$0xff] %v348
      %355 = vst [vmem:[%s172 + $0x8] sm:$0xff] %v351
      %s356 = smul.u32 2, %s14
      %p357 = scmp.lt.s32.totalorder %s356, 3
      %s358 = scalar_select %p357, %s356, 3
      %s359 = smul.addr %s358, 8
      %s360 = scalar_lea.vmem %s3, %s359
      // Predicated region
      $region33: #{encode_process_decode.13} parent=31 // pred_check
        %p361 = pneg %p100
      $region34: #{encode_process_decode.13} parent=31 // pred_check_branch
        %363 = sbr.rel (%p361) target = $region36
      $region35: #{encode_process_decode.13} parent=31 // pred_region
        %s364 = smul.u32 2, %s14
      $region36: #{encode_process_decode.13} parent=31 // pred_fallthru
        _
    $region32: #{encode_process_decode.13} parent=5 // pred_fallthru
      _
    %p365 = scmp.le.s32.totalorder 2, %s9
    // Predicated region
    $region37: #{encode_process_decode.13} parent=5 // pred_check
      %p366 = pneg %p365
    $region38: #{encode_process_decode.13} parent=5 // pred_check_branch
      %368 = sbr.rel (%p366) target = $region40
    $region39: #{encode_process_decode.13} parent=5 // pred_region
      %s369 = ssub.s32 %s9, 2
      // Predicated region
      $region41: #{encode_process_decode.13} parent=39 // pred_check
        %p370 = pneg %p106
      $region42: #{encode_process_decode.13} parent=39 // pred_check_branch
        %372 = sbr.rel (%p370) target = $region44
      $region43: #{encode_process_decode.13} parent=39 // pred_region
        %s373 = smul.u32 2, %s15
        %p374 = scmp.lt.s32.totalorder %s373, 3
        %s375 = scalar_select %p374, %s373, 3
        %s376 = smul.addr %s375, 8
        %s377 = scalar_lea.vmem %s3, %s376
      $region44: #{encode_process_decode.13} parent=39 // pred_fallthru
        _
    $region40: #{encode_process_decode.13} parent=5 // pred_fallthru
      _
  $region6: #{encode_process_decode.13} parent=0 // loop_footer
    %s13 = sadd.s32 1, %s9
  $region7: #{encode_process_decode.13} parent=0 // loop_footer_branch
    %8 = sbr.rel target = $region3
  $region8: #{encode_process_decode.13} parent=0 // loop_exit
    _

// kernel: encode_process_decode.11
$region0: #{encode_process_decode.11}
  #allocation0 [shape = 'u32[]', space=smem, size = 0x4, offset = 0x4, fixed_abs, tag = 'smem constant byte address 0x4 - core index']
  #allocation1 [shape = 'u32[144,128]{1,0:T(1,128)}', space=vmem, size = 0x12000, scoped, tag = 'internal scratch']
  %s0 = inlined_call_operand.vmem [shape: bf16[64,32], index: 0, kind: input, shape index: {}]
  %s1 = inlined_call_operand.vmem [shape: bf16[64,32], index: 1, kind: input, shape index: {}]
  %s2 = inlined_call_operand.vmem [shape: bf16[64,32], index: 2, kind: input, shape index: {}]
  %s3 = inlined_call_operand.vmem [shape: f32[165,32], index: 3, kind: input, shape index: {}]
  %s4 = inlined_call_operand.vmem [shape: bf16[64,32], index: 4, kind: output, shape index: {}]
  %s5 = sld [smem:[#allocation0]]
  $region49: #{encode_process_decode.11} parent=0
    _
  %s7 = ssub.s32 1, %s5
  %s8 = scalar_select 0, %s7, %s5
  loop: start=0, step=1, limit=4
  $region2: #{encode_process_decode.11} parent=0 // loop_pre_header
    _
  $region3: #{encode_process_decode.11} parent=0 // loop_header
    %s10 = sphi 0, %s14
    %p11 = scmp.ge.s32.totalorder %s10, 4
    %s20 = sphi 0, %s22
    %s23 = sphi 0, %s20
    %s24 = sphi 0, %s23
    %s40 = sphi 0, %s24
    %s46 = sphi 0, %s48
    %s49 = sphi 0, %s46
    %s50 = sphi 0, %s49
    %s66 = sphi 0, %s50
    %s72 = sphi 0, %s74
    %s75 = sphi 0, %s72
    %s76 = sphi 0, %s75
    %s92 = sphi 0, %s76
    %s96 = sphi 0, %s96
    %s98 = sphi 0, %s96
    %s99 = sphi 0, %s98
    %s113 = sphi 0, %s99
    %s119 = sphi 0, %s121
    %s122 = sphi 0, %s119
    %s123 = sphi 0, %s122
    %s139 = sphi 0, %s123
  $region4: #{encode_process_decode.11} parent=0 // loop_header_branch
    %13 = sbr.rel (%p11) target = $region8
  $region5: #{encode_process_decode.11} parent=0 // loop_body
    %s15 = ssub.s32 %s10, 1
    %s16 = ssub.s32 %s10, 2
    %s17 = sadd.s32 %s10, 1
    %s18 = ssub.s32 %s10, %s17
    %p19 = scmp.eq.s32.totalorder %s18, 0
    %s21 = sadd.s32 %s20, 1
    %s22 = scalar_select %p19, %s20, %s21
    %p25 = pneg %p19
    %p26 = scmp.eq.s32.totalorder %s10, 1
    %p27 = por %p25, %p26
    %p28 = scmp.ne.s32.totalorder %s20, %s23
    %p29 = scmp.eq.s32.totalorder %s10, 0
    %p30 = por %p28, %p29
    %p31 = scmp.ne.s32.totalorder %s20, %s23
    %p32 = scmp.eq.s32.totalorder %s15, 1
    %p33 = por %p31, %p32
    %p34 = scmp.ne.s32.totalorder %s23, %s24
    %p35 = scmp.eq.s32.totalorder %s15, 0
    %p36 = por %p34, %p35
    %p37 = scmp.ne.s32.totalorder %s23, %s24
    %p38 = scmp.eq.s32.totalorder %s16, 1
    %p39 = por %p37, %p38
    %p41 = scmp.ne.s32.totalorder %s24, %s40
    %p42 = scmp.eq.s32.totalorder %s16, 0
    %p43 = por %p41, %p42
    %s44 = ssub.s32 %s10, %s17
    %p45 = scmp.eq.s32.totalorder %s44, 0
    %s47 = sadd.s32 %s46, 1
    %s48 = scalar_select %p45, %s46, %s47
    %p51 = pneg %p45
    %p52 = scmp.eq.s32.totalorder %s10, 1
    %p53 = por %p51, %p52
    %p54 = scmp.ne.s32.totalorder %s46, %s49
    %p55 = scmp.eq.s32.totalorder %s10, 0
    %p56 = por %p54, %p55
    %p57 = scmp.ne.s32.totalorder %s46, %s49
    %p58 = scmp.eq.s32.totalorder %s15, 1
    %p59 = por %p57, %p58
    %p60 = scmp.ne.s32.totalorder %s49, %s50
    %p61 = scmp.eq.s32.totalorder %s15, 0
    %p62 = por %p60, %p61
    %p63 = scmp.ne.s32.totalorder %s49, %s50
    %p64 = scmp.eq.s32.totalorder %s16, 1
    %p65 = por %p63, %p64
    %p67 = scmp.ne.s32.totalorder %s50, %s66
    %p68 = scmp.eq.s32.totalorder %s16, 0
    %p69 = por %p67, %p68
    %s70 = ssub.s32 %s10, %s17
    %p71 = scmp.eq.s32.totalorder %s70, 0
    %s73 = sadd.s32 %s72, 1
    %s74 = scalar_select %p71, %s72, %s73
    %p77 = pneg %p71
    %p78 = scmp.eq.s32.totalorder %s10, 1
    %p79 = por %p77, %p78
    %p80 = scmp.ne.s32.totalorder %s72, %s75
    %p81 = scmp.eq.s32.totalorder %s10, 0
    %p82 = por %p80, %p81
    %p83 = scmp.ne.s32.totalorder %s72, %s75
    %p84 = scmp.eq.s32.totalorder %s15, 1
    %p85 = por %p83, %p84
    %p86 = scmp.ne.s32.totalorder %s75, %s76
    %p87 = scmp.eq.s32.totalorder %s15, 0
    %p88 = por %p86, %p87
    %p89 = scmp.ne.s32.totalorder %s75, %s76
    %p90 = scmp.eq.s32.totalorder %s16, 1
    %p91 = por %p89, %p90
    %p93 = scmp.ne.s32.totalorder %s76, %s92
    %p94 = scmp.eq.s32.totalorder %s16, 0
    %p95 = por %p93, %p94
    %s97 = sadd.s32 %s96, 1
    %p100 = scmp.eq.s32.totalorder %s10, 1
    %p101 = scmp.ne.s32.totalorder %s96, %s98
    %p102 = scmp.eq.s32.totalorder %s10, 0
    %p103 = por %p101, %p102
    %p104 = scmp.ne.s32.totalorder %s96, %s98
    %p105 = scmp.eq.s32.totalorder %s15, 1
    %p106 = por %p104, %p105
    %p107 = scmp.ne.s32.totalorder %s98, %s99
    %p108 = scmp.eq.s32.totalorder %s15, 0
    %p109 = por %p107, %p108
    %p110 = scmp.ne.s32.totalorder %s98, %s99
    %p111 = scmp.eq.s32.totalorder %s16, 1
    %p112 = por %p110, %p111
    %p114 = scmp.ne.s32.totalorder %s99, %s113
    %p115 = scmp.eq.s32.totalorder %s16, 0
    %p116 = por %p114, %p115
    %s117 = ssub.s32 %s10, %s17
    %p118 = scmp.eq.s32.totalorder %s117, 0
    %s120 = sadd.s32 %s119, 1
    %s121 = scalar_select %p118, %s119, %s120
    %p124 = pneg %p118
    %p125 = scmp.eq.s32.totalorder %s10, 1
    %p126 = por %p124, %p125
    %p127 = scmp.ne.s32.totalorder %s119, %s122
    %p128 = scmp.eq.s32.totalorder %s10, 0
    %p129 = por %p127, %p128
    %p130 = scmp.ne.s32.totalorder %s119, %s122
    %p131 = scmp.eq.s32.totalorder %s15, 1
    %p132 = por %p130, %p131
    %p133 = scmp.ne.s32.totalorder %s122, %s123
    %p134 = scmp.eq.s32.totalorder %s15, 0
    %p135 = por %p133, %p134
    %p136 = scmp.ne.s32.totalorder %s122, %s123
    %p137 = scmp.eq.s32.totalorder %s16, 1
    %p138 = por %p136, %p137
    %p140 = scmp.ne.s32.totalorder %s123, %s139
    %p141 = scmp.eq.s32.totalorder %s16, 0
    %p142 = por %p140, %p141
    %p143 = scmp.le.s32.totalorder 1, %s10
    %p144 = scmp.lt.s32.totalorder %s10, 3
    %p145 = pnand %p143, %p144
    %p146 = pneg %p145
    // Predicated region
    $region9: #{encode_process_decode.11} parent=5 // pred_check
      _
    $region10: #{encode_process_decode.11} parent=5 // pred_check_branch
      %148 = sbr.rel (%p145) target = $region12
    $region11: #{encode_process_decode.11} parent=5 // pred_region
      %s149 = ssub.s32 %s10, 1
      // Predicated region
      $region13: #{encode_process_decode.11} parent=11 // pred_check
        %p150 = pneg %p109
      $region14: #{encode_process_decode.11} parent=11 // pred_check_branch
        %152 = sbr.rel (%p150) target = $region16
      $region15: #{encode_process_decode.11} parent=11 // pred_region
        _
      $region16: #{encode_process_decode.11} parent=11 // pred_fallthru
        _
    $region12: #{encode_process_decode.11} parent=5 // pred_fallthru
      _
    %p153 = scmp.lt.s32.totalorder %s10, 2
    // Predicated region
    $region17: #{encode_process_decode.11} parent=5 // pred_check
      %p154 = pneg %p153
    $region18: #{encode_process_decode.11} parent=5 // pred_check_branch
      %156 = sbr.rel (%p154) target = $region20
    $region19: #{encode_process_decode.11} parent=5 // pred_region
      // Predicated region
      $region21: #{encode_process_decode.11} parent=19 // pred_check
        %p157 = pneg %p30
      $region22: #{encode_process_decode.11} parent=19 // pred_check_branch
        %159 = sbr.rel (%p157) target = $region24
      $region23: #{encode_process_decode.11} parent=19 // pred_region
        %s160 = smul.u32 4, %s10
        %p161 = scmp.lt.s32.totalorder %s160, 7
        %s162 = scalar_select %p161, %s160, 7
        %s163 = smul.addr %s162, 4
        %s164 = scalar_lea.vmem %s0, %s163
        %s165 = smul.u32 4, %s10
      $region24: #{encode_process_decode.11} parent=19 // pred_fallthru
        _
      // Predicated region
      $region25: #{encode_process_decode.11} parent=19 // pred_check
        %p166 = pneg %p56
      $region26: #{encode_process_decode.11} parent=19 // pred_check_branch
        %168 = sbr.rel (%p166) target = $region28
      $region27: #{encode_process_decode.11} parent=19 // pred_region
        %s169 = smul.u32 4, %s10
        %p170 = scmp.lt.s32.totalorder %s169, 7
        %s171 = scalar_select %p170, %s169, 7
        %s172 = smul.addr %s171, 4
        %s173 = scalar_lea.vmem %s1, %s172
        %s174 = smul.u32 4, %s10
      $region28: #{encode_process_decode.11} parent=19 // pred_fallthru
        _
      // Predicated region
      $region29: #{encode_process_decode.11} parent=19 // pred_check
        %p175 = pneg %p82
      $region30: #{encode_process_decode.11} parent=19 // pred_check_branch
        %177 = sbr.rel (%p175) target = $region32
      $region31: #{encode_process_decode.11} parent=19 // pred_region
        %s178 = smul.u32 4, %s10
        %p179 = scmp.lt.s32.totalorder %s178, 7
        %s180 = scalar_select %p179, %s178, 7
        %s181 = smul.addr %s180, 4
        %s182 = scalar_lea.vmem %s2, %s181
        %s183 = smul.u32 4, %s10
      $region32: #{encode_process_decode.11} parent=19 // pred_fallthru
        _
    $region20: #{encode_process_decode.11} parent=5 // pred_fallthru
      _
    %p184 = scmp.le.s32.totalorder 1, %s10
    %p185 = scmp.lt.s32.totalorder %s10, 3
    %p186 = pnand %p184, %p185
    %p187 = pneg %p186
    // Predicated region
    $region33: #{encode_process_decode.11} parent=5 // pred_check
      _
    $region34: #{encode_process_decode.11} parent=5 // pred_check_branch
      %189 = sbr.rel (%p186) target = $region36
    $region35: #{encode_process_decode.11} parent=5 // pred_region
      %s190 = ssub.s32 %s10, 1
      %s191 = smul.u32 4, %s15
      %p192 = scmp.lt.s32.totalorder %s191, 7
      %s193 = scalar_select %p192, %s191, 7
      %s194 = smul.addr %s193, 4
      %s195 = scalar_lea.vmem %s0, %s194
      %p196 = pneg %p36
      %p197 = pneg %p33
      %s198 = smul.u32 4, %s15
      %p199 = scmp.lt.s32.totalorder %s198, 7
      %s200 = scalar_select %p199, %s198, 7
      %s201 = smul.addr %s200, 4
      %s202 = scalar_lea.vmem %s1, %s201
      %p203 = pneg %p62
      %p204 = pneg %p59
      %s205 = smul.u32 4, %s15
      %p206 = scmp.lt.s32.totalorder %s205, 7
      %s207 = scalar_select %p206, %s205, 7
      %s208 = smul.addr %s207, 4
      %s209 = scalar_lea.vmem %s2, %s208
      %p210 = pneg %p88
      %p211 = pneg %p85
      %p212 = pneg %p109
      %p213 = pneg %p106
      %p214 = pneg %p135
      %p215 = pneg %p132
      %s216 = smul.u32 4, %s15
      %p217 = scmp.lt.s32.totalorder %s216, 7
      %s218 = scalar_select %p217, %s216, 7
      %s219 = smul.addr %s218, 4
      %s220 = scalar_lea.vmem %s4, %s219
      %s221 = smul.u32 4, %s15
      %p222 = scmp.lt.s32.totalorder %s221, 7
      %s223 = scalar_select %p222, %s221, 7
      %s224 = smul.addr %s223, 4
      %s225 = scalar_lea.vmem %s0, %s224
      %s226 = smul.u32 4, %s15
      %s227 = smul.u32 4, %s15
      %p228 = scmp.lt.s32.totalorder %s227, 7
      %s229 = scalar_select %p228, %s227, 7
      %s230 = smul.addr %s229, 4
      %s231 = scalar_lea.vmem %s1, %s230
      %s232 = smul.u32 4, %s15
      %s233 = smul.u32 4, %s15
      %p234 = scmp.lt.s32.totalorder %s233, 7
      %s235 = scalar_select %p234, %s233, 7
      %s236 = smul.addr %s235, 4
      %s237 = scalar_lea.vmem %s2, %s236
      %s238 = smul.u32 4, %s15
      %s239 = smul.u32 4, %s15
      %p240 = scmp.lt.s32.totalorder %s239, 7
      %s241 = scalar_select %p240, %s239, 7
      %s242 = smul.addr %s241, 4
      %s243 = scalar_lea.vmem %s4, %s242
      %s244 = smul.u32 4, %s15
      %v246 = vld [vmem:[%s225] sm:$0xf]
      %v247 = vld [vmem:[%s225 + $0x4] sm:$0xf]
      %v248 = vld [vmem:[%s225 + $0x8] sm:$0xf]
      %v249 = vld [vmem:[%s225 + $0xc] sm:$0xf]
      %v250 = vld [vmem:[%s3] sm:$0xff]
      %v251 = vld [vmem:[%s3 + $0x8] sm:$0xff]
      %v252 = vld [vmem:[%s3 + $0x10] sm:$0xff]
      %v253 = vld [vmem:[%s3 + $0x18] sm:$0xff]
      %v254 = vpack.c.bf16 %v251, %v250
      %v255 = vpack.c.bf16 %v253, %v252
      %v256 = vld [vmem:[%s231] sm:$0xf]
      %v257 = vld [vmem:[%s231 + $0x4] sm:$0xf]
      %v258 = vld [vmem:[%s231 + $0x8] sm:$0xf]
      %v259 = vld [vmem:[%s231 + $0xc] sm:$0xf]
      %v260 = vld [vmem:[%s3 + $0x20] sm:$0xff]
      %v261 = vld [vmem:[%s3 + $0x28] sm:$0xff]
      %v262 = vld [vmem:[%s3 + $0x30] sm:$0xff]
      %v263 = vld [vmem:[%s3 + $0x38] sm:$0xff]
      %v264 = vpack.c.bf16 %v261, %v260
      %v265 = vpack.c.bf16 %v263, %v262
      %v270 = vunpack.c.l.b16 %v256
      %v271 = vunpack.c.l.b16 %v257
      %v272 = vunpack.c.l.b16 %v258
      %v273 = vunpack.c.l.b16 %v259
      %v274 = vpack.c.b16 %v271, %v270
      %v275 = vpack.c.b16 %v273, %v272
      %vm276 = vcmask 261120
      %v278 = vsel %vm276, %v274, 0
      %v281 = vsel %vm276, %v275, 0
      %283 = vmatprep.subr.bf16.mxu0 0
      %284 = vmatpush1.bf16.msra.mxu0 %v264
      %285 = vmatprep.subr.bf16.mxu0 0
      %286 = vmatpush1.bf16.msra.mxu0 %v265
      %287 = vmatprep.subr.bf16.mxu0 0
      %288 = vmatpush1.bf16.msra.mxu0 0
      %289 = vmatprep.subr.bf16.mxu0 0
      %290 = vmatpush1.bf16.msra.mxu0 0
      %291 = vmatprep.subr.bf16.mxu0 0
      %292 = vmatpush1.bf16.msra.mxu0 0
      %293 = vmatprep.subr.bf16.mxu0 0
      %294 = vmatpush1.bf16.msra.mxu0 0
      %295 = vmatprep.subr.bf16.mxu0 0
      %296 = vmatpush1.bf16.msra.mxu0 0
      %297 = vmatprep.subr.bf16.mxu0 0
      %298 = vmatpush1.bf16.msra.mxu0 0
      %299 = vmatprep.subr.bf16.mxu0 0
      %300 = vmatpush1.bf16.msra.mxu0 0
      %301 = vmatprep.subr.bf16.mxu0 0
      %302 = vmatpush1.bf16.msra.mxu0 0
      %303 = vmatprep.subr.bf16.mxu0 0
      %304 = vmatpush1.bf16.msra.mxu0 0
      %305 = vmatprep.subr.bf16.mxu0 0
      %306 = vmatpush1.bf16.msra.mxu0 0
      %307 = vmatprep.subr.bf16.mxu0 0
      %308 = vmatpush1.bf16.msra.mxu0 0
      %309 = vmatprep.subr.bf16.mxu0 0
      %310 = vmatpush1.bf16.msra.mxu0 0
      %311 = vmatprep.subr.bf16.mxu0 0
      %312 = vmatpush1.bf16.msra.mxu0 0
      %313 = vmatprep.subr.bf16.mxu0 0
      %314 = vmatpush1.bf16.msra.mxu0 0
      %315 = vmatprep.mubr.bf16.mxu0 0
      %316 = vmatmul.mubr.bf16.gmra.mrb[0].mxu0 %v278
      %v317 = vpop.f32.mrb[0].mxu0
      %v318 = vadd.f32 0.0, %v317
      %v319 = vpop.f32.mrb[0].mxu0
      %v320 = vpop.f32.mrb[0].mxu0
      %v321 = vadd.f32 0.0, %v320
      %v322 = vpop.f32.mrb[0].mxu0
      %323 = vmatprep.mubr.bf16.mxu0 0
      %324 = vmatmul.mubr.bf16.gmra.mrb[0].mxu0 %v281
      %v325 = vpop.f32.mrb[0].mxu0
      %v326 = vadd.f32 0.0, %v325
      %v327 = vpop.f32.mrb[0].mxu0
      %v328 = vpop.f32.mrb[0].mxu0
      %v329 = vadd.f32 0.0, %v328
      %v330 = vpop.f32.mrb[0].mxu0
      %331 = vdwg.mxu0
      %v336 = vunpack.c.l.b16 %v246
      %v337 = vunpack.c.l.b16 %v247
      %v338 = vunpack.c.l.b16 %v248
      %v339 = vunpack.c.l.b16 %v249
      %v340 = vpack.c.b16 %v337, %v336
      %v341 = vpack.c.b16 %v339, %v338
      %v343 = vsel %vm276, %v340, 0
      %v346 = vsel %vm276, %v341, 0
      %348 = vmatprep.subr.bf16.mxu0 0
      %349 = vmatpush1.bf16.msra.mxu0 %v254
      %350 = vmatprep.subr.bf16.mxu0 0
      %351 = vmatpush1.bf16.msra.mxu0 %v255
      %352 = vmatprep.subr.bf16.mxu0 0
      %353 = vmatpush1.bf16.msra.mxu0 0
      %354 = vmatprep.subr.bf16.mxu0 0
      %355 = vmatpush1.bf16.msra.mxu0 0
      %356 = vmatprep.subr.bf16.mxu0 0
      %357 = vmatpush1.bf16.msra.mxu0 0
      %358 = vmatprep.subr.bf16.mxu0 0
      %359 = vmatpush1.bf16.msra.mxu0 0
      %360 = vmatprep.subr.bf16.mxu0 0
      %361 = vmatpush1.bf16.msra.mxu0 0
      %362 = vmatprep.subr.bf16.mxu0 0
      %363 = vmatpush1.bf16.msra.mxu0 0
      %364 = vmatprep.subr.bf16.mxu0 0
      %365 = vmatpush1.bf16.msra.mxu0 0
      %366 = vmatprep.subr.bf16.mxu0 0
      %367 = vmatpush1.bf16.msra.mxu0 0
      %368 = vmatprep.subr.bf16.mxu0 0
      %369 = vmatpush1.bf16.msra.mxu0 0
      %370 = vmatprep.subr.bf16.mxu0 0
      %371 = vmatpush1.bf16.msra.mxu0 0
      %372 = vmatprep.subr.bf16.mxu0 0
      %373 = vmatpush1.bf16.msra.mxu0 0
      %374 = vmatprep.subr.bf16.mxu0 0
      %375 = vmatpush1.bf16.msra.mxu0 0
      %376 = vmatprep.subr.bf16.mxu0 0
      %377 = vmatpush1.bf16.msra.mxu0 0
      %378 = vmatprep.subr.bf16.mxu0 0
      %379 = vmatpush1.bf16.msra.mxu0 0
      %380 = vmatprep.mubr.bf16.mxu0 0
      %381 = vmatmul.mubr.bf16.gmra.mrb[0].mxu0 %v343
      %v382 = vpop.f32.mrb[0].mxu0
      %v383 = vadd.f32 %v318, %v382
      %v384 = vpop.f32.mrb[0].mxu0
      %v385 = vpop.f32.mrb[0].mxu0
      %v386 = vadd.f32 %v321, %v385
      %v387 = vpop.f32.mrb[0].mxu0
      %388 = vmatprep.mubr.bf16.mxu0 0
      %389 = vmatmul.mubr.bf16.gmra.mrb[0].mxu0 %v346
      %v390 = vpop.f32.mrb[0].mxu0
      %v391 = vadd.f32 %v326, %v390
      %v392 = vpop.f32.mrb[0].mxu0
      %v393 = vpop.f32.mrb[0].mxu0
      %v394 = vadd.f32 %v329, %v393
      %v395 = vpop.f32.mrb[0].mxu0
      %396 = vdwg.mxu0
      %v397 = vld [vmem:[%s237] sm:$0xf]
      %v398 = vld [vmem:[%s237 + $0x4] sm:$0xf]
      %v399 = vld [vmem:[%s237 + $0x8] sm:$0xf]
      %v400 = vld [vmem:[%s237 + $0xc] sm:$0xf]
      %v401 = vld [vmem:[%s3 + $0x40] sm:$0xff]
      %v402 = vld [vmem:[%s3 + $0x48] sm:$0xff]
      %v403 = vld [vmem:[%s3 + $0x50] sm:$0xff]
      %v404 = vld [vmem:[%s3 + $0x58] sm:$0xff]
      %v405 = vpack.c.bf16 %v402, %v401
      %v406 = vpack.c.bf16 %v404, %v403
      %v411 = vunpack.c.l.b16 %v397
      %v412 = vunpack.c.l.b16 %v398
      %v413 = vunpack.c.l.b16 %v399
      %v414 = vunpack.c.l.b16 %v400
      %v415 = vpack.c.b16 %v412, %v411
      %v416 = vpack.c.b16 %v414, %v413
      %v418 = vsel %vm276, %v415, 0
      %v421 = vsel %vm276, %v416, 0
      %423 = vmatprep.subr.bf16.mxu0 0
      %424 = vmatpush1.bf16.msra.mxu0 %v405
      %425 = vmatprep.subr.bf16.mxu0 0
      %426 = vmatpush1.bf16.msra.mxu0 %v406
      %427 = vmatprep.subr.bf16.mxu0 0
      %428 = vmatpush1.bf16.msra.mxu0 0
      %429 = vmatprep.subr.bf16.mxu0 0
      %430 = vmatpush1.bf16.msra.mxu0 0
      %431 = vmatprep.subr.bf16.mxu0 0
      %432 = vmatpush1.bf16.msra.mxu0 0
      %433 = vmatprep.subr.bf16.mxu0 0
      %434 = vmatpush1.bf16.msra.mxu0 0
      %435 = vmatprep.subr.bf16.mxu0 0
      %436 = vmatpush1.bf16.msra.mxu0 0
      %437 = vmatprep.subr.bf16.mxu0 0
      %438 = vmatpush1.bf16.msra.mxu0 0
      %439 = vmatprep.subr.bf16.mxu0 0
      %440 = vmatpush1.bf16.msra.mxu0 0
      %441 = vmatprep.subr.bf16.mxu0 0
      %442 = vmatpush1.bf16.msra.mxu0 0
      %443 = vmatprep.subr.bf16.mxu0 0
      %444 = vmatpush1.bf16.msra.mxu0 0
      %445 = vmatprep.subr.bf16.mxu0 0
      %446 = vmatpush1.bf16.msra.mxu0 0
      %447 = vmatprep.subr.bf16.mxu0 0
      %448 = vmatpush1.bf16.msra.mxu0 0
      %449 = vmatprep.subr.bf16.mxu0 0
      %450 = vmatpush1.bf16.msra.mxu0 0
      %451 = vmatprep.subr.bf16.mxu0 0
      %452 = vmatpush1.bf16.msra.mxu0 0
      %453 = vmatprep.subr.bf16.mxu0 0
      %454 = vmatpush1.bf16.msra.mxu0 0
      %455 = vmatprep.mubr.bf16.mxu0 0
      %456 = vmatmul.mubr.bf16.gmra.mrb[0].mxu0 %v418
      %v457 = vpop.f32.mrb[0].mxu0
      %v458 = vadd.f32 0.0, %v457
      %v459 = vpop.f32.mrb[0].mxu0
      %v460 = vpop.f32.mrb[0].mxu0
      %v461 = vadd.f32 0.0, %v460
      %v462 = vpop.f32.mrb[0].mxu0
      %463 = vmatprep.mubr.bf16.mxu0 0
      %464 = vmatmul.mubr.bf16.gmra.mrb[0].mxu0 %v421
      %v465 = vpop.f32.mrb[0].mxu0
      %v466 = vadd.f32 0.0, %v465
      %v467 = vpop.f32.mrb[0].mxu0
      %v468 = vpop.f32.mrb[0].mxu0
      %v469 = vadd.f32 0.0, %v468
      %v470 = vpop.f32.mrb[0].mxu0
      %471 = vdwg.mxu0
      %v472 = vadd.f32 %v383, %v458
      %v473 = vadd.f32 %v386, %v461
      %v474 = vadd.f32 %v391, %v466
      %v475 = vadd.f32 %v394, %v469
      %v476 = vld [vmem:[%s3 + $0x60] sm:$0x1]
      %v477 = vlaneseq
      %v478 = vshrl.u32 %v477, 7
      %v479 = vsub.s32 0, %v478
      %v480 = vrot.slane %v476, %v479
      %v481 = vadd.f32 %v472, %v480
      %v482 = vadd.f32 %v473, %v480
      %v483 = vadd.f32 %v474, %v480
      %v484 = vadd.f32 %v475, %v480
      %v485 = vmax.f32 %v481, 0.0
      %v486 = vmax.f32 %v482, 0.0
      %v487 = vmax.f32 %v483, 0.0
      %v488 = vmax.f32 %v484, 0.0
      %v489 = vld [vmem:[%s3 + $0x61] sm:$0xff]
      %v490 = vld [vmem:[%s3 + $0x69] sm:$0xff]
      %v491 = vld [vmem:[%s3 + $0x71] sm:$0xff]
      %v492 = vld [vmem:[%s3 + $0x79] sm:$0xff]
      %v493 = vpack.c.bf16 %v490, %v489
      %v494 = vpack.c.bf16 %v492, %v491
      %v495 = vld [vmem:[%s3 + $0x81] sm:$0x1]
      %v496 = vpack.c.bf16 %v486, %v485
      %v497 = vpack.c.bf16 %v488, %v487
      %v498 = vlaneseq
      %v499 = vshrl.u32 %v498, 7
      %v500 = vsub.s32 0, %v499
      %v501 = vrot.slane %v495, %v500
      %v503 = vsel %vm276, %v496, 0
      %v506 = vsel %vm276, %v497, 0
      %508 = vmatprep.subr.bf16.mxu0 0
      %509 = vmatpush1.bf16.msra.mxu0 %v493
      %510 = vmatprep.subr.bf16.mxu0 0
      %511 = vmatpush1.bf16.msra.mxu0 %v494
      %512 = vmatprep.subr.bf16.mxu0 0
      %513 = vmatpush1.bf16.msra.mxu0 0
      %514 = vmatprep.subr.bf16.mxu0 0
      %515 = vmatpush1.bf16.msra.mxu0 0
      %516 = vmatprep.subr.bf16.mxu0 0
      %517 = vmatpush1.bf16.msra.mxu0 0
      %518 = vmatprep.subr.bf16.mxu0 0
      %519 = vmatpush1.bf16.msra.mxu0 0
      %520 = vmatprep.subr.bf16.mxu0 0
      %521 = vmatpush1.bf16.msra.mxu0 0
      %522 = vmatprep.subr.bf16.mxu0 0
      %523 = vmatpush1.bf16.msra.mxu0 0
      %524 = vmatprep.subr.bf16.mxu0 0
      %525 = vmatpush1.bf16.msra.mxu0 0
      %526 = vmatprep.subr.bf16.mxu0 0
      %527 = vmatpush1.bf16.msra.mxu0 0
      %528 = vmatprep.subr.bf16.mxu0 0
      %529 = vmatpush1.bf16.msra.mxu0 0
      %530 = vmatprep.subr.bf16.mxu0 0
      %531 = vmatpush1.bf16.msra.mxu0 0
      %532 = vmatprep.subr.bf16.mxu0 0
      %533 = vmatpush1.bf16.msra.mxu0 0
      %534 = vmatprep.subr.bf16.mxu0 0
      %535 = vmatpush1.bf16.msra.mxu0 0
      %536 = vmatprep.subr.bf16.mxu0 0
      %537 = vmatpush1.bf16.msra.mxu0 0
      %538 = vmatprep.subr.bf16.mxu0 0
      %539 = vmatpush1.bf16.msra.mxu0 0
      %540 = vmatprep.mubr.bf16.mxu0 0
      %541 = vmatmul.mubr.bf16.gmra.mrb[0].mxu0 %v503
      %v542 = vpop.f32.mrb[0].mxu0
      %v543 = vadd.f32 %v501, %v542
      %v544 = vpop.f32.mrb[0].mxu0
      %v545 = vpop.f32.mrb[0].mxu0
      %v546 = vadd.f32 %v501, %v545
      %v547 = vpop.f32.mrb[0].mxu0
      %548 = vmatprep.mubr.bf16.mxu0 0
      %549 = vmatmul.mubr.bf16.gmra.mrb[0].mxu0 %v506
      %v550 = vpop.f32.mrb[0].mxu0
      %v551 = vadd.f32 %v501, %v550
      %v552 = vpop.f32.mrb[0].mxu0
      %v553 = vpop.f32.mrb[0].mxu0
      %v554 = vadd.f32 %v501, %v553
      %v555 = vpop.f32.mrb[0].mxu0
      %556 = vdwg.mxu0
      %v557 = vmax.f32 %v543, 0.0
      %v558 = vmax.f32 %v546, 0.0
      %v559 = vmax.f32 %v551, 0.0
      %v560 = vmax.f32 %v554, 0.0
      %v561 = vld [vmem:[%s3 + $0x82] sm:$0xff]
      %v562 = vld [vmem:[%s3 + $0x8a] sm:$0xff]
      %v563 = vld [vmem:[%s3 + $0x92] sm:$0xff]
      %v564 = vld [vmem:[%s3 + $0x9a] sm:$0xff]
      %v565 = vpack.c.bf16 %v562, %v561
      %v566 = vpack.c.bf16 %v564, %v563
      %v567 = vld [vmem:[%s3 + $0xa2] sm:$0x1]
      %v568 = vpack.c.bf16 %v558, %v557
      %v569 = vpack.c.bf16 %v560, %v559
      %v570 = vlaneseq
      %v571 = vshrl.u32 %v570, 7
      %v572 = vsub.s32 0, %v571
      %v573 = vrot.slane %v567, %v572
      %v575 = vsel %vm276, %v568, 0
      %v578 = vsel %vm276, %v569, 0
      %580 = vmatprep.subr.bf16.mxu0 0
      %581 = vmatpush1.bf16.msra.mxu0 %v565
      %582 = vmatprep.subr.bf16.mxu0 0
      %583 = vmatpush1.bf16.msra.mxu0 %v566
      %584 = vmatprep.subr.bf16.mxu0 0
      %585 = vmatpush1.bf16.msra.mxu0 0
      %586 = vmatprep.subr.bf16.mxu0 0
      %587 = vmatpush1.bf16.msra.mxu0 0
      %588 = vmatprep.subr.bf16.mxu0 0
      %589 = vmatpush1.bf16.msra.mxu0 0
      %590 = vmatprep.subr.bf16.mxu0 0
      %591 = vmatpush1.bf16.msra.mxu0 0
      %592 = vmatprep.subr.bf16.mxu0 0
      %593 = vmatpush1.bf16.msra.mxu0 0
      %594 = vmatprep.subr.bf16.mxu0 0
      %595 = vmatpush1.bf16.msra.mxu0 0
      %596 = vmatprep.subr.bf16.mxu0 0
      %597 = vmatpush1.bf16.msra.mxu0 0
      %598 = vmatprep.subr.bf16.mxu0 0
      %599 = vmatpush1.bf16.msra.mxu0 0
      %600 = vmatprep.subr.bf16.mxu0 0
      %601 = vmatpush1.bf16.msra.mxu0 0
      %602 = vmatprep.subr.bf16.mxu0 0
      %603 = vmatpush1.bf16.msra.mxu0 0
      %604 = vmatprep.subr.bf16.mxu0 0
      %605 = vmatpush1.bf16.msra.mxu0 0
      %606 = vmatprep.subr.bf16.mxu0 0
      %607 = vmatpush1.bf16.msra.mxu0 0
      %608 = vmatprep.subr.bf16.mxu0 0
      %609 = vmatpush1.bf16.msra.mxu0 0
      %610 = vmatprep.subr.bf16.mxu0 0
      %611 = vmatpush1.bf16.msra.mxu0 0
      %612 = vmatprep.mubr.bf16.mxu0 0
      %613 = vmatmul.mubr.bf16.gmra.mrb[0].mxu0 %v575
      %v614 = vpop.f32.mrb[0].mxu0
      %v615 = vadd.f32 %v573, %v614
      %v616 = vpop.f32.mrb[0].mxu0
      %v617 = vpop.f32.mrb[0].mxu0
      %v618 = vadd.f32 %v573, %v617
      %v619 = vpop.f32.mrb[0].mxu0
      %620 = vmatprep.mubr.bf16.mxu0 0
      %621 = vmatmul.mubr.bf16.gmra.mrb[0].mxu0 %v578
      %v622 = vpop.f32.mrb[0].mxu0
      %v623 = vadd.f32 %v573, %v622
      %v624 = vpop.f32.mrb[0].mxu0
      %v625 = vpop.f32.mrb[0].mxu0
      %v626 = vadd.f32 %v573, %v625
      %v627 = vpop.f32.mrb[0].mxu0
      %628 = vdwg.mxu0
      %v629 = vld [vmem:[%s3 + $0xa3] sm:$0x1]
      %v630 = vld [vmem:[%s3 + $0xa4] sm:$0x1]
      %v631 = vsel %vm276, %v615, 0.0
      %632 = vadd.xlane.f32.xlu0 %v631
      %v633 = vpop.xlane.xlu0 %632
      %v634 = vsel %vm276, %v618, 0.0
      %635 = vadd.xlane.f32.xlu0 %v634
      %v636 = vpop.xlane.xlu0 %635
      %v637 = vsel %vm276, %v623, 0.0
      %638 = vadd.xlane.f32.xlu0 %v637
      %v639 = vpop.xlane.xlu0 %638
      %v640 = vsel %vm276, %v626, 0.0
      %641 = vadd.xlane.f32.xlu0 %v640
      %v642 = vpop.xlane.xlu0 %641
      %v643 = vmul.f32 %v633, 0.03125
      %v644 = vmul.f32 %v636, 0.03125
      %v645 = vmul.f32 %v639, 0.03125
      %v646 = vmul.f32 %v642, 0.03125
      %v647 = vmul.f32 %v615, %v615
      %v648 = vmul.f32 %v618, %v618
      %v649 = vmul.f32 %v623, %v623
      %v650 = vmul.f32 %v626, %v626
      %v651 = vsel %vm276, %v647, 0.0
      %652 = vadd.xlane.f32.xlu0 %v651
      %v653 = vpop.xlane.xlu0 %652
      %v654 = vsel %vm276, %v648, 0.0
      %655 = vadd.xlane.f32.xlu0 %v654
      %v656 = vpop.xlane.xlu0 %655
      %v657 = vsel %vm276, %v649, 0.0
      %658 = vadd.xlane.f32.xlu0 %v657
      %v659 = vpop.xlane.xlu0 %658
      %v660 = vsel %vm276, %v650, 0.0
      %661 = vadd.xlane.f32.xlu0 %v660
      %v662 = vpop.xlane.xlu0 %661
      %v663 = vmul.f32 %v653, 0.03125
      %v664 = vmul.f32 %v656, 0.03125
      %v665 = vmul.f32 %v659, 0.03125
      %v666 = vmul.f32 %v662, 0.03125
      %v667 = vmul.f32 %v643, %v643
      %v668 = vmul.f32 %v644, %v644
      %v669 = vmul.f32 %v645, %v645
      %v670 = vmul.f32 %v646, %v646
      %v671 = vsub.f32 %v663, %v667
      %v672 = vsub.f32 %v664, %v668
      %v673 = vsub.f32 %v665, %v669
      %v674 = vsub.f32 %v666, %v670
      %v675 = vmax.f32 %v671, 0.0
      %v676 = vmax.f32 %v672, 0.0
      %v677 = vmax.f32 %v673, 0.0
      %v678 = vmax.f32 %v674, 0.0
      %v679 = vsub.f32 %v615, %v643
      %v680 = vsub.f32 %v618, %v644
      %v681 = vsub.f32 %v623, %v645
      %v682 = vsub.f32 %v626, %v646
      %v683 = vadd.f32 %v675, 1e-05
      %v684 = vadd.f32 %v676, 1e-05
      %v685 = vadd.f32 %v677, 1e-05
      %v686 = vadd.f32 %v678, 1e-05
      %v687 = vrsqrt.pop %v683
      %v688 = vrsqrt.pop %v684
      %v689 = vrsqrt.pop %v685
      %v690 = vrsqrt.pop %v686
      %v691 = vmul.f32 %v679, %v687
      %v692 = vmul.f32 %v680, %v688
      %v693 = vmul.f32 %v681, %v689
      %v694 = vmul.f32 %v682, %v690
      %v695 = vlaneseq
      %v696 = vshrl.u32 %v695, 7
      %v697 = vsub.s32 0, %v696
      %v698 = vrot.slane %v629, %v697
      %v699 = vmul.f32 %v691, %v698
      %v700 = vmul.f32 %v692, %v698
      %v701 = vmul.f32 %v693, %v698
      %v702 = vmul.f32 %v694, %v698
      %v703 = vlaneseq
      %v704 = vshrl.u32 %v703, 7
      %v705 = vsub.s32 0, %v704
      %v706 = vrot.slane %v630, %v705
      %v707 = vadd.f32 %v699, %v706
      %v708 = vadd.f32 %v700, %v706
      %v709 = vadd.f32 %v701, %v706
      %v710 = vadd.f32 %v702, %v706
      %v711 = vpack.c.bf16 %v708, %v707
      %v712 = vpack.c.bf16 %v710, %v709
      %v715 = vunpack.c.l.b16 %v711
      %v716 = vunpack.c.h.b16 %v711
      %v717 = vunpack.c.l.b16 %v712
      %v718 = vunpack.c.h.b16 %v712
      %v719 = vpack.c.b16 %v715, %v715
      %v720 = vpack.c.b16 %v716, %v716
      %v721 = vpack.c.b16 %v717, %v717
      %v722 = vpack.c.b16 %v718, %v718
      %vm727 = vcmask 257024
      %728 = vst.msk [vmem:[%s243] sm:$0xf] %vm727, %v719
      %729 = vst.msk [vmem:[%s243 + $0x4] sm:$0xf] %vm727, %v720
      %730 = vst.msk [vmem:[%s243 + $0x8] sm:$0xf] %vm727, %v721
      %731 = vst.msk [vmem:[%s243 + $0xc] sm:$0xf] %vm727, %v722
      %s732 = smul.u32 4, %s15
      %p733 = scmp.lt.s32.totalorder %s732, 7
      %s734 = scalar_select %p733, %s732, 7
      %s735 = smul.addr %s734, 4
      %s736 = scalar_lea.vmem %s4, %s735
      // Predicated region
      $region37: #{encode_process_decode.11} parent=35 // pred_check
        %p737 = pneg %p132
      $region38: #{encode_process_decode.11} parent=35 // pred_check_branch
        %739 = sbr.rel (%p737) target = $region40
      $region39: #{encode_process_decode.11} parent=35 // pred_region
        %s740 = smul.u32 4, %s15
      $region40: #{encode_process_decode.11} parent=35 // pred_fallthru
        _
    $region36: #{encode_process_decode.11} parent=5 // pred_fallthru
      _
    %p741 = scmp.le.s32.totalorder 2, %s10
    // Predicated region
    $region41: #{encode_process_decode.11} parent=5 // pred_check
      %p742 = pneg %p741
    $region42: #{encode_process_decode.11} parent=5 // pred_check_branch
      %744 = sbr.rel (%p742) target = $region44
    $region43: #{encode_process_decode.11} parent=5 // pred_region
      %s745 = ssub.s32 %s10, 2
      // Predicated region
      $region45: #{encode_process_decode.11} parent=43 // pred_check
        %p746 = pneg %p138
      $region46: #{encode_process_decode.11} parent=43 // pred_check_branch
        %748 = sbr.rel (%p746) target = $region48
      $region47: #{encode_process_decode.11} parent=43 // pred_region
        %s749 = smul.u32 4, %s16
        %p750 = scmp.lt.s32.totalorder %s749, 7
        %s751 = scalar_select %p750, %s749, 7
        %s752 = smul.addr %s751, 4
        %s753 = scalar_lea.vmem %s4, %s752
      $region48: #{encode_process_decode.11} parent=43 // pred_fallthru
        _
    $region44: #{encode_process_decode.11} parent=5 // pred_fallthru
      _
  $region6: #{encode_process_decode.11} parent=0 // loop_footer
    %s14 = sadd.s32 1, %s10
  $region7: #{encode_process_decode.11} parent=0 // loop_footer_branch
    %9 = sbr.rel target = $region3
  $region8: #{encode_process_decode.11} parent=0 // loop_exit
    _

</llo_original>
